<compile_context>
chip_gen: v6e
topology: v6e:2x2x1
jax: 0.10.0
libtpu: 0.0.40
codegen_flags: <defaults>
</compile_context>

<pallas_src>
import functools

import jax
import jax.numpy as jnp
from jax.experimental import pallas as pl
from jax.experimental.pallas import tpu as pltpu

# logical (PyTorch) dims
IN = 32
H1, H2, H3, LAT = 600, 250, 100, 30
OUT = 8 * 3  # 24

# lane-padded dims (multiples of 128)
H1_P, H2_P, H3_P, LAT_P, OUT_P = 640, 256, 128, 128, 128
CAT_P = H1_P + LAT_P  # fused [layer1 | residual] output width = 768


def _round_up(n, m):
    return ((n + m - 1) // m) * m


# ---------------------------------------------------------------------------
# kernel
# ---------------------------------------------------------------------------
def vae_kernel(
    x_ref,
    wc_ref, bc_ref,            # fused encoder layer 1 + residual
    w2_ref, b2_ref, w3_ref, b3_ref, w4_ref, b4_ref,   # rest of encoder
    w5_ref, b5_ref, w6_ref, b6_ref, w7_ref, b7_ref, w8_ref, b8_ref,  # decoder
    out_ref,
):
    mm_dtype = wc_ref.dtype          # bf16 or f32 (weights pre-cast in wrapper)
    x = x_ref[...].astype(mm_dtype)

    def mm(a, w_ref, b_ref):
        # MXU matmul with f32 accumulation; bias add in f32.
        return jnp.dot(a.astype(mm_dtype), w_ref[...],
                       preferred_element_type=jnp.float32) + b_ref[...]

    # fused encoder layer 1 + residual projection (shared LHS, split at lane 640)
    y0 = mm(x, wc_ref, bc_ref)            # (BM, 768) f32
    h = jnp.tanh(y0[:, :H1_P])            # (BM, 640); cols 600:640 -> tanh(0)=0
    res = y0[:, H1_P:]                    # (BM, 128); cols 30:128 are exactly 0

    # remaining encoder layers (padded cols stay exactly zero)
    h = jnp.tanh(mm(h, w2_ref, b2_ref))   # (BM, 256)
    h = jnp.tanh(mm(h, w3_ref, b3_ref))   # (BM, 128)
    enc = jnp.tanh(mm(h, w4_ref, b4_ref)) # (BM, 128)
    enc = enc + res

    # decoder
    d = jnp.tanh(mm(enc, w5_ref, b5_ref)) # (BM, 128)
    d = jnp.tanh(mm(d, w6_ref, b6_ref))   # (BM, 256)
    d = jnp.tanh(mm(d, w7_ref, b7_ref))   # (BM, 640)
    dec = mm(d, w8_ref, b8_ref)           # (BM, 128); cols 24:128 are 0

    out_ref[...] = dec.astype(out_ref.dtype)


# ---------------------------------------------------------------------------
# wrapper
# ---------------------------------------------------------------------------
@functools.partial(jax.jit, static_argnames=("block_batch",))
def vae_forward(x, padded_params, *, block_batch=256):
    """x: [B, IN] f32, padded_params from prepare_params() -> [B, OUT] f32."""
    B = x.shape[0]
    # shrink the tile for tiny batches, keep it sublane-aligned
    bm = _round_up(min(block_batch, _round_up(B, 8)), 8)
    B_pad = _round_up(B, bm)
    if B_pad != B:
        x = jnp.pad(x, ((0, B_pad - B), (0, 0)))
    grid = (B_pad // bm,)

    # weights/biases: full-array blocks with a constant index_map -> resident in
    # VMEM across all grid steps (no per-step re-DMA).
    param_specs = [pl.BlockSpec(p.shape, lambda i: (0, 0)) for p in padded_params]

    out = pl.pallas_call(
        vae_kernel,
        out_shape=jax.ShapeDtypeStruct((B_pad, OUT_P), jnp.float32),
        grid_spec=pltpu.PrefetchScalarGridSpec(
            num_scalar_prefetch=0,
            grid=grid,
            in_specs=[pl.BlockSpec((bm, IN), lambda i: (i, 0))] + param_specs,
            out_specs=pl.BlockSpec((bm, OUT_P), lambda i: (i, 0)),
        ),
        compiler_params=pltpu.CompilerParams(
            dimension_semantics=("parallel",),   # megacore sharding on v7x
        ),
    )(x, *padded_params)
    return out[:B, :OUT]


# ---------------------------------------------------------------------------
# parameter preparation (padding / fusion / dtype)
# ---------------------------------------------------------------------------
def _pad2(a, shape):
    out = jnp.zeros(shape, jnp.float32)
    return out.at[: a.shape[0], : a.shape[1]].set(a)


def prepare_params(params, matmul_dtype=jnp.bfloat16):
    """Pad all dims to multiples of 128, fuse layer1+residual, cast weights."""
    (w1, b1, w2, b2, w3, b3, w4, b4, wr, br,
     w5, b5, w6, b6, w7, b7, w8, b8) = params

    # fused [W1 | Wr], split lane-aligned at column H1_P = 640
    wcat = jnp.zeros((IN, CAT_P), jnp.float32)
    wcat = wcat.at[:, :H1].set(w1)
    wcat = wcat.at[:, H1_P:H1_P + LAT].set(wr)
    bcat = jnp.zeros((1, CAT_P), jnp.float32)
    bcat = bcat.at[:, :H1].set(b1)
    bcat = bcat.at[:, H1_P:H1_P + LAT].set(br)

    weights = [
        wcat,
        _pad2(w2, (H1_P, H2_P)), _pad2(w3, (H2_P, H3_P)), _pad2(w4, (H3_P, LAT_P)),
        _pad2(w5, (LAT_P, H3_P)), _pad2(w6, (H3_P, H2_P)), _pad2(w7, (H2_P, H1_P)),
        _pad2(w8, (H1_P, OUT_P)),
    ]
    biases = [
        bcat,
        _pad2(b2, (1, H2_P)), _pad2(b3, (1, H3_P)), _pad2(b4, (1, LAT_P)),
        _pad2(b5, (1, H3_P)), _pad2(b6, (1, H2_P)), _pad2(b7, (1, H1_P)),
        _pad2(b8, (1, OUT_P)),
    ]
    out = []
    for w, b in zip(weights, biases):
        out.append(w.astype(matmul_dtype))   # matmul operands: bf16 or f32
        out.append(b)                        # biases stay f32
    return out


# ---------------------------------------------------------------------------
# init + pure-JAX reference
# ---------------------------------------------------------------------------
def init_params(key):
    """nn.Linear-style init; weights stored [in, out], biases [1, out]."""
    dims = [
        (IN, H1), (H1, H2), (H2, H3), (H3, LAT),   # encoder
        (IN, LAT),                                 # residual
        (LAT, H3), (H3, H2), (H2, H1), (H1, OUT),  # decoder
    ]
    params = []
    for fan_in, fan_out in dims:
        key, kw, kb = jax.random.split(key, 3)
        bound = 1.0 / jnp.sqrt(fan_in)
        params.append(jax.random.uniform(kw, (fan_in, fan_out), jnp.float32, -bound, bound))
        params.append(jax.random.uniform(kb, (1, fan_out), jnp.float32, -bound, bound))
    return params


def vae_reference(x, params):
    (w1, b1, w2, b2, w3, b3, w4, b4, wr, br,
     w5, b5, w6, b6, w7, b7, w8, b8) = params
    h = jnp.tanh(x @ w1 + b1)
    h = jnp.tanh(h @ w2 + b2)
    h = jnp.tanh(h @ w3 + b3)
    enc = jnp.tanh(h @ w4 + b4)
    enc = enc + (x @ wr + br)
    d = jnp.tanh(enc @ w5 + b5)
    d = jnp.tanh(d @ w6 + b6)
    d = jnp.tanh(d @ w7 + b7)
    return d @ w8 + b8


if __name__ == "__main__":
    key = jax.random.PRNGKey(0)
    key, kx = jax.random.split(key)

    B = 512  # two 256-row batch tiles -> both v7x TensorCores get work
    x = jax.random.normal(kx, (B, IN), jnp.float32)
    raw = init_params(key)
    ref = vae_reference(x, raw)

    # exact path: f32 matmul operands
    p_f32 = prepare_params(raw, jnp.float32)
    out_f32 = jax.block_until_ready(vae_forward(x, p_f32, block_batch=256))
    assert out_f32.shape == (B, OUT), out_f32.shape
    assert jnp.allclose(out_f32, ref, atol=1e-4, rtol=1e-4), "f32 mismatch vs reference"

    # perf path: bf16 matmul operands, f32 accumulation (looser tolerance)
    p_bf16 = prepare_params(raw, jnp.bfloat16)
    out_bf16 = jax.block_until_ready(vae_forward(x, p_bf16, block_batch=256))
    assert out_bf16.shape == (B, OUT), out_bf16.shape
    assert jnp.max(jnp.abs(out_bf16 - ref)) < 5e-2, "bf16 mismatch vs reference"

    # ragged batch (exercises the wrapper-side batch padding)
    out_rag = jax.block_until_ready(vae_forward(x[:100], p_f32, block_batch=256))
    assert jnp.allclose(out_rag, ref[:100], atol=1e-4, rtol=1e-4), "ragged-batch mismatch"

    print("KERNEL_OK")
</pallas_src>

<mosaic_0001>
module attributes {stable_mosaic.version = 11 : i64} {
  func.func @vae_kernel(%arg0: i32, %arg1: memref<256x32xf32, #tpu.memory_space<vmem>>, %arg2: memref<32x768xf32, #tpu.memory_space<vmem>>, %arg3: memref<1x768xf32, #tpu.memory_space<vmem>>, %arg4: memref<640x256xf32, #tpu.memory_space<vmem>>, %arg5: memref<1x256xf32, #tpu.memory_space<vmem>>, %arg6: memref<256x128xf32, #tpu.memory_space<vmem>>, %arg7: memref<1x128xf32, #tpu.memory_space<vmem>>, %arg8: memref<128x128xf32, #tpu.memory_space<vmem>>, %arg9: memref<1x128xf32, #tpu.memory_space<vmem>>, %arg10: memref<128x128xf32, #tpu.memory_space<vmem>>, %arg11: memref<1x128xf32, #tpu.memory_space<vmem>>, %arg12: memref<128x256xf32, #tpu.memory_space<vmem>>, %arg13: memref<1x256xf32, #tpu.memory_space<vmem>>, %arg14: memref<256x640xf32, #tpu.memory_space<vmem>>, %arg15: memref<1x640xf32, #tpu.memory_space<vmem>>, %arg16: memref<640x128xf32, #tpu.memory_space<vmem>>, %arg17: memref<1x128xf32, #tpu.memory_space<vmem>>, %arg18: memref<256x128xf32, #tpu.memory_space<vmem>>) attributes {dimension_semantics = [#tpu.dimension_semantics<parallel>], iteration_bounds = array<i64: 2>, scalar_prefetch = 0 : i64, scratch_operands = 0 : i64, tpu.core_type = #tpu.core_type<tc>, window_params = [{transform_indices = @transform_0, window_bounds = array<i64: 256, 32>}, {pipeline_mode = #tpu.pipeline_mode<synchronous>, transform_indices = @transform_1, window_bounds = array<i64: 32, 768>}, {pipeline_mode = #tpu.pipeline_mode<synchronous>, transform_indices = @transform_2, window_bounds = array<i64: 1, 768>}, {pipeline_mode = #tpu.pipeline_mode<synchronous>, transform_indices = @transform_3, window_bounds = array<i64: 640, 256>}, {pipeline_mode = #tpu.pipeline_mode<synchronous>, transform_indices = @transform_4, window_bounds = array<i64: 1, 256>}, {pipeline_mode = #tpu.pipeline_mode<synchronous>, transform_indices = @transform_5, window_bounds = array<i64: 256, 128>}, {pipeline_mode = #tpu.pipeline_mode<synchronous>, transform_indices = @transform_6, window_bounds = array<i64: 1, 128>}, {pipeline_mode = #tpu.pipeline_mode<synchronous>, transform_indices = @transform_7, window_bounds = array<i64: 128, 128>}, {pipeline_mode = #tpu.pipeline_mode<synchronous>, transform_indices = @transform_8, window_bounds = array<i64: 1, 128>}, {pipeline_mode = #tpu.pipeline_mode<synchronous>, transform_indices = @transform_9, window_bounds = array<i64: 128, 128>}, {pipeline_mode = #tpu.pipeline_mode<synchronous>, transform_indices = @transform_10, window_bounds = array<i64: 1, 128>}, {pipeline_mode = #tpu.pipeline_mode<synchronous>, transform_indices = @transform_11, window_bounds = array<i64: 128, 256>}, {pipeline_mode = #tpu.pipeline_mode<synchronous>, transform_indices = @transform_12, window_bounds = array<i64: 1, 256>}, {pipeline_mode = #tpu.pipeline_mode<synchronous>, transform_indices = @transform_13, window_bounds = array<i64: 256, 640>}, {pipeline_mode = #tpu.pipeline_mode<synchronous>, transform_indices = @transform_14, window_bounds = array<i64: 1, 640>}, {pipeline_mode = #tpu.pipeline_mode<synchronous>, transform_indices = @transform_15, window_bounds = array<i64: 640, 128>}, {pipeline_mode = #tpu.pipeline_mode<synchronous>, transform_indices = @transform_16, window_bounds = array<i64: 1, 128>}, {transform_indices = @transform_17, window_bounds = array<i64: 256, 128>}]} {
    %c0 = arith.constant 0 : index
    %c0_0 = arith.constant 0 : index
    %0 = vector.load %arg1[%c0, %c0_0] : memref<256x32xf32, #tpu.memory_space<vmem>>, vector<256x32xf32>
    %c0_1 = arith.constant 0 : index
    %c0_2 = arith.constant 0 : index
    %1 = vector.load %arg2[%c0_1, %c0_2] : memref<32x768xf32, #tpu.memory_space<vmem>>, vector<32x768xf32>
    %cst = arith.constant dense<0.000000e+00> : vector<256x768xf32>
    %2 = tpu.matmul %0, %1, %cst {dimension_numbers = #tpu.dot_dimension_numbers<[1], [0], [0], [1], [0, 0, 1, 1], [], []>} : vector<256x32xf32>, vector<32x768xf32>, vector<256x768xf32> -> vector<256x768xf32>
    %c0_3 = arith.constant 0 : index
    %c0_4 = arith.constant 0 : index
    %3 = vector.load %arg3[%c0_3, %c0_4] : memref<1x768xf32, #tpu.memory_space<vmem>>, vector<1x768xf32>
    %4 = vector.broadcast %3 : vector<1x768xf32> to vector<256x768xf32>
    %5 = arith.addf %2, %4 : vector<256x768xf32>
    %6 = vector.extract_strided_slice %5 {offsets = [0, 0], sizes = [256, 640], strides = [1, 1]} : vector<256x768xf32> to vector<256x640xf32>
    %7 = math.tanh %6 : vector<256x640xf32>
    %8 = vector.extract_strided_slice %5 {offsets = [0, 640], sizes = [256, 128], strides = [1, 1]} : vector<256x768xf32> to vector<256x128xf32>
    %c0_5 = arith.constant 0 : index
    %c0_6 = arith.constant 0 : index
    %9 = vector.load %arg4[%c0_5, %c0_6] : memref<640x256xf32, #tpu.memory_space<vmem>>, vector<640x256xf32>
    %cst_7 = arith.constant dense<0.000000e+00> : vector<256x256xf32>
    %10 = tpu.matmul %7, %9, %cst_7 {dimension_numbers = #tpu.dot_dimension_numbers<[1], [0], [0], [1], [0, 0, 1, 1], [], []>} : vector<256x640xf32>, vector<640x256xf32>, vector<256x256xf32> -> vector<256x256xf32>
    %c0_8 = arith.constant 0 : index
    %c0_9 = arith.constant 0 : index
    %11 = vector.load %arg5[%c0_8, %c0_9] : memref<1x256xf32, #tpu.memory_space<vmem>>, vector<1x256xf32>
    %12 = vector.broadcast %11 : vector<1x256xf32> to vector<256x256xf32>
    %13 = arith.addf %10, %12 : vector<256x256xf32>
    %14 = math.tanh %13 : vector<256x256xf32>
    %c0_10 = arith.constant 0 : index
    %c0_11 = arith.constant 0 : index
    %15 = vector.load %arg6[%c0_10, %c0_11] : memref<256x128xf32, #tpu.memory_space<vmem>>, vector<256x128xf32>
    %cst_12 = arith.constant dense<0.000000e+00> : vector<256x128xf32>
    %16 = tpu.matmul %14, %15, %cst_12 {dimension_numbers = #tpu.dot_dimension_numbers<[1], [0], [0], [1], [0, 0, 1, 1], [], []>} : vector<256x256xf32>, vector<256x128xf32>, vector<256x128xf32> -> vector<256x128xf32>
    %c0_13 = arith.constant 0 : index
    %c0_14 = arith.constant 0 : index
    %17 = vector.load %arg7[%c0_13, %c0_14] : memref<1x128xf32, #tpu.memory_space<vmem>>, vector<1x128xf32>
    %18 = vector.broadcast %17 : vector<1x128xf32> to vector<256x128xf32>
    %19 = arith.addf %16, %18 : vector<256x128xf32>
    %20 = math.tanh %19 : vector<256x128xf32>
    %c0_15 = arith.constant 0 : index
    %c0_16 = arith.constant 0 : index
    %21 = vector.load %arg8[%c0_15, %c0_16] : memref<128x128xf32, #tpu.memory_space<vmem>>, vector<128x128xf32>
    %cst_17 = arith.constant dense<0.000000e+00> : vector<256x128xf32>
    %22 = tpu.matmul %20, %21, %cst_17 {dimension_numbers = #tpu.dot_dimension_numbers<[1], [0], [0], [1], [0, 0, 1, 1], [], []>} : vector<256x128xf32>, vector<128x128xf32>, vector<256x128xf32> -> vector<256x128xf32>
    %c0_18 = arith.constant 0 : index
    %c0_19 = arith.constant 0 : index
    %23 = vector.load %arg9[%c0_18, %c0_19] : memref<1x128xf32, #tpu.memory_space<vmem>>, vector<1x128xf32>
    %24 = vector.broadcast %23 : vector<1x128xf32> to vector<256x128xf32>
    %25 = arith.addf %22, %24 : vector<256x128xf32>
    %26 = math.tanh %25 : vector<256x128xf32>
    %27 = arith.addf %26, %8 : vector<256x128xf32>
    %c0_20 = arith.constant 0 : index
    %c0_21 = arith.constant 0 : index
    %28 = vector.load %arg10[%c0_20, %c0_21] : memref<128x128xf32, #tpu.memory_space<vmem>>, vector<128x128xf32>
    %cst_22 = arith.constant dense<0.000000e+00> : vector<256x128xf32>
    %29 = tpu.matmul %27, %28, %cst_22 {dimension_numbers = #tpu.dot_dimension_numbers<[1], [0], [0], [1], [0, 0, 1, 1], [], []>} : vector<256x128xf32>, vector<128x128xf32>, vector<256x128xf32> -> vector<256x128xf32>
    %c0_23 = arith.constant 0 : index
    %c0_24 = arith.constant 0 : index
    %30 = vector.load %arg11[%c0_23, %c0_24] : memref<1x128xf32, #tpu.memory_space<vmem>>, vector<1x128xf32>
    %31 = vector.broadcast %30 : vector<1x128xf32> to vector<256x128xf32>
    %32 = arith.addf %29, %31 : vector<256x128xf32>
    %33 = math.tanh %32 : vector<256x128xf32>
    %c0_25 = arith.constant 0 : index
    %c0_26 = arith.constant 0 : index
    %34 = vector.load %arg12[%c0_25, %c0_26] : memref<128x256xf32, #tpu.memory_space<vmem>>, vector<128x256xf32>
    %cst_27 = arith.constant dense<0.000000e+00> : vector<256x256xf32>
    %35 = tpu.matmul %33, %34, %cst_27 {dimension_numbers = #tpu.dot_dimension_numbers<[1], [0], [0], [1], [0, 0, 1, 1], [], []>} : vector<256x128xf32>, vector<128x256xf32>, vector<256x256xf32> -> vector<256x256xf32>
    %c0_28 = arith.constant 0 : index
    %c0_29 = arith.constant 0 : index
    %36 = vector.load %arg13[%c0_28, %c0_29] : memref<1x256xf32, #tpu.memory_space<vmem>>, vector<1x256xf32>
    %37 = vector.broadcast %36 : vector<1x256xf32> to vector<256x256xf32>
    %38 = arith.addf %35, %37 : vector<256x256xf32>
    %39 = math.tanh %38 : vector<256x256xf32>
    %c0_30 = arith.constant 0 : index
    %c0_31 = arith.constant 0 : index
    %40 = vector.load %arg14[%c0_30, %c0_31] : memref<256x640xf32, #tpu.memory_space<vmem>>, vector<256x640xf32>
    %cst_32 = arith.constant dense<0.000000e+00> : vector<256x640xf32>
    %41 = tpu.matmul %39, %40, %cst_32 {dimension_numbers = #tpu.dot_dimension_numbers<[1], [0], [0], [1], [0, 0, 1, 1], [], []>} : vector<256x256xf32>, vector<256x640xf32>, vector<256x640xf32> -> vector<256x640xf32>
    %c0_33 = arith.constant 0 : index
    %c0_34 = arith.constant 0 : index
    %42 = vector.load %arg15[%c0_33, %c0_34] : memref<1x640xf32, #tpu.memory_space<vmem>>, vector<1x640xf32>
    %43 = vector.broadcast %42 : vector<1x640xf32> to vector<256x640xf32>
    %44 = arith.addf %41, %43 : vector<256x640xf32>
    %45 = math.tanh %44 : vector<256x640xf32>
    %c0_35 = arith.constant 0 : index
    %c0_36 = arith.constant 0 : index
    %46 = vector.load %arg16[%c0_35, %c0_36] : memref<640x128xf32, #tpu.memory_space<vmem>>, vector<640x128xf32>
    %cst_37 = arith.constant dense<0.000000e+00> : vector<256x128xf32>
    %47 = tpu.matmul %45, %46, %cst_37 {dimension_numbers = #tpu.dot_dimension_numbers<[1], [0], [0], [1], [0, 0, 1, 1], [], []>} : vector<256x640xf32>, vector<640x128xf32>, vector<256x128xf32> -> vector<256x128xf32>
    %c0_38 = arith.constant 0 : index
    %c0_39 = arith.constant 0 : index
    %48 = vector.load %arg17[%c0_38, %c0_39] : memref<1x128xf32, #tpu.memory_space<vmem>>, vector<1x128xf32>
    %49 = vector.broadcast %48 : vector<1x128xf32> to vector<256x128xf32>
    %50 = arith.addf %47, %49 : vector<256x128xf32>
    %c0_40 = arith.constant 0 : index
    %c0_41 = arith.constant 0 : index
    %51 = vector.load %arg18[%c0_40, %c0_41] : memref<256x128xf32, #tpu.memory_space<vmem>>, vector<256x128xf32>
    tpu.vector_store %arg18[%c0_40, %c0_41], %50 {strides = array<i32>} : memref<256x128xf32, #tpu.memory_space<vmem>>, vector<256x128xf32>,
    return
  }
  func.func @transform_0(%arg0: i32) -> (i32, i32) {
    %c0_i32 = arith.constant 0 : i32
    %c0_i32_0 = arith.constant 0 : i32
    return %arg0, %c0_i32 : i32, i32
  }
  func.func @transform_1(%arg0: i32) -> (i32, i32) {
    %c0_i32 = arith.constant 0 : i32
    %c0_i32_0 = arith.constant 0 : i32
    %c0_i32_1 = arith.constant 0 : i32
    return %c0_i32, %c0_i32_0 : i32, i32
  }
  func.func @transform_2(%arg0: i32) -> (i32, i32) {
    %c0_i32 = arith.constant 0 : i32
    %c0_i32_0 = arith.constant 0 : i32
    %c0_i32_1 = arith.constant 0 : i32
    return %c0_i32, %c0_i32_0 : i32, i32
  }
  func.func @transform_3(%arg0: i32) -> (i32, i32) {
    %c0_i32 = arith.constant 0 : i32
    %c0_i32_0 = arith.constant 0 : i32
    %c0_i32_1 = arith.constant 0 : i32
    return %c0_i32, %c0_i32_0 : i32, i32
  }
  func.func @transform_4(%arg0: i32) -> (i32, i32) {
    %c0_i32 = arith.constant 0 : i32
    %c0_i32_0 = arith.constant 0 : i32
    %c0_i32_1 = arith.constant 0 : i32
    return %c0_i32, %c0_i32_0 : i32, i32
  }
  func.func @transform_5(%arg0: i32) -> (i32, i32) {
    %c0_i32 = arith.constant 0 : i32
    %c0_i32_0 = arith.constant 0 : i32
    %c0_i32_1 = arith.constant 0 : i32
    return %c0_i32, %c0_i32_0 : i32, i32
  }
  func.func @transform_6(%arg0: i32) -> (i32, i32) {
    %c0_i32 = arith.constant 0 : i32
    %c0_i32_0 = arith.constant 0 : i32
    %c0_i32_1 = arith.constant 0 : i32
    return %c0_i32, %c0_i32_0 : i32, i32
  }
  func.func @transform_7(%arg0: i32) -> (i32, i32) {
    %c0_i32 = arith.constant 0 : i32
    %c0_i32_0 = arith.constant 0 : i32
    %c0_i32_1 = arith.constant 0 : i32
    return %c0_i32, %c0_i32_0 : i32, i32
  }
  func.func @transform_8(%arg0: i32) -> (i32, i32) {
    %c0_i32 = arith.constant 0 : i32
    %c0_i32_0 = arith.constant 0 : i32
    %c0_i32_1 = arith.constant 0 : i32
    return %c0_i32, %c0_i32_0 : i32, i32
  }
  func.func @transform_9(%arg0: i32) -> (i32, i32) {
    %c0_i32 = arith.constant 0 : i32
    %c0_i32_0 = arith.constant 0 : i32
    %c0_i32_1 = arith.constant 0 : i32
    return %c0_i32, %c0_i32_0 : i32, i32
  }
  func.func @transform_10(%arg0: i32) -> (i32, i32) {
    %c0_i32 = arith.constant 0 : i32
    %c0_i32_0 = arith.constant 0 : i32
    %c0_i32_1 = arith.constant 0 : i32
    return %c0_i32, %c0_i32_0 : i32, i32
  }
  func.func @transform_11(%arg0: i32) -> (i32, i32) {
    %c0_i32 = arith.constant 0 : i32
    %c0_i32_0 = arith.constant 0 : i32
    %c0_i32_1 = arith.constant 0 : i32
    return %c0_i32, %c0_i32_0 : i32, i32
  }
  func.func @transform_12(%arg0: i32) -> (i32, i32) {
    %c0_i32 = arith.constant 0 : i32
    %c0_i32_0 = arith.constant 0 : i32
    %c0_i32_1 = arith.constant 0 : i32
    return %c0_i32, %c0_i32_0 : i32, i32
  }
  func.func @transform_13(%arg0: i32) -> (i32, i32) {
    %c0_i32 = arith.constant 0 : i32
    %c0_i32_0 = arith.constant 0 : i32
    %c0_i32_1 = arith.constant 0 : i32
    return %c0_i32, %c0_i32_0 : i32, i32
  }
  func.func @transform_14(%arg0: i32) -> (i32, i32) {
    %c0_i32 = arith.constant 0 : i32
    %c0_i32_0 = arith.constant 0 : i32
    %c0_i32_1 = arith.constant 0 : i32
    return %c0_i32, %c0_i32_0 : i32, i32
  }
  func.func @transform_15(%arg0: i32) -> (i32, i32) {
    %c0_i32 = arith.constant 0 : i32
    %c0_i32_0 = arith.constant 0 : i32
    %c0_i32_1 = arith.constant 0 : i32
    return %c0_i32, %c0_i32_0 : i32, i32
  }
  func.func @transform_16(%arg0: i32) -> (i32, i32) {
    %c0_i32 = arith.constant 0 : i32
    %c0_i32_0 = arith.constant 0 : i32
    %c0_i32_1 = arith.constant 0 : i32
    return %c0_i32, %c0_i32_0 : i32, i32
  }
  func.func @transform_17(%arg0: i32) -> (i32, i32) {
    %c0_i32 = arith.constant 0 : i32
    %c0_i32_0 = arith.constant 0 : i32
    return %arg0, %c0_i32 : i32, i32
  }
}

</mosaic_0001>

<llo_original>
// kernel: vae_forward.1
$region0: #{vae_forward.1}
  #allocation0 [shape = 'u32[]', space=smem, size = 0x4, offset = 0x4, fixed_abs, tag = 'smem constant byte address 0x4 - core index']
  #allocation1 [shape = 'u32[144,128]{1,0:T(1,128)}', space=vmem, size = 0x12000, scoped, tag = 'internal scratch']
  %s0 = inlined_call_operand.vmem [shape: f32[512,32], index: 0, kind: input, shape index: {}]
  %s1 = inlined_call_operand.hbm [shape: f32[32,768], index: 1, kind: input, shape index: {}]
  %s2 = inlined_call_operand.vmem [shape: f32[1,768], index: 2, kind: input, shape index: {}]
  %s3 = inlined_call_operand.hbm [shape: f32[640,256], index: 3, kind: input, shape index: {}]
  %s4 = inlined_call_operand.vmem [shape: f32[1,256], index: 4, kind: input, shape index: {}]
  %s5 = inlined_call_operand.hbm [shape: f32[256,128], index: 5, kind: input, shape index: {}]
  %s6 = inlined_call_operand.vmem [shape: f32[1,128], index: 6, kind: input, shape index: {}]
  %s7 = inlined_call_operand.hbm [shape: f32[128,128], index: 7, kind: input, shape index: {}]
  %s8 = inlined_call_operand.vmem [shape: f32[1,128], index: 8, kind: input, shape index: {}]
  %s9 = inlined_call_operand.hbm [shape: f32[128,128], index: 9, kind: input, shape index: {}]
  %s10 = inlined_call_operand.vmem [shape: f32[1,128], index: 10, kind: input, shape index: {}]
  %s11 = inlined_call_operand.hbm [shape: f32[128,256], index: 11, kind: input, shape index: {}]
  %s12 = inlined_call_operand.vmem [shape: f32[1,256], index: 12, kind: input, shape index: {}]
  %s13 = inlined_call_operand.hbm [shape: f32[256,640], index: 13, kind: input, shape index: {}]
  %s14 = inlined_call_operand.vmem [shape: f32[1,640], index: 14, kind: input, shape index: {}]
  %s15 = inlined_call_operand.vmem [shape: f32[640,128], index: 15, kind: input, shape index: {}]
  %s16 = inlined_call_operand.vmem [shape: f32[1,128], index: 16, kind: input, shape index: {}]
  %s17 = inlined_call_operand.vmem [shape: f32[512,128], index: 17, kind: output, shape index: {}]
  %s18 = sld [smem:[#allocation0]]
  $region129: #{vae_forward.1} parent=0
    _
  %s20 = ssub.s32 1, %s18
  %s21 = scalar_select 0, %s20, %s18
  $region1: #{vae_forward.1} parent=0
    #allocation2 [shape = 'u8[98304]{0}', space=vmem, size = 0x18000, scoped, tag = 'input window, operand 1, single buffered']
    #allocation3 [shape = 's32[2]{0}', space=sflag, size = 0x8, scoped, tag = 'scoped memory for vae_forward.1']
    #allocation4 [shape = 'u8[655360]{0}', space=vmem, size = 0xa0000, scoped, tag = 'input window, operand 3, single buffered']
    #allocation5 [shape = 's32[1]{0}', space=sflag, size = 0x4, scoped, tag = 'scoped memory for vae_forward.1']
    #allocation6 [shape = 'u8[131072]{0}', space=vmem, size = 0x20000, scoped, tag = 'input window, operand 5, single buffered']
    #allocation7 [shape = 'u8[65536]{0}', space=vmem, size = 0x10000, scoped, tag = 'input window, operand 7, single buffered']
    #allocation8 [shape = 's32[1]{0}', space=sflag, size = 0x4, scoped, tag = 'scoped memory for vae_forward.1']
    #allocation9 [shape = 'u8[65536]{0}', space=vmem, size = 0x10000, scoped, tag = 'input window, operand 9, single buffered']
    #allocation10 [shape = 'u8[131072]{0}', space=vmem, size = 0x20000, scoped, tag = 'input window, operand 11, single buffered']
    #allocation11 [shape = 's32[1]{0}', space=sflag, size = 0x4, scoped, tag = 'scoped memory for vae_forward.1']
    #allocation12 [shape = 'u8[655360]{0}', space=vmem, size = 0xa0000, scoped, tag = 'input window, operand 13, single buffered']
    %22 = vsyncpa [#allocation3], 0
    %23 = vsyncpa [#allocation5], 0
    %24 = vsyncpa [#allocation8], 0
    %25 = vsyncpa [#allocation11], 0
    loop: start=0, step=1, limit=4
    $region2: #{vae_forward.1} parent=1 // loop_pre_header
      _
    $region3: #{vae_forward.1} parent=1 // loop_header
      %s27 = sphi 0, %s31
      %p28 = scmp.ge.s32.totalorder %s27, 4
      %s37 = sphi 0, %s39
      %s40 = sphi 0, %s37
      %s41 = sphi 0, %s40
      %s57 = sphi 0, %s41
      %s61 = sphi 0, %s61
      %s63 = sphi 0, %s61
      %s64 = sphi 0, %s63
      %s78 = sphi 0, %s64
      %s82 = sphi 0, %s82
      %s84 = sphi 0, %s82
      %s85 = sphi 0, %s84
      %s99 = sphi 0, %s85
      %s103 = sphi 0, %s103
      %s105 = sphi 0, %s103
      %s106 = sphi 0, %s105
      %s120 = sphi 0, %s106
      %s124 = sphi 0, %s124
      %s126 = sphi 0, %s124
      %s127 = sphi 0, %s126
      %s141 = sphi 0, %s127
      %s145 = sphi 0, %s145
      %s147 = sphi 0, %s145
      %s148 = sphi 0, %s147
      %s162 = sphi 0, %s148
      %s166 = sphi 0, %s166
      %s168 = sphi 0, %s166
      %s169 = sphi 0, %s168
      %s183 = sphi 0, %s169
      %s187 = sphi 0, %s187
      %s189 = sphi 0, %s187
      %s190 = sphi 0, %s189
      %s204 = sphi 0, %s190
      %s208 = sphi 0, %s208
      %s210 = sphi 0, %s208
      %s211 = sphi 0, %s210
      %s225 = sphi 0, %s211
      %s229 = sphi 0, %s229
      %s231 = sphi 0, %s229
      %s232 = sphi 0, %s231
      %s246 = sphi 0, %s232
      %s250 = sphi 0, %s250
      %s252 = sphi 0, %s250
      %s253 = sphi 0, %s252
      %s267 = sphi 0, %s253
      %s271 = sphi 0, %s271
      %s273 = sphi 0, %s271
      %s274 = sphi 0, %s273
      %s288 = sphi 0, %s274
      %s292 = sphi 0, %s292
      %s294 = sphi 0, %s292
      %s295 = sphi 0, %s294
      %s309 = sphi 0, %s295
      %s313 = sphi 0, %s313
      %s315 = sphi 0, %s313
      %s316 = sphi 0, %s315
      %s330 = sphi 0, %s316
      %s334 = sphi 0, %s334
      %s336 = sphi 0, %s334
      %s337 = sphi 0, %s336
      %s351 = sphi 0, %s337
      %s355 = sphi 0, %s355
      %s357 = sphi 0, %s355
      %s358 = sphi 0, %s357
      %s372 = sphi 0, %s358
      %s376 = sphi 0, %s376
      %s378 = sphi 0, %s376
      %s379 = sphi 0, %s378
      %s393 = sphi 0, %s379
      %s399 = sphi 0, %s401
      %s402 = sphi 0, %s399
      %s403 = sphi 0, %s402
      %s419 = sphi 0, %s403
    $region4: #{vae_forward.1} parent=1 // loop_header_branch
      %30 = sbr.rel (%p28) target = $region8
    $region5: #{vae_forward.1} parent=1 // loop_body
      %s32 = ssub.s32 %s27, 1
      %s33 = ssub.s32 %s27, 2
      %s34 = sadd.s32 %s27, 1
      %s35 = ssub.s32 %s27, %s34
      %p36 = scmp.eq.s32.totalorder %s35, 0
      %s38 = sadd.s32 %s37, 1
      %s39 = scalar_select %p36, %s37, %s38
      %p42 = pneg %p36
      %p43 = scmp.eq.s32.totalorder %s27, 1
      %p44 = por %p42, %p43
      %p45 = scmp.ne.s32.totalorder %s37, %s40
      %p46 = scmp.eq.s32.totalorder %s27, 0
      %p47 = por %p45, %p46
      %p48 = scmp.ne.s32.totalorder %s37, %s40
      %p49 = scmp.eq.s32.totalorder %s32, 1
      %p50 = por %p48, %p49
      %p51 = scmp.ne.s32.totalorder %s40, %s41
      %p52 = scmp.eq.s32.totalorder %s32, 0
      %p53 = por %p51, %p52
      %p54 = scmp.ne.s32.totalorder %s40, %s41
      %p55 = scmp.eq.s32.totalorder %s33, 1
      %p56 = por %p54, %p55
      %p58 = scmp.ne.s32.totalorder %s41, %s57
      %p59 = scmp.eq.s32.totalorder %s33, 0
      %p60 = por %p58, %p59
      %s62 = sadd.s32 %s61, 1
      %p65 = scmp.eq.s32.totalorder %s27, 1
      %p66 = scmp.ne.s32.totalorder %s61, %s63
      %p67 = scmp.eq.s32.totalorder %s27, 0
      %p68 = por %p66, %p67
      %p69 = scmp.ne.s32.totalorder %s61, %s63
      %p70 = scmp.eq.s32.totalorder %s32, 1
      %p71 = por %p69, %p70
      %p72 = scmp.ne.s32.totalorder %s63, %s64
      %p73 = scmp.eq.s32.totalorder %s32, 0
      %p74 = por %p72, %p73
      %p75 = scmp.ne.s32.totalorder %s63, %s64
      %p76 = scmp.eq.s32.totalorder %s33, 1
      %p77 = por %p75, %p76
      %p79 = scmp.ne.s32.totalorder %s64, %s78
      %p80 = scmp.eq.s32.totalorder %s33, 0
      %p81 = por %p79, %p80
      %s83 = sadd.s32 %s82, 1
      %p86 = scmp.eq.s32.totalorder %s27, 1
      %p87 = scmp.ne.s32.totalorder %s82, %s84
      %p88 = scmp.eq.s32.totalorder %s27, 0
      %p89 = por %p87, %p88
      %p90 = scmp.ne.s32.totalorder %s82, %s84
      %p91 = scmp.eq.s32.totalorder %s32, 1
      %p92 = por %p90, %p91
      %p93 = scmp.ne.s32.totalorder %s84, %s85
      %p94 = scmp.eq.s32.totalorder %s32, 0
      %p95 = por %p93, %p94
      %p96 = scmp.ne.s32.totalorder %s84, %s85
      %p97 = scmp.eq.s32.totalorder %s33, 1
      %p98 = por %p96, %p97
      %p100 = scmp.ne.s32.totalorder %s85, %s99
      %p101 = scmp.eq.s32.totalorder %s33, 0
      %p102 = por %p100, %p101
      %s104 = sadd.s32 %s103, 1
      %p107 = scmp.eq.s32.totalorder %s27, 1
      %p108 = scmp.ne.s32.totalorder %s103, %s105
      %p109 = scmp.eq.s32.totalorder %s27, 0
      %p110 = por %p108, %p109
      %p111 = scmp.ne.s32.totalorder %s103, %s105
      %p112 = scmp.eq.s32.totalorder %s32, 1
      %p113 = por %p111, %p112
      %p114 = scmp.ne.s32.totalorder %s105, %s106
      %p115 = scmp.eq.s32.totalorder %s32, 0
      %p116 = por %p114, %p115
      %p117 = scmp.ne.s32.totalorder %s105, %s106
      %p118 = scmp.eq.s32.totalorder %s33, 1
      %p119 = por %p117, %p118
      %p121 = scmp.ne.s32.totalorder %s106, %s120
      %p122 = scmp.eq.s32.totalorder %s33, 0
      %p123 = por %p121, %p122
      %s125 = sadd.s32 %s124, 1
      %p128 = scmp.eq.s32.totalorder %s27, 1
      %p129 = scmp.ne.s32.totalorder %s124, %s126
      %p130 = scmp.eq.s32.totalorder %s27, 0
      %p131 = por %p129, %p130
      %p132 = scmp.ne.s32.totalorder %s124, %s126
      %p133 = scmp.eq.s32.totalorder %s32, 1
      %p134 = por %p132, %p133
      %p135 = scmp.ne.s32.totalorder %s126, %s127
      %p136 = scmp.eq.s32.totalorder %s32, 0
      %p137 = por %p135, %p136
      %p138 = scmp.ne.s32.totalorder %s126, %s127
      %p139 = scmp.eq.s32.totalorder %s33, 1
      %p140 = por %p138, %p139
      %p142 = scmp.ne.s32.totalorder %s127, %s141
      %p143 = scmp.eq.s32.totalorder %s33, 0
      %p144 = por %p142, %p143
      %s146 = sadd.s32 %s145, 1
      %p149 = scmp.eq.s32.totalorder %s27, 1
      %p150 = scmp.ne.s32.totalorder %s145, %s147
      %p151 = scmp.eq.s32.totalorder %s27, 0
      %p152 = por %p150, %p151
      %p153 = scmp.ne.s32.totalorder %s145, %s147
      %p154 = scmp.eq.s32.totalorder %s32, 1
      %p155 = por %p153, %p154
      %p156 = scmp.ne.s32.totalorder %s147, %s148
      %p157 = scmp.eq.s32.totalorder %s32, 0
      %p158 = por %p156, %p157
      %p159 = scmp.ne.s32.totalorder %s147, %s148
      %p160 = scmp.eq.s32.totalorder %s33, 1
      %p161 = por %p159, %p160
      %p163 = scmp.ne.s32.totalorder %s148, %s162
      %p164 = scmp.eq.s32.totalorder %s33, 0
      %p165 = por %p163, %p164
      %s167 = sadd.s32 %s166, 1
      %p170 = scmp.eq.s32.totalorder %s27, 1
      %p171 = scmp.ne.s32.totalorder %s166, %s168
      %p172 = scmp.eq.s32.totalorder %s27, 0
      %p173 = por %p171, %p172
      %p174 = scmp.ne.s32.totalorder %s166, %s168
      %p175 = scmp.eq.s32.totalorder %s32, 1
      %p176 = por %p174, %p175
      %p177 = scmp.ne.s32.totalorder %s168, %s169
      %p178 = scmp.eq.s32.totalorder %s32, 0
      %p179 = por %p177, %p178
      %p180 = scmp.ne.s32.totalorder %s168, %s169
      %p181 = scmp.eq.s32.totalorder %s33, 1
      %p182 = por %p180, %p181
      %p184 = scmp.ne.s32.totalorder %s169, %s183
      %p185 = scmp.eq.s32.totalorder %s33, 0
      %p186 = por %p184, %p185
      %s188 = sadd.s32 %s187, 1
      %p191 = scmp.eq.s32.totalorder %s27, 1
      %p192 = scmp.ne.s32.totalorder %s187, %s189
      %p193 = scmp.eq.s32.totalorder %s27, 0
      %p194 = por %p192, %p193
      %p195 = scmp.ne.s32.totalorder %s187, %s189
      %p196 = scmp.eq.s32.totalorder %s32, 1
      %p197 = por %p195, %p196
      %p198 = scmp.ne.s32.totalorder %s189, %s190
      %p199 = scmp.eq.s32.totalorder %s32, 0
      %p200 = por %p198, %p199
      %p201 = scmp.ne.s32.totalorder %s189, %s190
      %p202 = scmp.eq.s32.totalorder %s33, 1
      %p203 = por %p201, %p202
      %p205 = scmp.ne.s32.totalorder %s190, %s204
      %p206 = scmp.eq.s32.totalorder %s33, 0
      %p207 = por %p205, %p206
      %s209 = sadd.s32 %s208, 1
      %p212 = scmp.eq.s32.totalorder %s27, 1
      %p213 = scmp.ne.s32.totalorder %s208, %s210
      %p214 = scmp.eq.s32.totalorder %s27, 0
      %p215 = por %p213, %p214
      %p216 = scmp.ne.s32.totalorder %s208, %s210
      %p217 = scmp.eq.s32.totalorder %s32, 1
      %p218 = por %p216, %p217
      %p219 = scmp.ne.s32.totalorder %s210, %s211
      %p220 = scmp.eq.s32.totalorder %s32, 0
      %p221 = por %p219, %p220
      %p222 = scmp.ne.s32.totalorder %s210, %s211
      %p223 = scmp.eq.s32.totalorder %s33, 1
      %p224 = por %p222, %p223
      %p226 = scmp.ne.s32.totalorder %s211, %s225
      %p227 = scmp.eq.s32.totalorder %s33, 0
      %p228 = por %p226, %p227
      %s230 = sadd.s32 %s229, 1
      %p233 = scmp.eq.s32.totalorder %s27, 1
      %p234 = scmp.ne.s32.totalorder %s229, %s231
      %p235 = scmp.eq.s32.totalorder %s27, 0
      %p236 = por %p234, %p235
      %p237 = scmp.ne.s32.totalorder %s229, %s231
      %p238 = scmp.eq.s32.totalorder %s32, 1
      %p239 = por %p237, %p238
      %p240 = scmp.ne.s32.totalorder %s231, %s232
      %p241 = scmp.eq.s32.totalorder %s32, 0
      %p242 = por %p240, %p241
      %p243 = scmp.ne.s32.totalorder %s231, %s232
      %p244 = scmp.eq.s32.totalorder %s33, 1
      %p245 = por %p243, %p244
      %p247 = scmp.ne.s32.totalorder %s232, %s246
      %p248 = scmp.eq.s32.totalorder %s33, 0
      %p249 = por %p247, %p248
      %s251 = sadd.s32 %s250, 1
      %p254 = scmp.eq.s32.totalorder %s27, 1
      %p255 = scmp.ne.s32.totalorder %s250, %s252
      %p256 = scmp.eq.s32.totalorder %s27, 0
      %p257 = por %p255, %p256
      %p258 = scmp.ne.s32.totalorder %s250, %s252
      %p259 = scmp.eq.s32.totalorder %s32, 1
      %p260 = por %p258, %p259
      %p261 = scmp.ne.s32.totalorder %s252, %s253
      %p262 = scmp.eq.s32.totalorder %s32, 0
      %p263 = por %p261, %p262
      %p264 = scmp.ne.s32.totalorder %s252, %s253
      %p265 = scmp.eq.s32.totalorder %s33, 1
      %p266 = por %p264, %p265
      %p268 = scmp.ne.s32.totalorder %s253, %s267
      %p269 = scmp.eq.s32.totalorder %s33, 0
      %p270 = por %p268, %p269
      %s272 = sadd.s32 %s271, 1
      %p275 = scmp.eq.s32.totalorder %s27, 1
      %p276 = scmp.ne.s32.totalorder %s271, %s273
      %p277 = scmp.eq.s32.totalorder %s27, 0
      %p278 = por %p276, %p277
      %p279 = scmp.ne.s32.totalorder %s271, %s273
      %p280 = scmp.eq.s32.totalorder %s32, 1
      %p281 = por %p279, %p280
      %p282 = scmp.ne.s32.totalorder %s273, %s274
      %p283 = scmp.eq.s32.totalorder %s32, 0
      %p284 = por %p282, %p283
      %p285 = scmp.ne.s32.totalorder %s273, %s274
      %p286 = scmp.eq.s32.totalorder %s33, 1
      %p287 = por %p285, %p286
      %p289 = scmp.ne.s32.totalorder %s274, %s288
      %p290 = scmp.eq.s32.totalorder %s33, 0
      %p291 = por %p289, %p290
      %s293 = sadd.s32 %s292, 1
      %p296 = scmp.eq.s32.totalorder %s27, 1
      %p297 = scmp.ne.s32.totalorder %s292, %s294
      %p298 = scmp.eq.s32.totalorder %s27, 0
      %p299 = por %p297, %p298
      %p300 = scmp.ne.s32.totalorder %s292, %s294
      %p301 = scmp.eq.s32.totalorder %s32, 1
      %p302 = por %p300, %p301
      %p303 = scmp.ne.s32.totalorder %s294, %s295
      %p304 = scmp.eq.s32.totalorder %s32, 0
      %p305 = por %p303, %p304
      %p306 = scmp.ne.s32.totalorder %s294, %s295
      %p307 = scmp.eq.s32.totalorder %s33, 1
      %p308 = por %p306, %p307
      %p310 = scmp.ne.s32.totalorder %s295, %s309
      %p311 = scmp.eq.s32.totalorder %s33, 0
      %p312 = por %p310, %p311
      %s314 = sadd.s32 %s313, 1
      %p317 = scmp.eq.s32.totalorder %s27, 1
      %p318 = scmp.ne.s32.totalorder %s313, %s315
      %p319 = scmp.eq.s32.totalorder %s27, 0
      %p320 = por %p318, %p319
      %p321 = scmp.ne.s32.totalorder %s313, %s315
      %p322 = scmp.eq.s32.totalorder %s32, 1
      %p323 = por %p321, %p322
      %p324 = scmp.ne.s32.totalorder %s315, %s316
      %p325 = scmp.eq.s32.totalorder %s32, 0
      %p326 = por %p324, %p325
      %p327 = scmp.ne.s32.totalorder %s315, %s316
      %p328 = scmp.eq.s32.totalorder %s33, 1
      %p329 = por %p327, %p328
      %p331 = scmp.ne.s32.totalorder %s316, %s330
      %p332 = scmp.eq.s32.totalorder %s33, 0
      %p333 = por %p331, %p332
      %s335 = sadd.s32 %s334, 1
      %p338 = scmp.eq.s32.totalorder %s27, 1
      %p339 = scmp.ne.s32.totalorder %s334, %s336
      %p340 = scmp.eq.s32.totalorder %s27, 0
      %p341 = por %p339, %p340
      %p342 = scmp.ne.s32.totalorder %s334, %s336
      %p343 = scmp.eq.s32.totalorder %s32, 1
      %p344 = por %p342, %p343
      %p345 = scmp.ne.s32.totalorder %s336, %s337
      %p346 = scmp.eq.s32.totalorder %s32, 0
      %p347 = por %p345, %p346
      %p348 = scmp.ne.s32.totalorder %s336, %s337
      %p349 = scmp.eq.s32.totalorder %s33, 1
      %p350 = por %p348, %p349
      %p352 = scmp.ne.s32.totalorder %s337, %s351
      %p353 = scmp.eq.s32.totalorder %s33, 0
      %p354 = por %p352, %p353
      %s356 = sadd.s32 %s355, 1
      %p359 = scmp.eq.s32.totalorder %s27, 1
      %p360 = scmp.ne.s32.totalorder %s355, %s357
      %p361 = scmp.eq.s32.totalorder %s27, 0
      %p362 = por %p360, %p361
      %p363 = scmp.ne.s32.totalorder %s355, %s357
      %p364 = scmp.eq.s32.totalorder %s32, 1
      %p365 = por %p363, %p364
      %p366 = scmp.ne.s32.totalorder %s357, %s358
      %p367 = scmp.eq.s32.totalorder %s32, 0
      %p368 = por %p366, %p367
      %p369 = scmp.ne.s32.totalorder %s357, %s358
      %p370 = scmp.eq.s32.totalorder %s33, 1
      %p371 = por %p369, %p370
      %p373 = scmp.ne.s32.totalorder %s358, %s372
      %p374 = scmp.eq.s32.totalorder %s33, 0
      %p375 = por %p373, %p374
      %s377 = sadd.s32 %s376, 1
      %p380 = scmp.eq.s32.totalorder %s27, 1
      %p381 = scmp.ne.s32.totalorder %s376, %s378
      %p382 = scmp.eq.s32.totalorder %s27, 0
      %p383 = por %p381, %p382
      %p384 = scmp.ne.s32.totalorder %s376, %s378
      %p385 = scmp.eq.s32.totalorder %s32, 1
      %p386 = por %p384, %p385
      %p387 = scmp.ne.s32.totalorder %s378, %s379
      %p388 = scmp.eq.s32.totalorder %s32, 0
      %p389 = por %p387, %p388
      %p390 = scmp.ne.s32.totalorder %s378, %s379
      %p391 = scmp.eq.s32.totalorder %s33, 1
      %p392 = por %p390, %p391
      %p394 = scmp.ne.s32.totalorder %s379, %s393
      %p395 = scmp.eq.s32.totalorder %s33, 0
      %p396 = por %p394, %p395
      %s397 = ssub.s32 %s27, %s34
      %p398 = scmp.eq.s32.totalorder %s397, 0
      %s400 = sadd.s32 %s399, 1
      %s401 = scalar_select %p398, %s399, %s400
      %p404 = pneg %p398
      %p405 = scmp.eq.s32.totalorder %s27, 1
      %p406 = por %p404, %p405
      %p407 = scmp.ne.s32.totalorder %s399, %s402
      %p408 = scmp.eq.s32.totalorder %s27, 0
      %p409 = por %p407, %p408
      %p410 = scmp.ne.s32.totalorder %s399, %s402
      %p411 = scmp.eq.s32.totalorder %s32, 1
      %p412 = por %p410, %p411
      %p413 = scmp.ne.s32.totalorder %s402, %s403
      %p414 = scmp.eq.s32.totalorder %s32, 0
      %p415 = por %p413, %p414
      %p416 = scmp.ne.s32.totalorder %s402, %s403
      %p417 = scmp.eq.s32.totalorder %s33, 1
      %p418 = por %p416, %p417
      %p420 = scmp.ne.s32.totalorder %s403, %s419
      %p421 = scmp.eq.s32.totalorder %s33, 0
      %p422 = por %p420, %p421
      %p423 = scmp.le.s32.totalorder 1, %s27
      %p424 = scmp.lt.s32.totalorder %s27, 3
      %p425 = pnand %p423, %p424
      %p426 = pneg %p425
      // Predicated region
      $region9: #{vae_forward.1} parent=5 // pred_check
        _
      $region10: #{vae_forward.1} parent=5 // pred_check_branch
        %428 = sbr.rel (%p425) target = $region12
      $region11: #{vae_forward.1} parent=5 // pred_region
        %s429 = ssub.s32 %s27, 1
        // Predicated region
        $region13: #{vae_forward.1} parent=11 // pred_check
          %p430 = pneg %p74
        $region14: #{vae_forward.1} parent=11 // pred_check_branch
          %432 = sbr.rel (%p430) target = $region16
        $region15: #{vae_forward.1} parent=11 // pred_region
          %s434 = ssub.s32 3072, 3072
          %435 = vsyncadd [#allocation3], %s434
          %s436 = sshll.u32 [#allocation2], 4
          %s437 = int_to_ptr.vmem [resolvable:$true] %s436
          %442 = dma.hbm_to_vmem [thread:$0]  %s1, 3072, %s437, [#allocation3], 768, 768, 48
        $region16: #{vae_forward.1} parent=11 // pred_fallthru
          _
        // Predicated region
        $region17: #{vae_forward.1} parent=11 // pred_check
          %p443 = pneg %p95
        $region18: #{vae_forward.1} parent=11 // pred_check_branch
          %445 = sbr.rel (%p443) target = $region20
        $region19: #{vae_forward.1} parent=11 // pred_region
          _
        $region20: #{vae_forward.1} parent=11 // pred_fallthru
          _
        // Predicated region
        $region21: #{vae_forward.1} parent=11 // pred_check
          %p446 = pneg %p116
        $region22: #{vae_forward.1} parent=11 // pred_check_branch
          %448 = sbr.rel (%p446) target = $region24
        $region23: #{vae_forward.1} parent=11 // pred_region
          %s450 = ssub.s32 20480, 20480
          %451 = vsyncadd [#allocation5], %s450
          %s452 = sshll.u32 [#allocation4], 4
          %s453 = int_to_ptr.vmem [resolvable:$true] %s452
          %458 = dma.hbm_to_vmem [thread:$0]  %s3, 20480, %s453, [#allocation5], 256, 256, 16
        $region24: #{vae_forward.1} parent=11 // pred_fallthru
          _
        // Predicated region
        $region25: #{vae_forward.1} parent=11 // pred_check
          %p459 = pneg %p137
        $region26: #{vae_forward.1} parent=11 // pred_check_branch
          %461 = sbr.rel (%p459) target = $region28
        $region27: #{vae_forward.1} parent=11 // pred_region
          _
        $region28: #{vae_forward.1} parent=11 // pred_fallthru
          _
        // Predicated region
        $region29: #{vae_forward.1} parent=11 // pred_check
          %p462 = pneg %p158
        $region30: #{vae_forward.1} parent=11 // pred_check_branch
          %464 = sbr.rel (%p462) target = $region32
        $region31: #{vae_forward.1} parent=11 // pred_region
          %s466 = ssub.s32 4096, 4096
          %467 = vsyncadd [#allocation5], %s466
          %s468 = sshll.u32 [#allocation6], 4
          %s469 = int_to_ptr.vmem [resolvable:$true] %s468
          %474 = dma.hbm_to_vmem [thread:$0]  %s5, 4096, %s469, [#allocation5], 128, 128, 8
        $region32: #{vae_forward.1} parent=11 // pred_fallthru
          _
        // Predicated region
        $region33: #{vae_forward.1} parent=11 // pred_check
          %p475 = pneg %p179
        $region34: #{vae_forward.1} parent=11 // pred_check_branch
          %477 = sbr.rel (%p475) target = $region36
        $region35: #{vae_forward.1} parent=11 // pred_region
          _
        $region36: #{vae_forward.1} parent=11 // pred_fallthru
          _
        // Predicated region
        $region37: #{vae_forward.1} parent=11 // pred_check
          %p478 = pneg %p200
        $region38: #{vae_forward.1} parent=11 // pred_check_branch
          %480 = sbr.rel (%p478) target = $region40
        $region39: #{vae_forward.1} parent=11 // pred_region
          %s482 = ssub.s32 2048, 2048
          %483 = vsyncadd [#allocation8], %s482
          %s484 = sshll.u32 [#allocation7], 4
          %s485 = int_to_ptr.vmem [resolvable:$true] %s484
          %490 = dma.hbm_to_vmem [thread:$0]  %s7, 2048, %s485, [#allocation8], 128, 128, 8
        $region40: #{vae_forward.1} parent=11 // pred_fallthru
          _
        // Predicated region
        $region41: #{vae_forward.1} parent=11 // pred_check
          %p491 = pneg %p221
        $region42: #{vae_forward.1} parent=11 // pred_check_branch
          %493 = sbr.rel (%p491) target = $region44
        $region43: #{vae_forward.1} parent=11 // pred_region
          _
        $region44: #{vae_forward.1} parent=11 // pred_fallthru
          _
        // Predicated region
        $region45: #{vae_forward.1} parent=11 // pred_check
          %p494 = pneg %p242
        $region46: #{vae_forward.1} parent=11 // pred_check_branch
          %496 = sbr.rel (%p494) target = $region48
        $region47: #{vae_forward.1} parent=11 // pred_region
          %s498 = ssub.s32 2048, 2048
          %499 = vsyncadd [#allocation8], %s498
          %s500 = sshll.u32 [#allocation9], 4
          %s501 = int_to_ptr.vmem [resolvable:$true] %s500
          %506 = dma.hbm_to_vmem [thread:$0]  %s9, 2048, %s501, [#allocation8], 128, 128, 8
        $region48: #{vae_forward.1} parent=11 // pred_fallthru
          _
        // Predicated region
        $region49: #{vae_forward.1} parent=11 // pred_check
          %p507 = pneg %p263
        $region50: #{vae_forward.1} parent=11 // pred_check_branch
          %509 = sbr.rel (%p507) target = $region52
        $region51: #{vae_forward.1} parent=11 // pred_region
          _
        $region52: #{vae_forward.1} parent=11 // pred_fallthru
          _
        // Predicated region
        $region53: #{vae_forward.1} parent=11 // pred_check
          %p510 = pneg %p284
        $region54: #{vae_forward.1} parent=11 // pred_check_branch
          %512 = sbr.rel (%p510) target = $region56
        $region55: #{vae_forward.1} parent=11 // pred_region
          %s514 = ssub.s32 4096, 4096
          %515 = vsyncadd [#allocation11], %s514
          %s516 = sshll.u32 [#allocation10], 4
          %s517 = int_to_ptr.vmem [resolvable:$true] %s516
          %522 = dma.hbm_to_vmem [thread:$0]  %s11, 4096, %s517, [#allocation11], 256, 256, 16
        $region56: #{vae_forward.1} parent=11 // pred_fallthru
          _
        // Predicated region
        $region57: #{vae_forward.1} parent=11 // pred_check
          %p523 = pneg %p305
        $region58: #{vae_forward.1} parent=11 // pred_check_branch
          %525 = sbr.rel (%p523) target = $region60
        $region59: #{vae_forward.1} parent=11 // pred_region
          _
        $region60: #{vae_forward.1} parent=11 // pred_fallthru
          _
        // Predicated region
        $region61: #{vae_forward.1} parent=11 // pred_check
          %p526 = pneg %p326
        $region62: #{vae_forward.1} parent=11 // pred_check_branch
          %528 = sbr.rel (%p526) target = $region64
        $region63: #{vae_forward.1} parent=11 // pred_region
          %s530 = ssub.s32 20480, 20480
          %531 = vsyncadd [#allocation11], %s530
          %s532 = sshll.u32 [#allocation12], 4
          %s533 = int_to_ptr.vmem [resolvable:$true] %s532
          %538 = dma.hbm_to_vmem [thread:$0]  %s13, 20480, %s533, [#allocation11], 640, 640, 40
        $region64: #{vae_forward.1} parent=11 // pred_fallthru
          _
        // Predicated region
        $region65: #{vae_forward.1} parent=11 // pred_check
          %p539 = pneg %p347
        $region66: #{vae_forward.1} parent=11 // pred_check_branch
          %541 = sbr.rel (%p539) target = $region68
        $region67: #{vae_forward.1} parent=11 // pred_region
          _
        $region68: #{vae_forward.1} parent=11 // pred_fallthru
          _
        // Predicated region
        $region69: #{vae_forward.1} parent=11 // pred_check
          %p542 = pneg %p368
        $region70: #{vae_forward.1} parent=11 // pred_check_branch
          %544 = sbr.rel (%p542) target = $region72
        $region71: #{vae_forward.1} parent=11 // pred_region
          _
        $region72: #{vae_forward.1} parent=11 // pred_fallthru
          _
        // Predicated region
        $region73: #{vae_forward.1} parent=11 // pred_check
          %p545 = pneg %p389
        $region74: #{vae_forward.1} parent=11 // pred_check_branch
          %547 = sbr.rel (%p545) target = $region76
        $region75: #{vae_forward.1} parent=11 // pred_region
          _
        $region76: #{vae_forward.1} parent=11 // pred_fallthru
          _
      $region12: #{vae_forward.1} parent=5 // pred_fallthru
        _
      %p548 = scmp.lt.s32.totalorder %s27, 2
      // Predicated region
      $region77: #{vae_forward.1} parent=5 // pred_check
        %p549 = pneg %p548
      $region78: #{vae_forward.1} parent=5 // pred_check_branch
        %551 = sbr.rel (%p549) target = $region80
      $region79: #{vae_forward.1} parent=5 // pred_region
        // Predicated region
        $region81: #{vae_forward.1} parent=79 // pred_check
          %p552 = pneg %p47
        $region82: #{vae_forward.1} parent=79 // pred_check_branch
          %554 = sbr.rel (%p552) target = $region84
        $region83: #{vae_forward.1} parent=79 // pred_region
          %s555 = smul.u32 32, %s27
          %p556 = scmp.lt.s32.totalorder %s555, 63
          %s557 = scalar_select %p556, %s555, 63
          %s558 = smul.addr %s557, 8
          %s559 = scalar_lea.vmem %s0, %s558
          %s560 = smul.u32 32, %s27
        $region84: #{vae_forward.1} parent=79 // pred_fallthru
          _
      $region80: #{vae_forward.1} parent=5 // pred_fallthru
        _
      %p561 = scmp.le.s32.totalorder 1, %s27
      %p562 = scmp.lt.s32.totalorder %s27, 3
      %p563 = pnand %p561, %p562
      %p564 = pneg %p563
      // Predicated region
      $region85: #{vae_forward.1} parent=5 // pred_check
        _
      $region86: #{vae_forward.1} parent=5 // pred_check_branch
        %566 = sbr.rel (%p563) target = $region88
      $region87: #{vae_forward.1} parent=5 // pred_region
        %s567 = ssub.s32 %s27, 1
        // Predicated region
        $region89: #{vae_forward.1} parent=87 // pred_check
          %p568 = pneg %p74
        $region90: #{vae_forward.1} parent=87 // pred_check_branch
          %570 = sbr.rel (%p568) target = $region92
        $region91: #{vae_forward.1} parent=87 // pred_region
          %571 = dma.done [#allocation3], 3072
        $region92: #{vae_forward.1} parent=87 // pred_fallthru
          _
        // Predicated region
        $region93: #{vae_forward.1} parent=87 // pred_check
          %p572 = pneg %p116
        $region94: #{vae_forward.1} parent=87 // pred_check_branch
          %574 = sbr.rel (%p572) target = $region96
        $region95: #{vae_forward.1} parent=87 // pred_region
          %575 = dma.done [#allocation5], 20480
        $region96: #{vae_forward.1} parent=87 // pred_fallthru
          _
        // Predicated region
        $region97: #{vae_forward.1} parent=87 // pred_check
          %p576 = pneg %p158
        $region98: #{vae_forward.1} parent=87 // pred_check_branch
          %578 = sbr.rel (%p576) target = $region100
        $region99: #{vae_forward.1} parent=87 // pred_region
          %579 = dma.done [#allocation5], 4096
        $region100: #{vae_forward.1} parent=87 // pred_fallthru
          _
        // Predicated region
        $region101: #{vae_forward.1} parent=87 // pred_check
          %p580 = pneg %p200
        $region102: #{vae_forward.1} parent=87 // pred_check_branch
          %582 = sbr.rel (%p580) target = $region104
        $region103: #{vae_forward.1} parent=87 // pred_region
          %583 = dma.done [#allocation8], 2048
        $region104: #{vae_forward.1} parent=87 // pred_fallthru
          _
        // Predicated region
        $region105: #{vae_forward.1} parent=87 // pred_check
          %p584 = pneg %p242
        $region106: #{vae_forward.1} parent=87 // pred_check_branch
          %586 = sbr.rel (%p584) target = $region108
        $region107: #{vae_forward.1} parent=87 // pred_region
          %587 = dma.done [#allocation8], 2048
        $region108: #{vae_forward.1} parent=87 // pred_fallthru
          _
        // Predicated region
        $region109: #{vae_forward.1} parent=87 // pred_check
          %p588 = pneg %p284
        $region110: #{vae_forward.1} parent=87 // pred_check_branch
          %590 = sbr.rel (%p588) target = $region112
        $region111: #{vae_forward.1} parent=87 // pred_region
          %591 = dma.done [#allocation11], 4096
        $region112: #{vae_forward.1} parent=87 // pred_fallthru
          _
        // Predicated region
        $region113: #{vae_forward.1} parent=87 // pred_check
          %p592 = pneg %p326
        $region114: #{vae_forward.1} parent=87 // pred_check_branch
          %594 = sbr.rel (%p592) target = $region116
        $region115: #{vae_forward.1} parent=87 // pred_region
          %595 = dma.done [#allocation11], 20480
        $region116: #{vae_forward.1} parent=87 // pred_fallthru
          _
        %s596 = smul.u32 32, %s32
        %p597 = scmp.lt.s32.totalorder %s596, 63
        %s598 = scalar_select %p597, %s596, 63
        %s599 = smul.addr %s598, 8
        %s600 = scalar_lea.vmem %s0, %s599
        %p601 = pneg %p53
        %p602 = pneg %p50
        %p603 = pneg %p74
        %p604 = pneg %p71
        %p605 = pneg %p95
        %p606 = pneg %p92
        %p607 = pneg %p116
        %p608 = pneg %p113
        %p609 = pneg %p137
        %p610 = pneg %p134
        %p611 = pneg %p158
        %p612 = pneg %p155
        %p613 = pneg %p179
        %p614 = pneg %p176
        %p615 = pneg %p200
        %p616 = pneg %p197
        %p617 = pneg %p221
        %p618 = pneg %p218
        %p619 = pneg %p242
        %p620 = pneg %p239
        %p621 = pneg %p263
        %p622 = pneg %p260
        %p623 = pneg %p284
        %p624 = pneg %p281
        %p625 = pneg %p305
        %p626 = pneg %p302
        %p627 = pneg %p326
        %p628 = pneg %p323
        %p629 = pneg %p347
        %p630 = pneg %p344
        %p631 = pneg %p368
        %p632 = pneg %p365
        %p633 = pneg %p389
        %p634 = pneg %p386
        %p635 = pneg %p415
        %p636 = pneg %p412
        %s637 = smul.u32 32, %s32
        %p638 = scmp.lt.s32.totalorder %s637, 63
        %s639 = scalar_select %p638, %s637, 63
        %s640 = smul.addr %s639, 8
        %s641 = scalar_lea.vmem %s17, %s640
        %s642 = smul.u32 32, %s32
        %p643 = scmp.lt.s32.totalorder %s642, 63
        %s644 = scalar_select %p643, %s642, 63
        %s645 = smul.addr %s644, 8
        %s646 = scalar_lea.vmem %s0, %s645
        %s647 = smul.u32 32, %s32
        %s648 = smul.u32 32, %s32
        %p649 = scmp.lt.s32.totalorder %s648, 63
        %s650 = scalar_select %p649, %s648, 63
        %s651 = smul.addr %s650, 8
        %s652 = scalar_lea.vmem %s17, %s651
        %s653 = smul.u32 32, %s32
        %v654 = vld [vmem:[%s646] sm:$0xff]
        %v655 = vld [vmem:[%s646 + $0x8] sm:$0xff]
        %v656 = vld [vmem:[%s646 + $0x10] sm:$0xff]
        %v657 = vld [vmem:[%s646 + $0x18] sm:$0xff]
        %v658 = vld [vmem:[%s646 + $0x20] sm:$0xff]
        %v659 = vld [vmem:[%s646 + $0x28] sm:$0xff]
        %v660 = vld [vmem:[%s646 + $0x30] sm:$0xff]
        %v661 = vld [vmem:[%s646 + $0x38] sm:$0xff]
        %v662 = vld [vmem:[%s646 + $0x40] sm:$0xff]
        %v663 = vld [vmem:[%s646 + $0x48] sm:$0xff]
        %v664 = vld [vmem:[%s646 + $0x50] sm:$0xff]
        %v665 = vld [vmem:[%s646 + $0x58] sm:$0xff]
        %v666 = vld [vmem:[%s646 + $0x60] sm:$0xff]
        %v667 = vld [vmem:[%s646 + $0x68] sm:$0xff]
        %v668 = vld [vmem:[%s646 + $0x70] sm:$0xff]
        %v669 = vld [vmem:[%s646 + $0x78] sm:$0xff]
        %v670 = vld [vmem:[%s646 + $0x80] sm:$0xff]
        %v671 = vld [vmem:[%s646 + $0x88] sm:$0xff]
        %v672 = vld [vmem:[%s646 + $0x90] sm:$0xff]
        %v673 = vld [vmem:[%s646 + $0x98] sm:$0xff]
        %v674 = vld [vmem:[%s646 + $0xa0] sm:$0xff]
        %v675 = vld [vmem:[%s646 + $0xa8] sm:$0xff]
        %v676 = vld [vmem:[%s646 + $0xb0] sm:$0xff]
        %v677 = vld [vmem:[%s646 + $0xb8] sm:$0xff]
        %v678 = vld [vmem:[%s646 + $0xc0] sm:$0xff]
        %v679 = vld [vmem:[%s646 + $0xc8] sm:$0xff]
        %v680 = vld [vmem:[%s646 + $0xd0] sm:$0xff]
        %v681 = vld [vmem:[%s646 + $0xd8] sm:$0xff]
        %v682 = vld [vmem:[%s646 + $0xe0] sm:$0xff]
        %v683 = vld [vmem:[%s646 + $0xe8] sm:$0xff]
        %v684 = vld [vmem:[%s646 + $0xf0] sm:$0xff]
        %v685 = vld [vmem:[%s646 + $0xf8] sm:$0xff]
        %v686 = vld [vmem:[#allocation2] sm:$0xff]
        %v687 = vld [vmem:[#allocation2 + $0x8] sm:$0xff]
        %v688 = vld [vmem:[#allocation2 + $0x10] sm:$0xff]
        %v689 = vld [vmem:[#allocation2 + $0x18] sm:$0xff]
        %v690 = vld [vmem:[#allocation2 + $0x20] sm:$0xff]
        %v691 = vld [vmem:[#allocation2 + $0x28] sm:$0xff]
        %v692 = vld [vmem:[#allocation2 + $0x30] sm:$0xff]
        %v693 = vld [vmem:[#allocation2 + $0x38] sm:$0xff]
        %v694 = vld [vmem:[#allocation2 + $0x40] sm:$0xff]
        %v695 = vld [vmem:[#allocation2 + $0x48] sm:$0xff]
        %v696 = vld [vmem:[#allocation2 + $0x50] sm:$0xff]
        %v697 = vld [vmem:[#allocation2 + $0x58] sm:$0xff]
        %v698 = vld [vmem:[#allocation2 + $0x60] sm:$0xff]
        %v699 = vld [vmem:[#allocation2 + $0x68] sm:$0xff]
        %v700 = vld [vmem:[#allocation2 + $0x70] sm:$0xff]
        %v701 = vld [vmem:[#allocation2 + $0x78] sm:$0xff]
        %v702 = vld [vmem:[#allocation2 + $0x80] sm:$0xff]
        %v703 = vld [vmem:[#allocation2 + $0x88] sm:$0xff]
        %v704 = vld [vmem:[#allocation2 + $0x90] sm:$0xff]
        %v705 = vld [vmem:[#allocation2 + $0x98] sm:$0xff]
        %v706 = vld [vmem:[#allocation2 + $0xa0] sm:$0xff]
        %v707 = vld [vmem:[#allocation2 + $0xa8] sm:$0xff]
        %v708 = vld [vmem:[#allocation2 + $0xb0] sm:$0xff]
        %v709 = vld [vmem:[#allocation2 + $0xb8] sm:$0xff]
        %v710 = vld [vmem:[%s2] sm:$0x3f]
        %v712 = vlaneseq
        %v713 = vshrl.u32 %v712, 7
        %v714 = vsub.s32 0, %v713
        %v715 = vrot.slane %v710, %v714
        %v716 = vlaneseq
        %v717 = vshrl.u32 %v716, 7
        %v718 = vsub.s32 1, %v717
        %v719 = vrot.slane %v710, %v718
        %v720 = vlaneseq
        %v721 = vshrl.u32 %v720, 7
        %v722 = vsub.s32 2, %v721
        %v723 = vrot.slane %v710, %v722
        %v724 = vlaneseq
        %v725 = vshrl.u32 %v724, 7
        %v726 = vsub.s32 3, %v725
        %v727 = vrot.slane %v710, %v726
        %v728 = vlaneseq
        %v729 = vshrl.u32 %v728, 7
        %v730 = vsub.s32 4, %v729
        %v731 = vrot.slane %v710, %v730
        %v732 = vlaneseq
        %v733 = vshrl.u32 %v732, 7
        %v734 = vsub.s32 5, %v733
        %v735 = vrot.slane %v710, %v734
        %vm742 = vcmask 261120
        %v744 = vsel %vm742, %v654, 0
        %v747 = vsel %vm742, %v655, 0
        %v750 = vsel %vm742, %v656, 0
        %v753 = vsel %vm742, %v657, 0
        %v756 = vsel %vm742, %v658, 0
        %v759 = vsel %vm742, %v659, 0
        %v762 = vsel %vm742, %v660, 0
        %v765 = vsel %vm742, %v661, 0
        %v768 = vsel %vm742, %v662, 0
        %v771 = vsel %vm742, %v663, 0
        %v774 = vsel %vm742, %v664, 0
        %v777 = vsel %vm742, %v665, 0
        %v780 = vsel %vm742, %v666, 0
        %v783 = vsel %vm742, %v667, 0
        %v786 = vsel %vm742, %v668, 0
        %v789 = vsel %vm742, %v669, 0
        %v792 = vsel %vm742, %v670, 0
        %v795 = vsel %vm742, %v671, 0
        %v798 = vsel %vm742, %v672, 0
        %v801 = vsel %vm742, %v673, 0
        %v804 = vsel %vm742, %v674, 0
        %v807 = vsel %vm742, %v675, 0
        %v810 = vsel %vm742, %v676, 0
        %v813 = vsel %vm742, %v677, 0
        %v816 = vsel %vm742, %v678, 0
        %v819 = vsel %vm742, %v679, 0
        %v822 = vsel %vm742, %v680, 0
        %v825 = vsel %vm742, %v681, 0
        %v828 = vsel %vm742, %v682, 0
        %v831 = vsel %vm742, %v683, 0
        %v834 = vsel %vm742, %v684, 0
        %v837 = vsel %vm742, %v685, 0
        %839 = vmatprep.subr.mxu0 0.0
        %840 = vmatpush1.msra.mxu0 0.0
        %841 = vmatprep.subr.mxu0 0.0
        %842 = vmatpush1.msra.mxu0 0.0
        %843 = vmatprep.subr.mxu0 0.0
        %844 = vmatpush1.msra.mxu0 0.0
        %845 = vmatprep.subr.mxu0 0.0
        %846 = vmatpush1.msra.mxu0 0.0
        %847 = vmatprep.subr.mxu0 0.0
        %848 = vmatpush1.msra.mxu0 0.0
        %849 = vmatprep.subr.mxu0 0.0
        %850 = vmatpush1.msra.mxu0 0.0
        %851 = vmatprep.subr.mxu0 0.0
        %852 = vmatpush1.msra.mxu0 0.0
        %853 = vmatprep.subr.mxu0 0.0
        %854 = vmatpush1.msra.mxu0 0.0
        %855 = vmatprep.subr.mxu0 0.0
        %856 = vmatpush1.msra.mxu0 0.0
        %857 = vmatprep.subr.mxu0 0.0
        %858 = vmatpush1.msra.mxu0 0.0
        %859 = vmatprep.subr.mxu0 0.0
        %860 = vmatpush1.msra.mxu0 0.0
        %861 = vmatprep.subr.mxu0 0.0
        %862 = vmatpush1.msra.mxu0 0.0
        %863 = vmatprep.subr.mxu0 %v705
        %864 = vmatpush1.msra.mxu0 %v704
        %865 = vmatprep.subr.mxu0 %v699
        %866 = vmatpush1.msra.mxu0 %v698
        %867 = vmatprep.subr.mxu0 %v693
        %868 = vmatpush1.msra.mxu0 %v692
        %869 = vmatprep.subr.mxu0 %v687
        %870 = vmatpush1.msra.mxu0 %v686
        %871 = vmatprep.subr.mxu0 0.0
        %872 = vmatpush2.msra.mxu0 0.0
        %873 = vmatprep.subr.mxu0 0.0
        %874 = vmatpush2.msra.mxu0 0.0
        %875 = vmatprep.subr.mxu0 0.0
        %876 = vmatpush2.msra.mxu0 0.0
        %877 = vmatprep.subr.mxu0 0.0
        %878 = vmatpush2.msra.mxu0 0.0
        %879 = vmatprep.subr.mxu0 0.0
        %880 = vmatpush2.msra.mxu0 0.0
        %881 = vmatprep.subr.mxu0 0.0
        %882 = vmatpush2.msra.mxu0 0.0
        %883 = vmatprep.subr.mxu0 0.0
        %884 = vmatpush2.msra.mxu0 0.0
        %885 = vmatprep.subr.mxu0 0.0
        %886 = vmatpush2.msra.mxu0 0.0
        %887 = vmatprep.subr.mxu0 0.0
        %888 = vmatpush2.msra.mxu0 0.0
        %889 = vmatprep.subr.mxu0 0.0
        %890 = vmatpush2.msra.mxu0 0.0
        %891 = vmatprep.subr.mxu0 0.0
        %892 = vmatpush2.msra.mxu0 0.0
        %893 = vmatprep.subr.mxu0 0.0
        %894 = vmatpush2.msra.mxu0 0.0
        %895 = vmatprep.subr.mxu0 0.0
        %896 = vmatpush2.msra.mxu0 0.0
        %897 = vmatprep.subr.mxu0 0.0
        %898 = vmatpush2.msra.mxu0 0.0
        %899 = vmatprep.subr.mxu0 0.0
        %900 = vmatpush2.msra.mxu0 0.0
        %901 = vmatprep.subr.mxu0 0.0
        %902 = vmatpush2.msra.mxu0 0.0
        %903 = vmatprep.mubr.f32.mxu0 0.0
        %904 = vmatmul.mubr.f32.gmra.mxu0 %v744
        %v905 = vpop.f32.mrf.mxu0
        %v906 = vadd.f32 %v715, %v905
        %v907 = vpop.f32.mrf.mxu0
        %v908 = vadd.f32 %v719, %v907
        %909 = vmatprep.mubr.f32.mxu0 0.0
        %910 = vmatmul.mubr.f32.gmra.mxu0 %v747
        %v911 = vpop.f32.mrf.mxu0
        %v912 = vadd.f32 %v715, %v911
        %v913 = vpop.f32.mrf.mxu0
        %v914 = vadd.f32 %v719, %v913
        %915 = vmatprep.mubr.f32.mxu0 0.0
        %916 = vmatmul.mubr.f32.gmra.mxu0 %v750
        %v917 = vpop.f32.mrf.mxu0
        %v918 = vadd.f32 %v715, %v917
        %v919 = vpop.f32.mrf.mxu0
        %v920 = vadd.f32 %v719, %v919
        %921 = vmatprep.mubr.f32.mxu0 0.0
        %922 = vmatmul.mubr.f32.gmra.mxu0 %v753
        %v923 = vpop.f32.mrf.mxu0
        %v924 = vadd.f32 %v715, %v923
        %v925 = vpop.f32.mrf.mxu0
        %v926 = vadd.f32 %v719, %v925
        %927 = vmatprep.mubr.f32.mxu0 0.0
        %928 = vmatmul.mubr.f32.gmra.mxu0 %v756
        %v929 = vpop.f32.mrf.mxu0
        %v930 = vadd.f32 %v715, %v929
        %v931 = vpop.f32.mrf.mxu0
        %v932 = vadd.f32 %v719, %v931
        %933 = vmatprep.mubr.f32.mxu0 0.0
        %934 = vmatmul.mubr.f32.gmra.mxu0 %v759
        %v935 = vpop.f32.mrf.mxu0
        %v936 = vadd.f32 %v715, %v935
        %v937 = vpop.f32.mrf.mxu0
        %v938 = vadd.f32 %v719, %v937
        %939 = vmatprep.mubr.f32.mxu0 0.0
        %940 = vmatmul.mubr.f32.gmra.mxu0 %v762
        %v941 = vpop.f32.mrf.mxu0
        %v942 = vadd.f32 %v715, %v941
        %v943 = vpop.f32.mrf.mxu0
        %v944 = vadd.f32 %v719, %v943
        %945 = vmatprep.mubr.f32.mxu0 0.0
        %946 = vmatmul.mubr.f32.gmra.mxu0 %v765
        %v947 = vpop.f32.mrf.mxu0
        %v948 = vadd.f32 %v715, %v947
        %v949 = vpop.f32.mrf.mxu0
        %v950 = vadd.f32 %v719, %v949
        %951 = vmatprep.mubr.f32.mxu0 0.0
        %952 = vmatmul.mubr.f32.gmra.mxu0 %v768
        %v953 = vpop.f32.mrf.mxu0
        %v954 = vadd.f32 %v715, %v953
        %v955 = vpop.f32.mrf.mxu0
        %v956 = vadd.f32 %v719, %v955
        %957 = vmatprep.mubr.f32.mxu0 0.0
        %958 = vmatmul.mubr.f32.gmra.mxu0 %v771
        %v959 = vpop.f32.mrf.mxu0
        %v960 = vadd.f32 %v715, %v959
        %v961 = vpop.f32.mrf.mxu0
        %v962 = vadd.f32 %v719, %v961
        %963 = vmatprep.mubr.f32.mxu0 0.0
        %964 = vmatmul.mubr.f32.gmra.mxu0 %v774
        %v965 = vpop.f32.mrf.mxu0
        %v966 = vadd.f32 %v715, %v965
        %v967 = vpop.f32.mrf.mxu0
        %v968 = vadd.f32 %v719, %v967
        %969 = vmatprep.mubr.f32.mxu0 0.0
        %970 = vmatmul.mubr.f32.gmra.mxu0 %v777
        %v971 = vpop.f32.mrf.mxu0
        %v972 = vadd.f32 %v715, %v971
        %v973 = vpop.f32.mrf.mxu0
        %v974 = vadd.f32 %v719, %v973
        %975 = vmatprep.mubr.f32.mxu0 0.0
        %976 = vmatmul.mubr.f32.gmra.mxu0 %v780
        %v977 = vpop.f32.mrf.mxu0
        %v978 = vadd.f32 %v715, %v977
        %v979 = vpop.f32.mrf.mxu0
        %v980 = vadd.f32 %v719, %v979
        %981 = vmatprep.mubr.f32.mxu0 0.0
        %982 = vmatmul.mubr.f32.gmra.mxu0 %v783
        %v983 = vpop.f32.mrf.mxu0
        %v984 = vadd.f32 %v715, %v983
        %v985 = vpop.f32.mrf.mxu0
        %v986 = vadd.f32 %v719, %v985
        %987 = vmatprep.mubr.f32.mxu0 0.0
        %988 = vmatmul.mubr.f32.gmra.mxu0 %v786
        %v989 = vpop.f32.mrf.mxu0
        %v990 = vadd.f32 %v715, %v989
        %v991 = vpop.f32.mrf.mxu0
        %v992 = vadd.f32 %v719, %v991
        %993 = vmatprep.mubr.f32.mxu0 0.0
        %994 = vmatmul.mubr.f32.gmra.mxu0 %v789
        %v995 = vpop.f32.mrf.mxu0
        %v996 = vadd.f32 %v715, %v995
        %v997 = vpop.f32.mrf.mxu0
        %v998 = vadd.f32 %v719, %v997
        %999 = vmatprep.mubr.f32.mxu0 0.0
        %1000 = vmatmul.mubr.f32.gmra.mxu0 %v792
        %v1001 = vpop.f32.mrf.mxu0
        %v1002 = vadd.f32 %v715, %v1001
        %v1003 = vpop.f32.mrf.mxu0
        %v1004 = vadd.f32 %v719, %v1003
        %1005 = vmatprep.mubr.f32.mxu0 0.0
        %1006 = vmatmul.mubr.f32.gmra.mxu0 %v795
        %v1007 = vpop.f32.mrf.mxu0
        %v1008 = vadd.f32 %v715, %v1007
        %v1009 = vpop.f32.mrf.mxu0
        %v1010 = vadd.f32 %v719, %v1009
        %1011 = vmatprep.mubr.f32.mxu0 0.0
        %1012 = vmatmul.mubr.f32.gmra.mxu0 %v798
        %v1013 = vpop.f32.mrf.mxu0
        %v1014 = vadd.f32 %v715, %v1013
        %v1015 = vpop.f32.mrf.mxu0
        %v1016 = vadd.f32 %v719, %v1015
        %1017 = vmatprep.mubr.f32.mxu0 0.0
        %1018 = vmatmul.mubr.f32.gmra.mxu0 %v801
        %v1019 = vpop.f32.mrf.mxu0
        %v1020 = vadd.f32 %v715, %v1019
        %v1021 = vpop.f32.mrf.mxu0
        %v1022 = vadd.f32 %v719, %v1021
        %1023 = vmatprep.mubr.f32.mxu0 0.0
        %1024 = vmatmul.mubr.f32.gmra.mxu0 %v804
        %v1025 = vpop.f32.mrf.mxu0
        %v1026 = vadd.f32 %v715, %v1025
        %v1027 = vpop.f32.mrf.mxu0
        %v1028 = vadd.f32 %v719, %v1027
        %1029 = vmatprep.mubr.f32.mxu0 0.0
        %1030 = vmatmul.mubr.f32.gmra.mxu0 %v807
        %v1031 = vpop.f32.mrf.mxu0
        %v1032 = vadd.f32 %v715, %v1031
        %v1033 = vpop.f32.mrf.mxu0
        %v1034 = vadd.f32 %v719, %v1033
        %1035 = vmatprep.mubr.f32.mxu0 0.0
        %1036 = vmatmul.mubr.f32.gmra.mxu0 %v810
        %v1037 = vpop.f32.mrf.mxu0
        %v1038 = vadd.f32 %v715, %v1037
        %v1039 = vpop.f32.mrf.mxu0
        %v1040 = vadd.f32 %v719, %v1039
        %1041 = vmatprep.mubr.f32.mxu0 0.0
        %1042 = vmatmul.mubr.f32.gmra.mxu0 %v813
        %v1043 = vpop.f32.mrf.mxu0
        %v1044 = vadd.f32 %v715, %v1043
        %v1045 = vpop.f32.mrf.mxu0
        %v1046 = vadd.f32 %v719, %v1045
        %1047 = vmatprep.mubr.f32.mxu0 0.0
        %1048 = vmatmul.mubr.f32.gmra.mxu0 %v816
        %v1049 = vpop.f32.mrf.mxu0
        %v1050 = vadd.f32 %v715, %v1049
        %v1051 = vpop.f32.mrf.mxu0
        %v1052 = vadd.f32 %v719, %v1051
        %1053 = vmatprep.mubr.f32.mxu0 0.0
        %1054 = vmatmul.mubr.f32.gmra.mxu0 %v819
        %v1055 = vpop.f32.mrf.mxu0
        %v1056 = vadd.f32 %v715, %v1055
        %v1057 = vpop.f32.mrf.mxu0
        %v1058 = vadd.f32 %v719, %v1057
        %1059 = vmatprep.mubr.f32.mxu0 0.0
        %1060 = vmatmul.mubr.f32.gmra.mxu0 %v822
        %v1061 = vpop.f32.mrf.mxu0
        %v1062 = vadd.f32 %v715, %v1061
        %v1063 = vpop.f32.mrf.mxu0
        %v1064 = vadd.f32 %v719, %v1063
        %1065 = vmatprep.mubr.f32.mxu0 0.0
        %1066 = vmatmul.mubr.f32.gmra.mxu0 %v825
        %v1067 = vpop.f32.mrf.mxu0
        %v1068 = vadd.f32 %v715, %v1067
        %v1069 = vpop.f32.mrf.mxu0
        %v1070 = vadd.f32 %v719, %v1069
        %1071 = vmatprep.mubr.f32.mxu0 0.0
        %1072 = vmatmul.mubr.f32.gmra.mxu0 %v828
        %v1073 = vpop.f32.mrf.mxu0
        %v1074 = vadd.f32 %v715, %v1073
        %v1075 = vpop.f32.mrf.mxu0
        %v1076 = vadd.f32 %v719, %v1075
        %1077 = vmatprep.mubr.f32.mxu0 0.0
        %1078 = vmatmul.mubr.f32.gmra.mxu0 %v831
        %v1079 = vpop.f32.mrf.mxu0
        %v1080 = vadd.f32 %v715, %v1079
        %v1081 = vpop.f32.mrf.mxu0
        %v1082 = vadd.f32 %v719, %v1081
        %1083 = vmatprep.mubr.f32.mxu0 0.0
        %1084 = vmatmul.mubr.f32.gmra.mxu0 %v834
        %v1085 = vpop.f32.mrf.mxu0
        %v1086 = vadd.f32 %v715, %v1085
        %v1087 = vpop.f32.mrf.mxu0
        %v1088 = vadd.f32 %v719, %v1087
        %1089 = vmatprep.mubr.f32.mxu0 0.0
        %1090 = vmatmul.mubr.f32.gmra.mxu0 %v837
        %v1091 = vpop.f32.mrf.mxu0
        %v1092 = vadd.f32 %v715, %v1091
        %v1093 = vpop.f32.mrf.mxu0
        %v1094 = vadd.f32 %v719, %v1093
        %1095 = vdwg.mxu0
        %1096 = vmatprep.subr.mxu0 0.0
        %1097 = vmatpush1.msra.mxu0 0.0
        %1098 = vmatprep.subr.mxu0 0.0
        %1099 = vmatpush1.msra.mxu0 0.0
        %1100 = vmatprep.subr.mxu0 0.0
        %1101 = vmatpush1.msra.mxu0 0.0
        %1102 = vmatprep.subr.mxu0 0.0
        %1103 = vmatpush1.msra.mxu0 0.0
        %1104 = vmatprep.subr.mxu0 0.0
        %1105 = vmatpush1.msra.mxu0 0.0
        %1106 = vmatprep.subr.mxu0 0.0
        %1107 = vmatpush1.msra.mxu0 0.0
        %1108 = vmatprep.subr.mxu0 0.0
        %1109 = vmatpush1.msra.mxu0 0.0
        %1110 = vmatprep.subr.mxu0 0.0
        %1111 = vmatpush1.msra.mxu0 0.0
        %1112 = vmatprep.subr.mxu0 0.0
        %1113 = vmatpush1.msra.mxu0 0.0
        %1114 = vmatprep.subr.mxu0 0.0
        %1115 = vmatpush1.msra.mxu0 0.0
        %1116 = vmatprep.subr.mxu0 0.0
        %1117 = vmatpush1.msra.mxu0 0.0
        %1118 = vmatprep.subr.mxu0 0.0
        %1119 = vmatpush1.msra.mxu0 0.0
        %1120 = vmatprep.subr.mxu0 %v707
        %1121 = vmatpush1.msra.mxu0 %v706
        %1122 = vmatprep.subr.mxu0 %v701
        %1123 = vmatpush1.msra.mxu0 %v700
        %1124 = vmatprep.subr.mxu0 %v695
        %1125 = vmatpush1.msra.mxu0 %v694
        %1126 = vmatprep.subr.mxu0 %v689
        %1127 = vmatpush1.msra.mxu0 %v688
        %1128 = vmatprep.subr.mxu0 0.0
        %1129 = vmatpush2.msra.mxu0 0.0
        %1130 = vmatprep.subr.mxu0 0.0
        %1131 = vmatpush2.msra.mxu0 0.0
        %1132 = vmatprep.subr.mxu0 0.0
        %1133 = vmatpush2.msra.mxu0 0.0
        %1134 = vmatprep.subr.mxu0 0.0
        %1135 = vmatpush2.msra.mxu0 0.0
        %1136 = vmatprep.subr.mxu0 0.0
        %1137 = vmatpush2.msra.mxu0 0.0
        %1138 = vmatprep.subr.mxu0 0.0
        %1139 = vmatpush2.msra.mxu0 0.0
        %1140 = vmatprep.subr.mxu0 0.0
        %1141 = vmatpush2.msra.mxu0 0.0
        %1142 = vmatprep.subr.mxu0 0.0
        %1143 = vmatpush2.msra.mxu0 0.0
        %1144 = vmatprep.subr.mxu0 0.0
        %1145 = vmatpush2.msra.mxu0 0.0
        %1146 = vmatprep.subr.mxu0 0.0
        %1147 = vmatpush2.msra.mxu0 0.0
        %1148 = vmatprep.subr.mxu0 0.0
        %1149 = vmatpush2.msra.mxu0 0.0
        %1150 = vmatprep.subr.mxu0 0.0
        %1151 = vmatpush2.msra.mxu0 0.0
        %1152 = vmatprep.subr.mxu0 0.0
        %1153 = vmatpush2.msra.mxu0 0.0
        %1154 = vmatprep.subr.mxu0 0.0
        %1155 = vmatpush2.msra.mxu0 0.0
        %1156 = vmatprep.subr.mxu0 0.0
        %1157 = vmatpush2.msra.mxu0 0.0
        %1158 = vmatprep.subr.mxu0 0.0
        %1159 = vmatpush2.msra.mxu0 0.0
        %1160 = vmatprep.mubr.f32.mxu0 0.0
        %1161 = vmatmul.mubr.f32.gmra.mxu0 %v744
        %v1162 = vpop.f32.mrf.mxu0
        %v1163 = vadd.f32 %v723, %v1162
        %v1164 = vpop.f32.mrf.mxu0
        %v1165 = vadd.f32 %v727, %v1164
        %1166 = vmatprep.mubr.f32.mxu0 0.0
        %1167 = vmatmul.mubr.f32.gmra.mxu0 %v747
        %v1168 = vpop.f32.mrf.mxu0
        %v1169 = vadd.f32 %v723, %v1168
        %v1170 = vpop.f32.mrf.mxu0
        %v1171 = vadd.f32 %v727, %v1170
        %1172 = vmatprep.mubr.f32.mxu0 0.0
        %1173 = vmatmul.mubr.f32.gmra.mxu0 %v750
        %v1174 = vpop.f32.mrf.mxu0
        %v1175 = vadd.f32 %v723, %v1174
        %v1176 = vpop.f32.mrf.mxu0
        %v1177 = vadd.f32 %v727, %v1176
        %1178 = vmatprep.mubr.f32.mxu0 0.0
        %1179 = vmatmul.mubr.f32.gmra.mxu0 %v753
        %v1180 = vpop.f32.mrf.mxu0
        %v1181 = vadd.f32 %v723, %v1180
        %v1182 = vpop.f32.mrf.mxu0
        %v1183 = vadd.f32 %v727, %v1182
        %1184 = vmatprep.mubr.f32.mxu0 0.0
        %1185 = vmatmul.mubr.f32.gmra.mxu0 %v756
        %v1186 = vpop.f32.mrf.mxu0
        %v1187 = vadd.f32 %v723, %v1186
        %v1188 = vpop.f32.mrf.mxu0
        %v1189 = vadd.f32 %v727, %v1188
        %1190 = vmatprep.mubr.f32.mxu0 0.0
        %1191 = vmatmul.mubr.f32.gmra.mxu0 %v759
        %v1192 = vpop.f32.mrf.mxu0
        %v1193 = vadd.f32 %v723, %v1192
        %v1194 = vpop.f32.mrf.mxu0
        %v1195 = vadd.f32 %v727, %v1194
        %1196 = vmatprep.mubr.f32.mxu0 0.0
        %1197 = vmatmul.mubr.f32.gmra.mxu0 %v762
        %v1198 = vpop.f32.mrf.mxu0
        %v1199 = vadd.f32 %v723, %v1198
        %v1200 = vpop.f32.mrf.mxu0
        %v1201 = vadd.f32 %v727, %v1200
        %1202 = vmatprep.mubr.f32.mxu0 0.0
        %1203 = vmatmul.mubr.f32.gmra.mxu0 %v765
        %v1204 = vpop.f32.mrf.mxu0
        %v1205 = vadd.f32 %v723, %v1204
        %v1206 = vpop.f32.mrf.mxu0
        %v1207 = vadd.f32 %v727, %v1206
        %1208 = vmatprep.mubr.f32.mxu0 0.0
        %1209 = vmatmul.mubr.f32.gmra.mxu0 %v768
        %v1210 = vpop.f32.mrf.mxu0
        %v1211 = vadd.f32 %v723, %v1210
        %v1212 = vpop.f32.mrf.mxu0
        %v1213 = vadd.f32 %v727, %v1212
        %1214 = vmatprep.mubr.f32.mxu0 0.0
        %1215 = vmatmul.mubr.f32.gmra.mxu0 %v771
        %v1216 = vpop.f32.mrf.mxu0
        %v1217 = vadd.f32 %v723, %v1216
        %v1218 = vpop.f32.mrf.mxu0
        %v1219 = vadd.f32 %v727, %v1218
        %1220 = vmatprep.mubr.f32.mxu0 0.0
        %1221 = vmatmul.mubr.f32.gmra.mxu0 %v774
        %v1222 = vpop.f32.mrf.mxu0
        %v1223 = vadd.f32 %v723, %v1222
        %v1224 = vpop.f32.mrf.mxu0
        %v1225 = vadd.f32 %v727, %v1224
        %1226 = vmatprep.mubr.f32.mxu0 0.0
        %1227 = vmatmul.mubr.f32.gmra.mxu0 %v777
        %v1228 = vpop.f32.mrf.mxu0
        %v1229 = vadd.f32 %v723, %v1228
        %v1230 = vpop.f32.mrf.mxu0
        %v1231 = vadd.f32 %v727, %v1230
        %1232 = vmatprep.mubr.f32.mxu0 0.0
        %1233 = vmatmul.mubr.f32.gmra.mxu0 %v780
        %v1234 = vpop.f32.mrf.mxu0
        %v1235 = vadd.f32 %v723, %v1234
        %v1236 = vpop.f32.mrf.mxu0
        %v1237 = vadd.f32 %v727, %v1236
        %1238 = vmatprep.mubr.f32.mxu0 0.0
        %1239 = vmatmul.mubr.f32.gmra.mxu0 %v783
        %v1240 = vpop.f32.mrf.mxu0
        %v1241 = vadd.f32 %v723, %v1240
        %v1242 = vpop.f32.mrf.mxu0
        %v1243 = vadd.f32 %v727, %v1242
        %1244 = vmatprep.mubr.f32.mxu0 0.0
        %1245 = vmatmul.mubr.f32.gmra.mxu0 %v786
        %v1246 = vpop.f32.mrf.mxu0
        %v1247 = vadd.f32 %v723, %v1246
        %v1248 = vpop.f32.mrf.mxu0
        %v1249 = vadd.f32 %v727, %v1248
        %1250 = vmatprep.mubr.f32.mxu0 0.0
        %1251 = vmatmul.mubr.f32.gmra.mxu0 %v789
        %v1252 = vpop.f32.mrf.mxu0
        %v1253 = vadd.f32 %v723, %v1252
        %v1254 = vpop.f32.mrf.mxu0
        %v1255 = vadd.f32 %v727, %v1254
        %1256 = vmatprep.mubr.f32.mxu0 0.0
        %1257 = vmatmul.mubr.f32.gmra.mxu0 %v792
        %v1258 = vpop.f32.mrf.mxu0
        %v1259 = vadd.f32 %v723, %v1258
        %v1260 = vpop.f32.mrf.mxu0
        %v1261 = vadd.f32 %v727, %v1260
        %1262 = vmatprep.mubr.f32.mxu0 0.0
        %1263 = vmatmul.mubr.f32.gmra.mxu0 %v795
        %v1264 = vpop.f32.mrf.mxu0
        %v1265 = vadd.f32 %v723, %v1264
        %v1266 = vpop.f32.mrf.mxu0
        %v1267 = vadd.f32 %v727, %v1266
        %1268 = vmatprep.mubr.f32.mxu0 0.0
        %1269 = vmatmul.mubr.f32.gmra.mxu0 %v798
        %v1270 = vpop.f32.mrf.mxu0
        %v1271 = vadd.f32 %v723, %v1270
        %v1272 = vpop.f32.mrf.mxu0
        %v1273 = vadd.f32 %v727, %v1272
        %1274 = vmatprep.mubr.f32.mxu0 0.0
        %1275 = vmatmul.mubr.f32.gmra.mxu0 %v801
        %v1276 = vpop.f32.mrf.mxu0
        %v1277 = vadd.f32 %v723, %v1276
        %v1278 = vpop.f32.mrf.mxu0
        %v1279 = vadd.f32 %v727, %v1278
        %1280 = vmatprep.mubr.f32.mxu0 0.0
        %1281 = vmatmul.mubr.f32.gmra.mxu0 %v804
        %v1282 = vpop.f32.mrf.mxu0
        %v1283 = vadd.f32 %v723, %v1282
        %v1284 = vpop.f32.mrf.mxu0
        %v1285 = vadd.f32 %v727, %v1284
        %1286 = vmatprep.mubr.f32.mxu0 0.0
        %1287 = vmatmul.mubr.f32.gmra.mxu0 %v807
        %v1288 = vpop.f32.mrf.mxu0
        %v1289 = vadd.f32 %v723, %v1288
        %v1290 = vpop.f32.mrf.mxu0
        %v1291 = vadd.f32 %v727, %v1290
        %1292 = vmatprep.mubr.f32.mxu0 0.0
        %1293 = vmatmul.mubr.f32.gmra.mxu0 %v810
        %v1294 = vpop.f32.mrf.mxu0
        %v1295 = vadd.f32 %v723, %v1294
        %v1296 = vpop.f32.mrf.mxu0
        %v1297 = vadd.f32 %v727, %v1296
        %1298 = vmatprep.mubr.f32.mxu0 0.0
        %1299 = vmatmul.mubr.f32.gmra.mxu0 %v813
        %v1300 = vpop.f32.mrf.mxu0
        %v1301 = vadd.f32 %v723, %v1300
        %v1302 = vpop.f32.mrf.mxu0
        %v1303 = vadd.f32 %v727, %v1302
        %1304 = vmatprep.mubr.f32.mxu0 0.0
        %1305 = vmatmul.mubr.f32.gmra.mxu0 %v816
        %v1306 = vpop.f32.mrf.mxu0
        %v1307 = vadd.f32 %v723, %v1306
        %v1308 = vpop.f32.mrf.mxu0
        %v1309 = vadd.f32 %v727, %v1308
        %1310 = vmatprep.mubr.f32.mxu0 0.0
        %1311 = vmatmul.mubr.f32.gmra.mxu0 %v819
        %v1312 = vpop.f32.mrf.mxu0
        %v1313 = vadd.f32 %v723, %v1312
        %v1314 = vpop.f32.mrf.mxu0
        %v1315 = vadd.f32 %v727, %v1314
        %1316 = vmatprep.mubr.f32.mxu0 0.0
        %1317 = vmatmul.mubr.f32.gmra.mxu0 %v822
        %v1318 = vpop.f32.mrf.mxu0
        %v1319 = vadd.f32 %v723, %v1318
        %v1320 = vpop.f32.mrf.mxu0
        %v1321 = vadd.f32 %v727, %v1320
        %1322 = vmatprep.mubr.f32.mxu0 0.0
        %1323 = vmatmul.mubr.f32.gmra.mxu0 %v825
        %v1324 = vpop.f32.mrf.mxu0
        %v1325 = vadd.f32 %v723, %v1324
        %v1326 = vpop.f32.mrf.mxu0
        %v1327 = vadd.f32 %v727, %v1326
        %1328 = vmatprep.mubr.f32.mxu0 0.0
        %1329 = vmatmul.mubr.f32.gmra.mxu0 %v828
        %v1330 = vpop.f32.mrf.mxu0
        %v1331 = vadd.f32 %v723, %v1330
        %v1332 = vpop.f32.mrf.mxu0
        %v1333 = vadd.f32 %v727, %v1332
        %1334 = vmatprep.mubr.f32.mxu0 0.0
        %1335 = vmatmul.mubr.f32.gmra.mxu0 %v831
        %v1336 = vpop.f32.mrf.mxu0
        %v1337 = vadd.f32 %v723, %v1336
        %v1338 = vpop.f32.mrf.mxu0
        %v1339 = vadd.f32 %v727, %v1338
        %1340 = vmatprep.mubr.f32.mxu0 0.0
        %1341 = vmatmul.mubr.f32.gmra.mxu0 %v834
        %v1342 = vpop.f32.mrf.mxu0
        %v1343 = vadd.f32 %v723, %v1342
        %v1344 = vpop.f32.mrf.mxu0
        %v1345 = vadd.f32 %v727, %v1344
        %1346 = vmatprep.mubr.f32.mxu0 0.0
        %1347 = vmatmul.mubr.f32.gmra.mxu0 %v837
        %v1348 = vpop.f32.mrf.mxu0
        %v1349 = vadd.f32 %v723, %v1348
        %v1350 = vpop.f32.mrf.mxu0
        %v1351 = vadd.f32 %v727, %v1350
        %1352 = vdwg.mxu0
        %1353 = vmatprep.subr.mxu0 0.0
        %1354 = vmatpush1.msra.mxu0 0.0
        %1355 = vmatprep.subr.mxu0 0.0
        %1356 = vmatpush1.msra.mxu0 0.0
        %1357 = vmatprep.subr.mxu0 0.0
        %1358 = vmatpush1.msra.mxu0 0.0
        %1359 = vmatprep.subr.mxu0 0.0
        %1360 = vmatpush1.msra.mxu0 0.0
        %1361 = vmatprep.subr.mxu0 0.0
        %1362 = vmatpush1.msra.mxu0 0.0
        %1363 = vmatprep.subr.mxu0 0.0
        %1364 = vmatpush1.msra.mxu0 0.0
        %1365 = vmatprep.subr.mxu0 0.0
        %1366 = vmatpush1.msra.mxu0 0.0
        %1367 = vmatprep.subr.mxu0 0.0
        %1368 = vmatpush1.msra.mxu0 0.0
        %1369 = vmatprep.subr.mxu0 0.0
        %1370 = vmatpush1.msra.mxu0 0.0
        %1371 = vmatprep.subr.mxu0 0.0
        %1372 = vmatpush1.msra.mxu0 0.0
        %1373 = vmatprep.subr.mxu0 0.0
        %1374 = vmatpush1.msra.mxu0 0.0
        %1375 = vmatprep.subr.mxu0 0.0
        %1376 = vmatpush1.msra.mxu0 0.0
        %1377 = vmatprep.subr.mxu0 %v709
        %1378 = vmatpush1.msra.mxu0 %v708
        %1379 = vmatprep.subr.mxu0 %v703
        %1380 = vmatpush1.msra.mxu0 %v702
        %1381 = vmatprep.subr.mxu0 %v697
        %1382 = vmatpush1.msra.mxu0 %v696
        %1383 = vmatprep.subr.mxu0 %v691
        %1384 = vmatpush1.msra.mxu0 %v690
        %1385 = vmatprep.subr.mxu0 0.0
        %1386 = vmatpush2.msra.mxu0 0.0
        %1387 = vmatprep.subr.mxu0 0.0
        %1388 = vmatpush2.msra.mxu0 0.0
        %1389 = vmatprep.subr.mxu0 0.0
        %1390 = vmatpush2.msra.mxu0 0.0
        %1391 = vmatprep.subr.mxu0 0.0
        %1392 = vmatpush2.msra.mxu0 0.0
        %1393 = vmatprep.subr.mxu0 0.0
        %1394 = vmatpush2.msra.mxu0 0.0
        %1395 = vmatprep.subr.mxu0 0.0
        %1396 = vmatpush2.msra.mxu0 0.0
        %1397 = vmatprep.subr.mxu0 0.0
        %1398 = vmatpush2.msra.mxu0 0.0
        %1399 = vmatprep.subr.mxu0 0.0
        %1400 = vmatpush2.msra.mxu0 0.0
        %1401 = vmatprep.subr.mxu0 0.0
        %1402 = vmatpush2.msra.mxu0 0.0
        %1403 = vmatprep.subr.mxu0 0.0
        %1404 = vmatpush2.msra.mxu0 0.0
        %1405 = vmatprep.subr.mxu0 0.0
        %1406 = vmatpush2.msra.mxu0 0.0
        %1407 = vmatprep.subr.mxu0 0.0
        %1408 = vmatpush2.msra.mxu0 0.0
        %1409 = vmatprep.subr.mxu0 0.0
        %1410 = vmatpush2.msra.mxu0 0.0
        %1411 = vmatprep.subr.mxu0 0.0
        %1412 = vmatpush2.msra.mxu0 0.0
        %1413 = vmatprep.subr.mxu0 0.0
        %1414 = vmatpush2.msra.mxu0 0.0
        %1415 = vmatprep.subr.mxu0 0.0
        %1416 = vmatpush2.msra.mxu0 0.0
        %1417 = vmatprep.mubr.f32.mxu0 0.0
        %1418 = vmatmul.mubr.f32.gmra.mxu0 %v744
        %v1419 = vpop.f32.mrf.mxu0
        %v1420 = vadd.f32 %v731, %v1419
        %v1421 = vpop.f32.mrf.mxu0
        %v1422 = vadd.f32 %v735, %v1421
        %1423 = vmatprep.mubr.f32.mxu0 0.0
        %1424 = vmatmul.mubr.f32.gmra.mxu0 %v747
        %v1425 = vpop.f32.mrf.mxu0
        %v1426 = vadd.f32 %v731, %v1425
        %v1427 = vpop.f32.mrf.mxu0
        %v1428 = vadd.f32 %v735, %v1427
        %1429 = vmatprep.mubr.f32.mxu0 0.0
        %1430 = vmatmul.mubr.f32.gmra.mxu0 %v750
        %v1431 = vpop.f32.mrf.mxu0
        %v1432 = vadd.f32 %v731, %v1431
        %v1433 = vpop.f32.mrf.mxu0
        %v1434 = vadd.f32 %v735, %v1433
        %1435 = vmatprep.mubr.f32.mxu0 0.0
        %1436 = vmatmul.mubr.f32.gmra.mxu0 %v753
        %v1437 = vpop.f32.mrf.mxu0
        %v1438 = vadd.f32 %v731, %v1437
        %v1439 = vpop.f32.mrf.mxu0
        %v1440 = vadd.f32 %v735, %v1439
        %1441 = vmatprep.mubr.f32.mxu0 0.0
        %1442 = vmatmul.mubr.f32.gmra.mxu0 %v756
        %v1443 = vpop.f32.mrf.mxu0
        %v1444 = vadd.f32 %v731, %v1443
        %v1445 = vpop.f32.mrf.mxu0
        %v1446 = vadd.f32 %v735, %v1445
        %1447 = vmatprep.mubr.f32.mxu0 0.0
        %1448 = vmatmul.mubr.f32.gmra.mxu0 %v759
        %v1449 = vpop.f32.mrf.mxu0
        %v1450 = vadd.f32 %v731, %v1449
        %v1451 = vpop.f32.mrf.mxu0
        %v1452 = vadd.f32 %v735, %v1451
        %1453 = vmatprep.mubr.f32.mxu0 0.0
        %1454 = vmatmul.mubr.f32.gmra.mxu0 %v762
        %v1455 = vpop.f32.mrf.mxu0
        %v1456 = vadd.f32 %v731, %v1455
        %v1457 = vpop.f32.mrf.mxu0
        %v1458 = vadd.f32 %v735, %v1457
        %1459 = vmatprep.mubr.f32.mxu0 0.0
        %1460 = vmatmul.mubr.f32.gmra.mxu0 %v765
        %v1461 = vpop.f32.mrf.mxu0
        %v1462 = vadd.f32 %v731, %v1461
        %v1463 = vpop.f32.mrf.mxu0
        %v1464 = vadd.f32 %v735, %v1463
        %1465 = vmatprep.mubr.f32.mxu0 0.0
        %1466 = vmatmul.mubr.f32.gmra.mxu0 %v768
        %v1467 = vpop.f32.mrf.mxu0
        %v1468 = vadd.f32 %v731, %v1467
        %v1469 = vpop.f32.mrf.mxu0
        %v1470 = vadd.f32 %v735, %v1469
        %1471 = vmatprep.mubr.f32.mxu0 0.0
        %1472 = vmatmul.mubr.f32.gmra.mxu0 %v771
        %v1473 = vpop.f32.mrf.mxu0
        %v1474 = vadd.f32 %v731, %v1473
        %v1475 = vpop.f32.mrf.mxu0
        %v1476 = vadd.f32 %v735, %v1475
        %1477 = vmatprep.mubr.f32.mxu0 0.0
        %1478 = vmatmul.mubr.f32.gmra.mxu0 %v774
        %v1479 = vpop.f32.mrf.mxu0
        %v1480 = vadd.f32 %v731, %v1479
        %v1481 = vpop.f32.mrf.mxu0
        %v1482 = vadd.f32 %v735, %v1481
        %1483 = vmatprep.mubr.f32.mxu0 0.0
        %1484 = vmatmul.mubr.f32.gmra.mxu0 %v777
        %v1485 = vpop.f32.mrf.mxu0
        %v1486 = vadd.f32 %v731, %v1485
        %v1487 = vpop.f32.mrf.mxu0
        %v1488 = vadd.f32 %v735, %v1487
        %1489 = vmatprep.mubr.f32.mxu0 0.0
        %1490 = vmatmul.mubr.f32.gmra.mxu0 %v780
        %v1491 = vpop.f32.mrf.mxu0
        %v1492 = vadd.f32 %v731, %v1491
        %v1493 = vpop.f32.mrf.mxu0
        %v1494 = vadd.f32 %v735, %v1493
        %1495 = vmatprep.mubr.f32.mxu0 0.0
        %1496 = vmatmul.mubr.f32.gmra.mxu0 %v783
        %v1497 = vpop.f32.mrf.mxu0
        %v1498 = vadd.f32 %v731, %v1497
        %v1499 = vpop.f32.mrf.mxu0
        %v1500 = vadd.f32 %v735, %v1499
        %1501 = vmatprep.mubr.f32.mxu0 0.0
        %1502 = vmatmul.mubr.f32.gmra.mxu0 %v786
        %v1503 = vpop.f32.mrf.mxu0
        %v1504 = vadd.f32 %v731, %v1503
        %v1505 = vpop.f32.mrf.mxu0
        %v1506 = vadd.f32 %v735, %v1505
        %1507 = vmatprep.mubr.f32.mxu0 0.0
        %1508 = vmatmul.mubr.f32.gmra.mxu0 %v789
        %v1509 = vpop.f32.mrf.mxu0
        %v1510 = vadd.f32 %v731, %v1509
        %v1511 = vpop.f32.mrf.mxu0
        %v1512 = vadd.f32 %v735, %v1511
        %1513 = vmatprep.mubr.f32.mxu0 0.0
        %1514 = vmatmul.mubr.f32.gmra.mxu0 %v792
        %v1515 = vpop.f32.mrf.mxu0
        %v1516 = vadd.f32 %v731, %v1515
        %v1517 = vpop.f32.mrf.mxu0
        %v1518 = vadd.f32 %v735, %v1517
        %1519 = vmatprep.mubr.f32.mxu0 0.0
        %1520 = vmatmul.mubr.f32.gmra.mxu0 %v795
        %v1521 = vpop.f32.mrf.mxu0
        %v1522 = vadd.f32 %v731, %v1521
        %v1523 = vpop.f32.mrf.mxu0
        %v1524 = vadd.f32 %v735, %v1523
        %1525 = vmatprep.mubr.f32.mxu0 0.0
        %1526 = vmatmul.mubr.f32.gmra.mxu0 %v798
        %v1527 = vpop.f32.mrf.mxu0
        %v1528 = vadd.f32 %v731, %v1527
        %v1529 = vpop.f32.mrf.mxu0
        %v1530 = vadd.f32 %v735, %v1529
        %1531 = vmatprep.mubr.f32.mxu0 0.0
        %1532 = vmatmul.mubr.f32.gmra.mxu0 %v801
        %v1533 = vpop.f32.mrf.mxu0
        %v1534 = vadd.f32 %v731, %v1533
        %v1535 = vpop.f32.mrf.mxu0
        %v1536 = vadd.f32 %v735, %v1535
        %1537 = vmatprep.mubr.f32.mxu0 0.0
        %1538 = vmatmul.mubr.f32.gmra.mxu0 %v804
        %v1539 = vpop.f32.mrf.mxu0
        %v1540 = vadd.f32 %v731, %v1539
        %v1541 = vpop.f32.mrf.mxu0
        %v1542 = vadd.f32 %v735, %v1541
        %1543 = vmatprep.mubr.f32.mxu0 0.0
        %1544 = vmatmul.mubr.f32.gmra.mxu0 %v807
        %v1545 = vpop.f32.mrf.mxu0
        %v1546 = vadd.f32 %v731, %v1545
        %v1547 = vpop.f32.mrf.mxu0
        %v1548 = vadd.f32 %v735, %v1547
        %1549 = vmatprep.mubr.f32.mxu0 0.0
        %1550 = vmatmul.mubr.f32.gmra.mxu0 %v810
        %v1551 = vpop.f32.mrf.mxu0
        %v1552 = vadd.f32 %v731, %v1551
        %v1553 = vpop.f32.mrf.mxu0
        %v1554 = vadd.f32 %v735, %v1553
        %1555 = vmatprep.mubr.f32.mxu0 0.0
        %1556 = vmatmul.mubr.f32.gmra.mxu0 %v813
        %v1557 = vpop.f32.mrf.mxu0
        %v1558 = vadd.f32 %v731, %v1557
        %v1559 = vpop.f32.mrf.mxu0
        %v1560 = vadd.f32 %v735, %v1559
        %1561 = vmatprep.mubr.f32.mxu0 0.0
        %1562 = vmatmul.mubr.f32.gmra.mxu0 %v816
        %v1563 = vpop.f32.mrf.mxu0
        %v1564 = vadd.f32 %v731, %v1563
        %v1565 = vpop.f32.mrf.mxu0
        %v1566 = vadd.f32 %v735, %v1565
        %1567 = vmatprep.mubr.f32.mxu0 0.0
        %1568 = vmatmul.mubr.f32.gmra.mxu0 %v819
        %v1569 = vpop.f32.mrf.mxu0
        %v1570 = vadd.f32 %v731, %v1569
        %v1571 = vpop.f32.mrf.mxu0
        %v1572 = vadd.f32 %v735, %v1571
        %1573 = vmatprep.mubr.f32.mxu0 0.0
        %1574 = vmatmul.mubr.f32.gmra.mxu0 %v822
        %v1575 = vpop.f32.mrf.mxu0
        %v1576 = vadd.f32 %v731, %v1575
        %v1577 = vpop.f32.mrf.mxu0
        %v1578 = vadd.f32 %v735, %v1577
        %1579 = vmatprep.mubr.f32.mxu0 0.0
        %1580 = vmatmul.mubr.f32.gmra.mxu0 %v825
        %v1581 = vpop.f32.mrf.mxu0
        %v1582 = vadd.f32 %v731, %v1581
        %v1583 = vpop.f32.mrf.mxu0
        %v1584 = vadd.f32 %v735, %v1583
        %1585 = vmatprep.mubr.f32.mxu0 0.0
        %1586 = vmatmul.mubr.f32.gmra.mxu0 %v828
        %v1587 = vpop.f32.mrf.mxu0
        %v1588 = vadd.f32 %v731, %v1587
        %v1589 = vpop.f32.mrf.mxu0
        %v1590 = vadd.f32 %v735, %v1589
        %1591 = vmatprep.mubr.f32.mxu0 0.0
        %1592 = vmatmul.mubr.f32.gmra.mxu0 %v831
        %v1593 = vpop.f32.mrf.mxu0
        %v1594 = vadd.f32 %v731, %v1593
        %v1595 = vpop.f32.mrf.mxu0
        %v1596 = vadd.f32 %v735, %v1595
        %1597 = vmatprep.mubr.f32.mxu0 0.0
        %1598 = vmatmul.mubr.f32.gmra.mxu0 %v834
        %v1599 = vpop.f32.mrf.mxu0
        %v1600 = vadd.f32 %v731, %v1599
        %v1601 = vpop.f32.mrf.mxu0
        %v1602 = vadd.f32 %v735, %v1601
        %1603 = vmatprep.mubr.f32.mxu0 0.0
        %1604 = vmatmul.mubr.f32.gmra.mxu0 %v837
        %v1605 = vpop.f32.mrf.mxu0
        %v1606 = vadd.f32 %v731, %v1605
        %v1607 = vpop.f32.mrf.mxu0
        %v1608 = vadd.f32 %v735, %v1607
        %1609 = vdwg.mxu0
        %v1610 = vtanh.pop %v906
        %v1611 = vtanh.pop %v908
        %v1612 = vtanh.pop %v1163
        %v1613 = vtanh.pop %v1165
        %v1614 = vtanh.pop %v1420
        %v1615 = vtanh.pop %v912
        %v1616 = vtanh.pop %v914
        %v1617 = vtanh.pop %v1169
        %v1618 = vtanh.pop %v1171
        %v1619 = vtanh.pop %v1426
        %v1620 = vtanh.pop %v918
        %v1621 = vtanh.pop %v920
        %v1622 = vtanh.pop %v1175
        %v1623 = vtanh.pop %v1177
        %v1624 = vtanh.pop %v1432
        %v1625 = vtanh.pop %v924
        %v1626 = vtanh.pop %v926
        %v1627 = vtanh.pop %v1181
        %v1628 = vtanh.pop %v1183
        %v1629 = vtanh.pop %v1438
        %v1630 = vtanh.pop %v930
        %v1631 = vtanh.pop %v932
        %v1632 = vtanh.pop %v1187
        %v1633 = vtanh.pop %v1189
        %v1634 = vtanh.pop %v1444
        %v1635 = vtanh.pop %v936
        %v1636 = vtanh.pop %v938
        %v1637 = vtanh.pop %v1193
        %v1638 = vtanh.pop %v1195
        %v1639 = vtanh.pop %v1450
        %v1640 = vtanh.pop %v942
        %v1641 = vtanh.pop %v944
        %v1642 = vtanh.pop %v1199
        %v1643 = vtanh.pop %v1201
        %v1644 = vtanh.pop %v1456
        %v1645 = vtanh.pop %v948
        %v1646 = vtanh.pop %v950
        %v1647 = vtanh.pop %v1205
        %v1648 = vtanh.pop %v1207
        %v1649 = vtanh.pop %v1462
        %v1650 = vtanh.pop %v954
        %v1651 = vtanh.pop %v956
        %v1652 = vtanh.pop %v1211
        %v1653 = vtanh.pop %v1213
        %v1654 = vtanh.pop %v1468
        %v1655 = vtanh.pop %v960
        %v1656 = vtanh.pop %v962
        %v1657 = vtanh.pop %v1217
        %v1658 = vtanh.pop %v1219
        %v1659 = vtanh.pop %v1474
        %v1660 = vtanh.pop %v966
        %v1661 = vtanh.pop %v968
        %v1662 = vtanh.pop %v1223
        %v1663 = vtanh.pop %v1225
        %v1664 = vtanh.pop %v1480
        %v1665 = vtanh.pop %v972
        %v1666 = vtanh.pop %v974
        %v1667 = vtanh.pop %v1229
        %v1668 = vtanh.pop %v1231
        %v1669 = vtanh.pop %v1486
        %v1670 = vtanh.pop %v978
        %v1671 = vtanh.pop %v980
        %v1672 = vtanh.pop %v1235
        %v1673 = vtanh.pop %v1237
        %v1674 = vtanh.pop %v1492
        %v1675 = vtanh.pop %v984
        %v1676 = vtanh.pop %v986
        %v1677 = vtanh.pop %v1241
        %v1678 = vtanh.pop %v1243
        %v1679 = vtanh.pop %v1498
        %v1680 = vtanh.pop %v990
        %v1681 = vtanh.pop %v992
        %v1682 = vtanh.pop %v1247
        %v1683 = vtanh.pop %v1249
        %v1684 = vtanh.pop %v1504
        %v1685 = vtanh.pop %v996
        %v1686 = vtanh.pop %v998
        %v1687 = vtanh.pop %v1253
        %v1688 = vtanh.pop %v1255
        %v1689 = vtanh.pop %v1510
        %v1690 = vtanh.pop %v1002
        %v1691 = vtanh.pop %v1004
        %v1692 = vtanh.pop %v1259
        %v1693 = vtanh.pop %v1261
        %v1694 = vtanh.pop %v1516
        %v1695 = vtanh.pop %v1008
        %v1696 = vtanh.pop %v1010
        %v1697 = vtanh.pop %v1265
        %v1698 = vtanh.pop %v1267
        %v1699 = vtanh.pop %v1522
        %v1700 = vtanh.pop %v1014
        %v1701 = vtanh.pop %v1016
        %v1702 = vtanh.pop %v1271
        %v1703 = vtanh.pop %v1273
        %v1704 = vtanh.pop %v1528
        %v1705 = vtanh.pop %v1020
        %v1706 = vtanh.pop %v1022
        %v1707 = vtanh.pop %v1277
        %v1708 = vtanh.pop %v1279
        %v1709 = vtanh.pop %v1534
        %v1710 = vtanh.pop %v1026
        %v1711 = vtanh.pop %v1028
        %v1712 = vtanh.pop %v1283
        %v1713 = vtanh.pop %v1285
        %v1714 = vtanh.pop %v1540
        %v1715 = vtanh.pop %v1032
        %v1716 = vtanh.pop %v1034
        %v1717 = vtanh.pop %v1289
        %v1718 = vtanh.pop %v1291
        %v1719 = vtanh.pop %v1546
        %v1720 = vtanh.pop %v1038
        %v1721 = vtanh.pop %v1040
        %v1722 = vtanh.pop %v1295
        %v1723 = vtanh.pop %v1297
        %v1724 = vtanh.pop %v1552
        %v1725 = vtanh.pop %v1044
        %v1726 = vtanh.pop %v1046
        %v1727 = vtanh.pop %v1301
        %v1728 = vtanh.pop %v1303
        %v1729 = vtanh.pop %v1558
        %v1730 = vtanh.pop %v1050
        %v1731 = vtanh.pop %v1052
        %v1732 = vtanh.pop %v1307
        %v1733 = vtanh.pop %v1309
        %v1734 = vtanh.pop %v1564
        %v1735 = vtanh.pop %v1056
        %v1736 = vtanh.pop %v1058
        %v1737 = vtanh.pop %v1313
        %v1738 = vtanh.pop %v1315
        %v1739 = vtanh.pop %v1570
        %v1740 = vtanh.pop %v1062
        %v1741 = vtanh.pop %v1064
        %v1742 = vtanh.pop %v1319
        %v1743 = vtanh.pop %v1321
        %v1744 = vtanh.pop %v1576
        %v1745 = vtanh.pop %v1068
        %v1746 = vtanh.pop %v1070
        %v1747 = vtanh.pop %v1325
        %v1748 = vtanh.pop %v1327
        %v1749 = vtanh.pop %v1582
        %v1750 = vtanh.pop %v1074
        %v1751 = vtanh.pop %v1076
        %v1752 = vtanh.pop %v1331
        %v1753 = vtanh.pop %v1333
        %v1754 = vtanh.pop %v1588
        %v1755 = vtanh.pop %v1080
        %v1756 = vtanh.pop %v1082
        %v1757 = vtanh.pop %v1337
        %v1758 = vtanh.pop %v1339
        %v1759 = vtanh.pop %v1594
        %v1760 = vtanh.pop %v1086
        %v1761 = vtanh.pop %v1088
        %v1762 = vtanh.pop %v1343
        %v1763 = vtanh.pop %v1345
        %v1764 = vtanh.pop %v1600
        %v1765 = vtanh.pop %v1092
        %v1766 = vtanh.pop %v1094
        %v1767 = vtanh.pop %v1349
        %v1768 = vtanh.pop %v1351
        %v1769 = vtanh.pop %v1606
        %v1770 = vld [vmem:[#allocation4] sm:$0xff]
        %v1771 = vld [vmem:[#allocation4 + $0x8] sm:$0xff]
        %v1772 = vld [vmem:[#allocation4 + $0x10] sm:$0xff]
        %v1773 = vld [vmem:[#allocation4 + $0x18] sm:$0xff]
        %v1774 = vld [vmem:[#allocation4 + $0x20] sm:$0xff]
        %v1775 = vld [vmem:[#allocation4 + $0x28] sm:$0xff]
        %v1776 = vld [vmem:[#allocation4 + $0x30] sm:$0xff]
        %v1777 = vld [vmem:[#allocation4 + $0x38] sm:$0xff]
        %v1778 = vld [vmem:[#allocation4 + $0x40] sm:$0xff]
        %v1779 = vld [vmem:[#allocation4 + $0x48] sm:$0xff]
        %v1780 = vld [vmem:[#allocation4 + $0x50] sm:$0xff]
        %v1781 = vld [vmem:[#allocation4 + $0x58] sm:$0xff]
        %v1782 = vld [vmem:[#allocation4 + $0x60] sm:$0xff]
        %v1783 = vld [vmem:[#allocation4 + $0x68] sm:$0xff]
        %v1784 = vld [vmem:[#allocation4 + $0x70] sm:$0xff]
        %v1785 = vld [vmem:[#allocation4 + $0x78] sm:$0xff]
        %v1786 = vld [vmem:[#allocation4 + $0x80] sm:$0xff]
        %v1787 = vld [vmem:[#allocation4 + $0x88] sm:$0xff]
        %v1788 = vld [vmem:[#allocation4 + $0x90] sm:$0xff]
        %v1789 = vld [vmem:[#allocation4 + $0x98] sm:$0xff]
        %v1790 = vld [vmem:[#allocation4 + $0xa0] sm:$0xff]
        %v1791 = vld [vmem:[#allocation4 + $0xa8] sm:$0xff]
        %v1792 = vld [vmem:[#allocation4 + $0xb0] sm:$0xff]
        %v1793 = vld [vmem:[#allocation4 + $0xb8] sm:$0xff]
        %v1794 = vld [vmem:[#allocation4 + $0xc0] sm:$0xff]
        %v1795 = vld [vmem:[#allocation4 + $0xc8] sm:$0xff]
        %v1796 = vld [vmem:[#allocation4 + $0xd0] sm:$0xff]
        %v1797 = vld [vmem:[#allocation4 + $0xd8] sm:$0xff]
        %v1798 = vld [vmem:[#allocation4 + $0xe0] sm:$0xff]
        %v1799 = vld [vmem:[#allocation4 + $0xe8] sm:$0xff]
        %v1800 = vld [vmem:[#allocation4 + $0xf0] sm:$0xff]
        %v1801 = vld [vmem:[#allocation4 + $0xf8] sm:$0xff]
        %v1802 = vld [vmem:[#allocation4 + $0x100] sm:$0xff]
        %v1803 = vld [vmem:[#allocation4 + $0x108] sm:$0xff]
        %v1804 = vld [vmem:[#allocation4 + $0x110] sm:$0xff]
        %v1805 = vld [vmem:[#allocation4 + $0x118] sm:$0xff]
        %v1806 = vld [vmem:[#allocation4 + $0x120] sm:$0xff]
        %v1807 = vld [vmem:[#allocation4 + $0x128] sm:$0xff]
        %v1808 = vld [vmem:[#allocation4 + $0x130] sm:$0xff]
        %v1809 = vld [vmem:[#allocation4 + $0x138] sm:$0xff]
        %v1810 = vld [vmem:[#allocation4 + $0x140] sm:$0xff]
        %v1811 = vld [vmem:[#allocation4 + $0x148] sm:$0xff]
        %v1812 = vld [vmem:[#allocation4 + $0x150] sm:$0xff]
        %v1813 = vld [vmem:[#allocation4 + $0x158] sm:$0xff]
        %v1814 = vld [vmem:[#allocation4 + $0x160] sm:$0xff]
        %v1815 = vld [vmem:[#allocation4 + $0x168] sm:$0xff]
        %v1816 = vld [vmem:[#allocation4 + $0x170] sm:$0xff]
        %v1817 = vld [vmem:[#allocation4 + $0x178] sm:$0xff]
        %v1818 = vld [vmem:[#allocation4 + $0x180] sm:$0xff]
        %v1819 = vld [vmem:[#allocation4 + $0x188] sm:$0xff]
        %v1820 = vld [vmem:[#allocation4 + $0x190] sm:$0xff]
        %v1821 = vld [vmem:[#allocation4 + $0x198] sm:$0xff]
        %v1822 = vld [vmem:[#allocation4 + $0x1a0] sm:$0xff]
        %v1823 = vld [vmem:[#allocation4 + $0x1a8] sm:$0xff]
        %v1824 = vld [vmem:[#allocation4 + $0x1b0] sm:$0xff]
        %v1825 = vld [vmem:[#allocation4 + $0x1b8] sm:$0xff]
        %v1826 = vld [vmem:[#allocation4 + $0x1c0] sm:$0xff]
        %v1827 = vld [vmem:[#allocation4 + $0x1c8] sm:$0xff]
        %v1828 = vld [vmem:[#allocation4 + $0x1d0] sm:$0xff]
        %v1829 = vld [vmem:[#allocation4 + $0x1d8] sm:$0xff]
        %v1830 = vld [vmem:[#allocation4 + $0x1e0] sm:$0xff]
        %v1831 = vld [vmem:[#allocation4 + $0x1e8] sm:$0xff]
        %v1832 = vld [vmem:[#allocation4 + $0x1f0] sm:$0xff]
        %v1833 = vld [vmem:[#allocation4 + $0x1f8] sm:$0xff]
        %v1834 = vld [vmem:[#allocation4 + $0x200] sm:$0xff]
        %v1835 = vld [vmem:[#allocation4 + $0x208] sm:$0xff]
        %v1836 = vld [vmem:[#allocation4 + $0x210] sm:$0xff]
        %v1837 = vld [vmem:[#allocation4 + $0x218] sm:$0xff]
        %v1838 = vld [vmem:[#allocation4 + $0x220] sm:$0xff]
        %v1839 = vld [vmem:[#allocation4 + $0x228] sm:$0xff]
        %v1840 = vld [vmem:[#allocation4 + $0x230] sm:$0xff]
        %v1841 = vld [vmem:[#allocation4 + $0x238] sm:$0xff]
        %v1842 = vld [vmem:[#allocation4 + $0x240] sm:$0xff]
        %v1843 = vld [vmem:[#allocation4 + $0x248] sm:$0xff]
        %v1844 = vld [vmem:[#allocation4 + $0x250] sm:$0xff]
        %v1845 = vld [vmem:[#allocation4 + $0x258] sm:$0xff]
        %v1846 = vld [vmem:[#allocation4 + $0x260] sm:$0xff]
        %v1847 = vld [vmem:[#allocation4 + $0x268] sm:$0xff]
        %v1848 = vld [vmem:[#allocation4 + $0x270] sm:$0xff]
        %v1849 = vld [vmem:[#allocation4 + $0x278] sm:$0xff]
        %v1850 = vld [vmem:[#allocation4 + $0x280] sm:$0xff]
        %v1851 = vld [vmem:[#allocation4 + $0x288] sm:$0xff]
        %v1852 = vld [vmem:[#allocation4 + $0x290] sm:$0xff]
        %v1853 = vld [vmem:[#allocation4 + $0x298] sm:$0xff]
        %v1854 = vld [vmem:[#allocation4 + $0x2a0] sm:$0xff]
        %v1855 = vld [vmem:[#allocation4 + $0x2a8] sm:$0xff]
        %v1856 = vld [vmem:[#allocation4 + $0x2b0] sm:$0xff]
        %v1857 = vld [vmem:[#allocation4 + $0x2b8] sm:$0xff]
        %v1858 = vld [vmem:[#allocation4 + $0x2c0] sm:$0xff]
        %v1859 = vld [vmem:[#allocation4 + $0x2c8] sm:$0xff]
        %v1860 = vld [vmem:[#allocation4 + $0x2d0] sm:$0xff]
        %v1861 = vld [vmem:[#allocation4 + $0x2d8] sm:$0xff]
        %v1862 = vld [vmem:[#allocation4 + $0x2e0] sm:$0xff]
        %v1863 = vld [vmem:[#allocation4 + $0x2e8] sm:$0xff]
        %v1864 = vld [vmem:[#allocation4 + $0x2f0] sm:$0xff]
        %v1865 = vld [vmem:[#allocation4 + $0x2f8] sm:$0xff]
        %v1866 = vld [vmem:[#allocation4 + $0x300] sm:$0xff]
        %v1867 = vld [vmem:[#allocation4 + $0x308] sm:$0xff]
        %v1868 = vld [vmem:[#allocation4 + $0x310] sm:$0xff]
        %v1869 = vld [vmem:[#allocation4 + $0x318] sm:$0xff]
        %v1870 = vld [vmem:[#allocation4 + $0x320] sm:$0xff]
        %v1871 = vld [vmem:[#allocation4 + $0x328] sm:$0xff]
        %v1872 = vld [vmem:[#allocation4 + $0x330] sm:$0xff]
        %v1873 = vld [vmem:[#allocation4 + $0x338] sm:$0xff]
        %v1874 = vld [vmem:[#allocation4 + $0x340] sm:$0xff]
        %v1875 = vld [vmem:[#allocation4 + $0x348] sm:$0xff]
        %v1876 = vld [vmem:[#allocation4 + $0x350] sm:$0xff]
        %v1877 = vld [vmem:[#allocation4 + $0x358] sm:$0xff]
        %v1878 = vld [vmem:[#allocation4 + $0x360] sm:$0xff]
        %v1879 = vld [vmem:[#allocation4 + $0x368] sm:$0xff]
        %v1880 = vld [vmem:[#allocation4 + $0x370] sm:$0xff]
        %v1881 = vld [vmem:[#allocation4 + $0x378] sm:$0xff]
        %v1882 = vld [vmem:[#allocation4 + $0x380] sm:$0xff]
        %v1883 = vld [vmem:[#allocation4 + $0x388] sm:$0xff]
        %v1884 = vld [vmem:[#allocation4 + $0x390] sm:$0xff]
        %v1885 = vld [vmem:[#allocation4 + $0x398] sm:$0xff]
        %v1886 = vld [vmem:[#allocation4 + $0x3a0] sm:$0xff]
        %v1887 = vld [vmem:[#allocation4 + $0x3a8] sm:$0xff]
        %v1888 = vld [vmem:[#allocation4 + $0x3b0] sm:$0xff]
        %v1889 = vld [vmem:[#allocation4 + $0x3b8] sm:$0xff]
        %v1890 = vld [vmem:[#allocation4 + $0x3c0] sm:$0xff]
        %v1891 = vld [vmem:[#allocation4 + $0x3c8] sm:$0xff]
        %v1892 = vld [vmem:[#allocation4 + $0x3d0] sm:$0xff]
        %v1893 = vld [vmem:[#allocation4 + $0x3d8] sm:$0xff]
        %v1894 = vld [vmem:[#allocation4 + $0x3e0] sm:$0xff]
        %v1895 = vld [vmem:[#allocation4 + $0x3e8] sm:$0xff]
        %v1896 = vld [vmem:[#allocation4 + $0x3f0] sm:$0xff]
        %v1897 = vld [vmem:[#allocation4 + $0x3f8] sm:$0xff]
        %v1898 = vld [vmem:[#allocation4 + $0x400] sm:$0xff]
        %v1899 = vld [vmem:[#allocation4 + $0x408] sm:$0xff]
        %v1900 = vld [vmem:[#allocation4 + $0x410] sm:$0xff]
        %v1901 = vld [vmem:[#allocation4 + $0x418] sm:$0xff]
        %v1902 = vld [vmem:[#allocation4 + $0x420] sm:$0xff]
        %v1903 = vld [vmem:[#allocation4 + $0x428] sm:$0xff]
        %v1904 = vld [vmem:[#allocation4 + $0x430] sm:$0xff]
        %v1905 = vld [vmem:[#allocation4 + $0x438] sm:$0xff]
        %v1906 = vld [vmem:[#allocation4 + $0x440] sm:$0xff]
        %v1907 = vld [vmem:[#allocation4 + $0x448] sm:$0xff]
        %v1908 = vld [vmem:[#allocation4 + $0x450] sm:$0xff]
        %v1909 = vld [vmem:[#allocation4 + $0x458] sm:$0xff]
        %v1910 = vld [vmem:[#allocation4 + $0x460] sm:$0xff]
        %v1911 = vld [vmem:[#allocation4 + $0x468] sm:$0xff]
        %v1912 = vld [vmem:[#allocation4 + $0x470] sm:$0xff]
        %v1913 = vld [vmem:[#allocation4 + $0x478] sm:$0xff]
        %v1914 = vld [vmem:[#allocation4 + $0x480] sm:$0xff]
        %v1915 = vld [vmem:[#allocation4 + $0x488] sm:$0xff]
        %v1916 = vld [vmem:[#allocation4 + $0x490] sm:$0xff]
        %v1917 = vld [vmem:[#allocation4 + $0x498] sm:$0xff]
        %v1918 = vld [vmem:[#allocation4 + $0x4a0] sm:$0xff]
        %v1919 = vld [vmem:[#allocation4 + $0x4a8] sm:$0xff]
        %v1920 = vld [vmem:[#allocation4 + $0x4b0] sm:$0xff]
        %v1921 = vld [vmem:[#allocation4 + $0x4b8] sm:$0xff]
        %v1922 = vld [vmem:[#allocation4 + $0x4c0] sm:$0xff]
        %v1923 = vld [vmem:[#allocation4 + $0x4c8] sm:$0xff]
        %v1924 = vld [vmem:[#allocation4 + $0x4d0] sm:$0xff]
        %v1925 = vld [vmem:[#allocation4 + $0x4d8] sm:$0xff]
        %v1926 = vld [vmem:[#allocation4 + $0x4e0] sm:$0xff]
        %v1927 = vld [vmem:[#allocation4 + $0x4e8] sm:$0xff]
        %v1928 = vld [vmem:[#allocation4 + $0x4f0] sm:$0xff]
        %v1929 = vld [vmem:[#allocation4 + $0x4f8] sm:$0xff]
        %v1930 = vld [vmem:[%s4] sm:$0x3]
        %v1932 = vlaneseq
        %v1933 = vshrl.u32 %v1932, 7
        %v1934 = vsub.s32 0, %v1933
        %v1935 = vrot.slane %v1930, %v1934
        %v1936 = vlaneseq
        %v1937 = vshrl.u32 %v1936, 7
        %v1938 = vsub.s32 1, %v1937
        %v1939 = vrot.slane %v1930, %v1938
        %1942 = vmatprep.subr.mxu0 %v1801
        %1943 = vmatpush1.msra.mxu0 %v1800
        %1944 = vmatprep.subr.mxu0 %v1799
        %1945 = vmatpush1.msra.mxu0 %v1798
        %1946 = vmatprep.subr.mxu0 %v1797
        %1947 = vmatpush1.msra.mxu0 %v1796
        %1948 = vmatprep.subr.mxu0 %v1795
        %1949 = vmatpush1.msra.mxu0 %v1794
        %1950 = vmatprep.subr.mxu0 %v1793
        %1951 = vmatpush1.msra.mxu0 %v1792
        %1952 = vmatprep.subr.mxu0 %v1791
        %1953 = vmatpush1.msra.mxu0 %v1790
        %1954 = vmatprep.subr.mxu0 %v1789
        %1955 = vmatpush1.msra.mxu0 %v1788
        %1956 = vmatprep.subr.mxu0 %v1787
        %1957 = vmatpush1.msra.mxu0 %v1786
        %1958 = vmatprep.subr.mxu0 %v1785
        %1959 = vmatpush1.msra.mxu0 %v1784
        %1960 = vmatprep.subr.mxu0 %v1783
        %1961 = vmatpush1.msra.mxu0 %v1782
        %1962 = vmatprep.subr.mxu0 %v1781
        %1963 = vmatpush1.msra.mxu0 %v1780
        %1964 = vmatprep.subr.mxu0 %v1779
        %1965 = vmatpush1.msra.mxu0 %v1778
        %1966 = vmatprep.subr.mxu0 %v1777
        %1967 = vmatpush1.msra.mxu0 %v1776
        %1968 = vmatprep.subr.mxu0 %v1775
        %1969 = vmatpush1.msra.mxu0 %v1774
        %1970 = vmatprep.subr.mxu0 %v1773
        %1971 = vmatpush1.msra.mxu0 %v1772
        %1972 = vmatprep.subr.mxu0 %v1771
        %1973 = vmatpush1.msra.mxu0 %v1770
        %1974 = vmatprep.subr.mxu0 %v1833
        %1975 = vmatpush2.msra.mxu0 %v1832
        %1976 = vmatprep.subr.mxu0 %v1831
        %1977 = vmatpush2.msra.mxu0 %v1830
        %1978 = vmatprep.subr.mxu0 %v1829
        %1979 = vmatpush2.msra.mxu0 %v1828
        %1980 = vmatprep.subr.mxu0 %v1827
        %1981 = vmatpush2.msra.mxu0 %v1826
        %1982 = vmatprep.subr.mxu0 %v1825
        %1983 = vmatpush2.msra.mxu0 %v1824
        %1984 = vmatprep.subr.mxu0 %v1823
        %1985 = vmatpush2.msra.mxu0 %v1822
        %1986 = vmatprep.subr.mxu0 %v1821
        %1987 = vmatpush2.msra.mxu0 %v1820
        %1988 = vmatprep.subr.mxu0 %v1819
        %1989 = vmatpush2.msra.mxu0 %v1818
        %1990 = vmatprep.subr.mxu0 %v1817
        %1991 = vmatpush2.msra.mxu0 %v1816
        %1992 = vmatprep.subr.mxu0 %v1815
        %1993 = vmatpush2.msra.mxu0 %v1814
        %1994 = vmatprep.subr.mxu0 %v1813
        %1995 = vmatpush2.msra.mxu0 %v1812
        %1996 = vmatprep.subr.mxu0 %v1811
        %1997 = vmatpush2.msra.mxu0 %v1810
        %1998 = vmatprep.subr.mxu0 %v1809
        %1999 = vmatpush2.msra.mxu0 %v1808
        %2000 = vmatprep.subr.mxu0 %v1807
        %2001 = vmatpush2.msra.mxu0 %v1806
        %2002 = vmatprep.subr.mxu0 %v1805
        %2003 = vmatpush2.msra.mxu0 %v1804
        %2004 = vmatprep.subr.mxu0 %v1803
        %2005 = vmatpush2.msra.mxu0 %v1802
        %2006 = vmatprep.mubr.f32.mxu0 %v1611
        %2007 = vmatmul.mubr.f32.gmra.mxu0 %v1610
        %v2008 = vpop.f32.mrf.mxu0
        %v2009 = vadd.f32 %v1935, %v2008
        %v2010 = vpop.f32.mrf.mxu0
        %v2011 = vadd.f32 %v1939, %v2010
        %2012 = vmatprep.mubr.f32.mxu0 %v1616
        %2013 = vmatmul.mubr.f32.gmra.mxu0 %v1615
        %v2014 = vpop.f32.mrf.mxu0
        %v2015 = vadd.f32 %v1935, %v2014
        %v2016 = vpop.f32.mrf.mxu0
        %v2017 = vadd.f32 %v1939, %v2016
        %2018 = vmatprep.mubr.f32.mxu0 %v1621
        %2019 = vmatmul.mubr.f32.gmra.mxu0 %v1620
        %v2020 = vpop.f32.mrf.mxu0
        %v2021 = vadd.f32 %v1935, %v2020
        %v2022 = vpop.f32.mrf.mxu0
        %v2023 = vadd.f32 %v1939, %v2022
        %2024 = vmatprep.mubr.f32.mxu0 %v1626
        %2025 = vmatmul.mubr.f32.gmra.mxu0 %v1625
        %v2026 = vpop.f32.mrf.mxu0
        %v2027 = vadd.f32 %v1935, %v2026
        %v2028 = vpop.f32.mrf.mxu0
        %v2029 = vadd.f32 %v1939, %v2028
        %2030 = vmatprep.mubr.f32.mxu0 %v1631
        %2031 = vmatmul.mubr.f32.gmra.mxu0 %v1630
        %v2032 = vpop.f32.mrf.mxu0
        %v2033 = vadd.f32 %v1935, %v2032
        %v2034 = vpop.f32.mrf.mxu0
        %v2035 = vadd.f32 %v1939, %v2034
        %2036 = vmatprep.mubr.f32.mxu0 %v1636
        %2037 = vmatmul.mubr.f32.gmra.mxu0 %v1635
        %v2038 = vpop.f32.mrf.mxu0
        %v2039 = vadd.f32 %v1935, %v2038
        %v2040 = vpop.f32.mrf.mxu0
        %v2041 = vadd.f32 %v1939, %v2040
        %2042 = vmatprep.mubr.f32.mxu0 %v1641
        %2043 = vmatmul.mubr.f32.gmra.mxu0 %v1640
        %v2044 = vpop.f32.mrf.mxu0
        %v2045 = vadd.f32 %v1935, %v2044
        %v2046 = vpop.f32.mrf.mxu0
        %v2047 = vadd.f32 %v1939, %v2046
        %2048 = vmatprep.mubr.f32.mxu0 %v1646
        %2049 = vmatmul.mubr.f32.gmra.mxu0 %v1645
        %v2050 = vpop.f32.mrf.mxu0
        %v2051 = vadd.f32 %v1935, %v2050
        %v2052 = vpop.f32.mrf.mxu0
        %v2053 = vadd.f32 %v1939, %v2052
        %2054 = vmatprep.mubr.f32.mxu0 %v1651
        %2055 = vmatmul.mubr.f32.gmra.mxu0 %v1650
        %v2056 = vpop.f32.mrf.mxu0
        %v2057 = vadd.f32 %v1935, %v2056
        %v2058 = vpop.f32.mrf.mxu0
        %v2059 = vadd.f32 %v1939, %v2058
        %2060 = vmatprep.mubr.f32.mxu0 %v1656
        %2061 = vmatmul.mubr.f32.gmra.mxu0 %v1655
        %v2062 = vpop.f32.mrf.mxu0
        %v2063 = vadd.f32 %v1935, %v2062
        %v2064 = vpop.f32.mrf.mxu0
        %v2065 = vadd.f32 %v1939, %v2064
        %2066 = vmatprep.mubr.f32.mxu0 %v1661
        %2067 = vmatmul.mubr.f32.gmra.mxu0 %v1660
        %v2068 = vpop.f32.mrf.mxu0
        %v2069 = vadd.f32 %v1935, %v2068
        %v2070 = vpop.f32.mrf.mxu0
        %v2071 = vadd.f32 %v1939, %v2070
        %2072 = vmatprep.mubr.f32.mxu0 %v1666
        %2073 = vmatmul.mubr.f32.gmra.mxu0 %v1665
        %v2074 = vpop.f32.mrf.mxu0
        %v2075 = vadd.f32 %v1935, %v2074
        %v2076 = vpop.f32.mrf.mxu0
        %v2077 = vadd.f32 %v1939, %v2076
        %2078 = vmatprep.mubr.f32.mxu0 %v1671
        %2079 = vmatmul.mubr.f32.gmra.mxu0 %v1670
        %v2080 = vpop.f32.mrf.mxu0
        %v2081 = vadd.f32 %v1935, %v2080
        %v2082 = vpop.f32.mrf.mxu0
        %v2083 = vadd.f32 %v1939, %v2082
        %2084 = vmatprep.mubr.f32.mxu0 %v1676
        %2085 = vmatmul.mubr.f32.gmra.mxu0 %v1675
        %v2086 = vpop.f32.mrf.mxu0
        %v2087 = vadd.f32 %v1935, %v2086
        %v2088 = vpop.f32.mrf.mxu0
        %v2089 = vadd.f32 %v1939, %v2088
        %2090 = vmatprep.mubr.f32.mxu0 %v1681
        %2091 = vmatmul.mubr.f32.gmra.mxu0 %v1680
        %v2092 = vpop.f32.mrf.mxu0
        %v2093 = vadd.f32 %v1935, %v2092
        %v2094 = vpop.f32.mrf.mxu0
        %v2095 = vadd.f32 %v1939, %v2094
        %2096 = vmatprep.mubr.f32.mxu0 %v1686
        %2097 = vmatmul.mubr.f32.gmra.mxu0 %v1685
        %v2098 = vpop.f32.mrf.mxu0
        %v2099 = vadd.f32 %v1935, %v2098
        %v2100 = vpop.f32.mrf.mxu0
        %v2101 = vadd.f32 %v1939, %v2100
        %2102 = vmatprep.mubr.f32.mxu0 %v1691
        %2103 = vmatmul.mubr.f32.gmra.mxu0 %v1690
        %v2104 = vpop.f32.mrf.mxu0
        %v2105 = vadd.f32 %v1935, %v2104
        %v2106 = vpop.f32.mrf.mxu0
        %v2107 = vadd.f32 %v1939, %v2106
        %2108 = vmatprep.mubr.f32.mxu0 %v1696
        %2109 = vmatmul.mubr.f32.gmra.mxu0 %v1695
        %v2110 = vpop.f32.mrf.mxu0
        %v2111 = vadd.f32 %v1935, %v2110
        %v2112 = vpop.f32.mrf.mxu0
        %v2113 = vadd.f32 %v1939, %v2112
        %2114 = vmatprep.mubr.f32.mxu0 %v1701
        %2115 = vmatmul.mubr.f32.gmra.mxu0 %v1700
        %v2116 = vpop.f32.mrf.mxu0
        %v2117 = vadd.f32 %v1935, %v2116
        %v2118 = vpop.f32.mrf.mxu0
        %v2119 = vadd.f32 %v1939, %v2118
        %2120 = vmatprep.mubr.f32.mxu0 %v1706
        %2121 = vmatmul.mubr.f32.gmra.mxu0 %v1705
        %v2122 = vpop.f32.mrf.mxu0
        %v2123 = vadd.f32 %v1935, %v2122
        %v2124 = vpop.f32.mrf.mxu0
        %v2125 = vadd.f32 %v1939, %v2124
        %2126 = vmatprep.mubr.f32.mxu0 %v1711
        %2127 = vmatmul.mubr.f32.gmra.mxu0 %v1710
        %v2128 = vpop.f32.mrf.mxu0
        %v2129 = vadd.f32 %v1935, %v2128
        %v2130 = vpop.f32.mrf.mxu0
        %v2131 = vadd.f32 %v1939, %v2130
        %2132 = vmatprep.mubr.f32.mxu0 %v1716
        %2133 = vmatmul.mubr.f32.gmra.mxu0 %v1715
        %v2134 = vpop.f32.mrf.mxu0
        %v2135 = vadd.f32 %v1935, %v2134
        %v2136 = vpop.f32.mrf.mxu0
        %v2137 = vadd.f32 %v1939, %v2136
        %2138 = vmatprep.mubr.f32.mxu0 %v1721
        %2139 = vmatmul.mubr.f32.gmra.mxu0 %v1720
        %v2140 = vpop.f32.mrf.mxu0
        %v2141 = vadd.f32 %v1935, %v2140
        %v2142 = vpop.f32.mrf.mxu0
        %v2143 = vadd.f32 %v1939, %v2142
        %2144 = vmatprep.mubr.f32.mxu0 %v1726
        %2145 = vmatmul.mubr.f32.gmra.mxu0 %v1725
        %v2146 = vpop.f32.mrf.mxu0
        %v2147 = vadd.f32 %v1935, %v2146
        %v2148 = vpop.f32.mrf.mxu0
        %v2149 = vadd.f32 %v1939, %v2148
        %2150 = vmatprep.mubr.f32.mxu0 %v1731
        %2151 = vmatmul.mubr.f32.gmra.mxu0 %v1730
        %v2152 = vpop.f32.mrf.mxu0
        %v2153 = vadd.f32 %v1935, %v2152
        %v2154 = vpop.f32.mrf.mxu0
        %v2155 = vadd.f32 %v1939, %v2154
        %2156 = vmatprep.mubr.f32.mxu0 %v1736
        %2157 = vmatmul.mubr.f32.gmra.mxu0 %v1735
        %v2158 = vpop.f32.mrf.mxu0
        %v2159 = vadd.f32 %v1935, %v2158
        %v2160 = vpop.f32.mrf.mxu0
        %v2161 = vadd.f32 %v1939, %v2160
        %2162 = vmatprep.mubr.f32.mxu0 %v1741
        %2163 = vmatmul.mubr.f32.gmra.mxu0 %v1740
        %v2164 = vpop.f32.mrf.mxu0
        %v2165 = vadd.f32 %v1935, %v2164
        %v2166 = vpop.f32.mrf.mxu0
        %v2167 = vadd.f32 %v1939, %v2166
        %2168 = vmatprep.mubr.f32.mxu0 %v1746
        %2169 = vmatmul.mubr.f32.gmra.mxu0 %v1745
        %v2170 = vpop.f32.mrf.mxu0
        %v2171 = vadd.f32 %v1935, %v2170
        %v2172 = vpop.f32.mrf.mxu0
        %v2173 = vadd.f32 %v1939, %v2172
        %2174 = vmatprep.mubr.f32.mxu0 %v1751
        %2175 = vmatmul.mubr.f32.gmra.mxu0 %v1750
        %v2176 = vpop.f32.mrf.mxu0
        %v2177 = vadd.f32 %v1935, %v2176
        %v2178 = vpop.f32.mrf.mxu0
        %v2179 = vadd.f32 %v1939, %v2178
        %2180 = vmatprep.mubr.f32.mxu0 %v1756
        %2181 = vmatmul.mubr.f32.gmra.mxu0 %v1755
        %v2182 = vpop.f32.mrf.mxu0
        %v2183 = vadd.f32 %v1935, %v2182
        %v2184 = vpop.f32.mrf.mxu0
        %v2185 = vadd.f32 %v1939, %v2184
        %2186 = vmatprep.mubr.f32.mxu0 %v1761
        %2187 = vmatmul.mubr.f32.gmra.mxu0 %v1760
        %v2188 = vpop.f32.mrf.mxu0
        %v2189 = vadd.f32 %v1935, %v2188
        %v2190 = vpop.f32.mrf.mxu0
        %v2191 = vadd.f32 %v1939, %v2190
        %2192 = vmatprep.mubr.f32.mxu0 %v1766
        %2193 = vmatmul.mubr.f32.gmra.mxu0 %v1765
        %v2194 = vpop.f32.mrf.mxu0
        %v2195 = vadd.f32 %v1935, %v2194
        %v2196 = vpop.f32.mrf.mxu0
        %v2197 = vadd.f32 %v1939, %v2196
        %2198 = vdwg.mxu0
        %2199 = vmatprep.subr.mxu0 %v1865
        %2200 = vmatpush1.msra.mxu0 %v1864
        %2201 = vmatprep.subr.mxu0 %v1863
        %2202 = vmatpush1.msra.mxu0 %v1862
        %2203 = vmatprep.subr.mxu0 %v1861
        %2204 = vmatpush1.msra.mxu0 %v1860
        %2205 = vmatprep.subr.mxu0 %v1859
        %2206 = vmatpush1.msra.mxu0 %v1858
        %2207 = vmatprep.subr.mxu0 %v1857
        %2208 = vmatpush1.msra.mxu0 %v1856
        %2209 = vmatprep.subr.mxu0 %v1855
        %2210 = vmatpush1.msra.mxu0 %v1854
        %2211 = vmatprep.subr.mxu0 %v1853
        %2212 = vmatpush1.msra.mxu0 %v1852
        %2213 = vmatprep.subr.mxu0 %v1851
        %2214 = vmatpush1.msra.mxu0 %v1850
        %2215 = vmatprep.subr.mxu0 %v1849
        %2216 = vmatpush1.msra.mxu0 %v1848
        %2217 = vmatprep.subr.mxu0 %v1847
        %2218 = vmatpush1.msra.mxu0 %v1846
        %2219 = vmatprep.subr.mxu0 %v1845
        %2220 = vmatpush1.msra.mxu0 %v1844
        %2221 = vmatprep.subr.mxu0 %v1843
        %2222 = vmatpush1.msra.mxu0 %v1842
        %2223 = vmatprep.subr.mxu0 %v1841
        %2224 = vmatpush1.msra.mxu0 %v1840
        %2225 = vmatprep.subr.mxu0 %v1839
        %2226 = vmatpush1.msra.mxu0 %v1838
        %2227 = vmatprep.subr.mxu0 %v1837
        %2228 = vmatpush1.msra.mxu0 %v1836
        %2229 = vmatprep.subr.mxu0 %v1835
        %2230 = vmatpush1.msra.mxu0 %v1834
        %2231 = vmatprep.subr.mxu0 %v1897
        %2232 = vmatpush2.msra.mxu0 %v1896
        %2233 = vmatprep.subr.mxu0 %v1895
        %2234 = vmatpush2.msra.mxu0 %v1894
        %2235 = vmatprep.subr.mxu0 %v1893
        %2236 = vmatpush2.msra.mxu0 %v1892
        %2237 = vmatprep.subr.mxu0 %v1891
        %2238 = vmatpush2.msra.mxu0 %v1890
        %2239 = vmatprep.subr.mxu0 %v1889
        %2240 = vmatpush2.msra.mxu0 %v1888
        %2241 = vmatprep.subr.mxu0 %v1887
        %2242 = vmatpush2.msra.mxu0 %v1886
        %2243 = vmatprep.subr.mxu0 %v1885
        %2244 = vmatpush2.msra.mxu0 %v1884
        %2245 = vmatprep.subr.mxu0 %v1883
        %2246 = vmatpush2.msra.mxu0 %v1882
        %2247 = vmatprep.subr.mxu0 %v1881
        %2248 = vmatpush2.msra.mxu0 %v1880
        %2249 = vmatprep.subr.mxu0 %v1879
        %2250 = vmatpush2.msra.mxu0 %v1878
        %2251 = vmatprep.subr.mxu0 %v1877
        %2252 = vmatpush2.msra.mxu0 %v1876
        %2253 = vmatprep.subr.mxu0 %v1875
        %2254 = vmatpush2.msra.mxu0 %v1874
        %2255 = vmatprep.subr.mxu0 %v1873
        %2256 = vmatpush2.msra.mxu0 %v1872
        %2257 = vmatprep.subr.mxu0 %v1871
        %2258 = vmatpush2.msra.mxu0 %v1870
        %2259 = vmatprep.subr.mxu0 %v1869
        %2260 = vmatpush2.msra.mxu0 %v1868
        %2261 = vmatprep.subr.mxu0 %v1867
        %2262 = vmatpush2.msra.mxu0 %v1866
        %2263 = vmatprep.mubr.f32.mxu0 %v1613
        %2264 = vmatmul.mubr.f32.gmra.mxu0 %v1612
        %v2265 = vpop.f32.mrf.mxu0
        %v2266 = vadd.f32 %v2009, %v2265
        %v2267 = vpop.f32.mrf.mxu0
        %v2268 = vadd.f32 %v2011, %v2267
        %2269 = vmatprep.mubr.f32.mxu0 %v1618
        %2270 = vmatmul.mubr.f32.gmra.mxu0 %v1617
        %v2271 = vpop.f32.mrf.mxu0
        %v2272 = vadd.f32 %v2015, %v2271
        %v2273 = vpop.f32.mrf.mxu0
        %v2274 = vadd.f32 %v2017, %v2273
        %2275 = vmatprep.mubr.f32.mxu0 %v1623
        %2276 = vmatmul.mubr.f32.gmra.mxu0 %v1622
        %v2277 = vpop.f32.mrf.mxu0
        %v2278 = vadd.f32 %v2021, %v2277
        %v2279 = vpop.f32.mrf.mxu0
        %v2280 = vadd.f32 %v2023, %v2279
        %2281 = vmatprep.mubr.f32.mxu0 %v1628
        %2282 = vmatmul.mubr.f32.gmra.mxu0 %v1627
        %v2283 = vpop.f32.mrf.mxu0
        %v2284 = vadd.f32 %v2027, %v2283
        %v2285 = vpop.f32.mrf.mxu0
        %v2286 = vadd.f32 %v2029, %v2285
        %2287 = vmatprep.mubr.f32.mxu0 %v1633
        %2288 = vmatmul.mubr.f32.gmra.mxu0 %v1632
        %v2289 = vpop.f32.mrf.mxu0
        %v2290 = vadd.f32 %v2033, %v2289
        %v2291 = vpop.f32.mrf.mxu0
        %v2292 = vadd.f32 %v2035, %v2291
        %2293 = vmatprep.mubr.f32.mxu0 %v1638
        %2294 = vmatmul.mubr.f32.gmra.mxu0 %v1637
        %v2295 = vpop.f32.mrf.mxu0
        %v2296 = vadd.f32 %v2039, %v2295
        %v2297 = vpop.f32.mrf.mxu0
        %v2298 = vadd.f32 %v2041, %v2297
        %2299 = vmatprep.mubr.f32.mxu0 %v1643
        %2300 = vmatmul.mubr.f32.gmra.mxu0 %v1642
        %v2301 = vpop.f32.mrf.mxu0
        %v2302 = vadd.f32 %v2045, %v2301
        %v2303 = vpop.f32.mrf.mxu0
        %v2304 = vadd.f32 %v2047, %v2303
        %2305 = vmatprep.mubr.f32.mxu0 %v1648
        %2306 = vmatmul.mubr.f32.gmra.mxu0 %v1647
        %v2307 = vpop.f32.mrf.mxu0
        %v2308 = vadd.f32 %v2051, %v2307
        %v2309 = vpop.f32.mrf.mxu0
        %v2310 = vadd.f32 %v2053, %v2309
        %2311 = vmatprep.mubr.f32.mxu0 %v1653
        %2312 = vmatmul.mubr.f32.gmra.mxu0 %v1652
        %v2313 = vpop.f32.mrf.mxu0
        %v2314 = vadd.f32 %v2057, %v2313
        %v2315 = vpop.f32.mrf.mxu0
        %v2316 = vadd.f32 %v2059, %v2315
        %2317 = vmatprep.mubr.f32.mxu0 %v1658
        %2318 = vmatmul.mubr.f32.gmra.mxu0 %v1657
        %v2319 = vpop.f32.mrf.mxu0
        %v2320 = vadd.f32 %v2063, %v2319
        %v2321 = vpop.f32.mrf.mxu0
        %v2322 = vadd.f32 %v2065, %v2321
        %2323 = vmatprep.mubr.f32.mxu0 %v1663
        %2324 = vmatmul.mubr.f32.gmra.mxu0 %v1662
        %v2325 = vpop.f32.mrf.mxu0
        %v2326 = vadd.f32 %v2069, %v2325
        %v2327 = vpop.f32.mrf.mxu0
        %v2328 = vadd.f32 %v2071, %v2327
        %2329 = vmatprep.mubr.f32.mxu0 %v1668
        %2330 = vmatmul.mubr.f32.gmra.mxu0 %v1667
        %v2331 = vpop.f32.mrf.mxu0
        %v2332 = vadd.f32 %v2075, %v2331
        %v2333 = vpop.f32.mrf.mxu0
        %v2334 = vadd.f32 %v2077, %v2333
        %2335 = vmatprep.mubr.f32.mxu0 %v1673
        %2336 = vmatmul.mubr.f32.gmra.mxu0 %v1672
        %v2337 = vpop.f32.mrf.mxu0
        %v2338 = vadd.f32 %v2081, %v2337
        %v2339 = vpop.f32.mrf.mxu0
        %v2340 = vadd.f32 %v2083, %v2339
        %2341 = vmatprep.mubr.f32.mxu0 %v1678
        %2342 = vmatmul.mubr.f32.gmra.mxu0 %v1677
        %v2343 = vpop.f32.mrf.mxu0
        %v2344 = vadd.f32 %v2087, %v2343
        %v2345 = vpop.f32.mrf.mxu0
        %v2346 = vadd.f32 %v2089, %v2345
        %2347 = vmatprep.mubr.f32.mxu0 %v1683
        %2348 = vmatmul.mubr.f32.gmra.mxu0 %v1682
        %v2349 = vpop.f32.mrf.mxu0
        %v2350 = vadd.f32 %v2093, %v2349
        %v2351 = vpop.f32.mrf.mxu0
        %v2352 = vadd.f32 %v2095, %v2351
        %2353 = vmatprep.mubr.f32.mxu0 %v1688
        %2354 = vmatmul.mubr.f32.gmra.mxu0 %v1687
        %v2355 = vpop.f32.mrf.mxu0
        %v2356 = vadd.f32 %v2099, %v2355
        %v2357 = vpop.f32.mrf.mxu0
        %v2358 = vadd.f32 %v2101, %v2357
        %2359 = vmatprep.mubr.f32.mxu0 %v1693
        %2360 = vmatmul.mubr.f32.gmra.mxu0 %v1692
        %v2361 = vpop.f32.mrf.mxu0
        %v2362 = vadd.f32 %v2105, %v2361
        %v2363 = vpop.f32.mrf.mxu0
        %v2364 = vadd.f32 %v2107, %v2363
        %2365 = vmatprep.mubr.f32.mxu0 %v1698
        %2366 = vmatmul.mubr.f32.gmra.mxu0 %v1697
        %v2367 = vpop.f32.mrf.mxu0
        %v2368 = vadd.f32 %v2111, %v2367
        %v2369 = vpop.f32.mrf.mxu0
        %v2370 = vadd.f32 %v2113, %v2369
        %2371 = vmatprep.mubr.f32.mxu0 %v1703
        %2372 = vmatmul.mubr.f32.gmra.mxu0 %v1702
        %v2373 = vpop.f32.mrf.mxu0
        %v2374 = vadd.f32 %v2117, %v2373
        %v2375 = vpop.f32.mrf.mxu0
        %v2376 = vadd.f32 %v2119, %v2375
        %2377 = vmatprep.mubr.f32.mxu0 %v1708
        %2378 = vmatmul.mubr.f32.gmra.mxu0 %v1707
        %v2379 = vpop.f32.mrf.mxu0
        %v2380 = vadd.f32 %v2123, %v2379
        %v2381 = vpop.f32.mrf.mxu0
        %v2382 = vadd.f32 %v2125, %v2381
        %2383 = vmatprep.mubr.f32.mxu0 %v1713
        %2384 = vmatmul.mubr.f32.gmra.mxu0 %v1712
        %v2385 = vpop.f32.mrf.mxu0
        %v2386 = vadd.f32 %v2129, %v2385
        %v2387 = vpop.f32.mrf.mxu0
        %v2388 = vadd.f32 %v2131, %v2387
        %2389 = vmatprep.mubr.f32.mxu0 %v1718
        %2390 = vmatmul.mubr.f32.gmra.mxu0 %v1717
        %v2391 = vpop.f32.mrf.mxu0
        %v2392 = vadd.f32 %v2135, %v2391
        %v2393 = vpop.f32.mrf.mxu0
        %v2394 = vadd.f32 %v2137, %v2393
        %2395 = vmatprep.mubr.f32.mxu0 %v1723
        %2396 = vmatmul.mubr.f32.gmra.mxu0 %v1722
        %v2397 = vpop.f32.mrf.mxu0
        %v2398 = vadd.f32 %v2141, %v2397
        %v2399 = vpop.f32.mrf.mxu0
        %v2400 = vadd.f32 %v2143, %v2399
        %2401 = vmatprep.mubr.f32.mxu0 %v1728
        %2402 = vmatmul.mubr.f32.gmra.mxu0 %v1727
        %v2403 = vpop.f32.mrf.mxu0
        %v2404 = vadd.f32 %v2147, %v2403
        %v2405 = vpop.f32.mrf.mxu0
        %v2406 = vadd.f32 %v2149, %v2405
        %2407 = vmatprep.mubr.f32.mxu0 %v1733
        %2408 = vmatmul.mubr.f32.gmra.mxu0 %v1732
        %v2409 = vpop.f32.mrf.mxu0
        %v2410 = vadd.f32 %v2153, %v2409
        %v2411 = vpop.f32.mrf.mxu0
        %v2412 = vadd.f32 %v2155, %v2411
        %2413 = vmatprep.mubr.f32.mxu0 %v1738
        %2414 = vmatmul.mubr.f32.gmra.mxu0 %v1737
        %v2415 = vpop.f32.mrf.mxu0
        %v2416 = vadd.f32 %v2159, %v2415
        %v2417 = vpop.f32.mrf.mxu0
        %v2418 = vadd.f32 %v2161, %v2417
        %2419 = vmatprep.mubr.f32.mxu0 %v1743
        %2420 = vmatmul.mubr.f32.gmra.mxu0 %v1742
        %v2421 = vpop.f32.mrf.mxu0
        %v2422 = vadd.f32 %v2165, %v2421
        %v2423 = vpop.f32.mrf.mxu0
        %v2424 = vadd.f32 %v2167, %v2423
        %2425 = vmatprep.mubr.f32.mxu0 %v1748
        %2426 = vmatmul.mubr.f32.gmra.mxu0 %v1747
        %v2427 = vpop.f32.mrf.mxu0
        %v2428 = vadd.f32 %v2171, %v2427
        %v2429 = vpop.f32.mrf.mxu0
        %v2430 = vadd.f32 %v2173, %v2429
        %2431 = vmatprep.mubr.f32.mxu0 %v1753
        %2432 = vmatmul.mubr.f32.gmra.mxu0 %v1752
        %v2433 = vpop.f32.mrf.mxu0
        %v2434 = vadd.f32 %v2177, %v2433
        %v2435 = vpop.f32.mrf.mxu0
        %v2436 = vadd.f32 %v2179, %v2435
        %2437 = vmatprep.mubr.f32.mxu0 %v1758
        %2438 = vmatmul.mubr.f32.gmra.mxu0 %v1757
        %v2439 = vpop.f32.mrf.mxu0
        %v2440 = vadd.f32 %v2183, %v2439
        %v2441 = vpop.f32.mrf.mxu0
        %v2442 = vadd.f32 %v2185, %v2441
        %2443 = vmatprep.mubr.f32.mxu0 %v1763
        %2444 = vmatmul.mubr.f32.gmra.mxu0 %v1762
        %v2445 = vpop.f32.mrf.mxu0
        %v2446 = vadd.f32 %v2189, %v2445
        %v2447 = vpop.f32.mrf.mxu0
        %v2448 = vadd.f32 %v2191, %v2447
        %2449 = vmatprep.mubr.f32.mxu0 %v1768
        %2450 = vmatmul.mubr.f32.gmra.mxu0 %v1767
        %v2451 = vpop.f32.mrf.mxu0
        %v2452 = vadd.f32 %v2195, %v2451
        %v2453 = vpop.f32.mrf.mxu0
        %v2454 = vadd.f32 %v2197, %v2453
        %2455 = vdwg.mxu0
        %2456 = vmatprep.subr.mxu0 %v1929
        %2457 = vmatpush1.msra.mxu0 %v1928
        %2458 = vmatprep.subr.mxu0 %v1927
        %2459 = vmatpush1.msra.mxu0 %v1926
        %2460 = vmatprep.subr.mxu0 %v1925
        %2461 = vmatpush1.msra.mxu0 %v1924
        %2462 = vmatprep.subr.mxu0 %v1923
        %2463 = vmatpush1.msra.mxu0 %v1922
        %2464 = vmatprep.subr.mxu0 %v1921
        %2465 = vmatpush1.msra.mxu0 %v1920
        %2466 = vmatprep.subr.mxu0 %v1919
        %2467 = vmatpush1.msra.mxu0 %v1918
        %2468 = vmatprep.subr.mxu0 %v1917
        %2469 = vmatpush1.msra.mxu0 %v1916
        %2470 = vmatprep.subr.mxu0 %v1915
        %2471 = vmatpush1.msra.mxu0 %v1914
        %2472 = vmatprep.subr.mxu0 %v1913
        %2473 = vmatpush1.msra.mxu0 %v1912
        %2474 = vmatprep.subr.mxu0 %v1911
        %2475 = vmatpush1.msra.mxu0 %v1910
        %2476 = vmatprep.subr.mxu0 %v1909
        %2477 = vmatpush1.msra.mxu0 %v1908
        %2478 = vmatprep.subr.mxu0 %v1907
        %2479 = vmatpush1.msra.mxu0 %v1906
        %2480 = vmatprep.subr.mxu0 %v1905
        %2481 = vmatpush1.msra.mxu0 %v1904
        %2482 = vmatprep.subr.mxu0 %v1903
        %2483 = vmatpush1.msra.mxu0 %v1902
        %2484 = vmatprep.subr.mxu0 %v1901
        %2485 = vmatpush1.msra.mxu0 %v1900
        %2486 = vmatprep.subr.mxu0 %v1899
        %2487 = vmatpush1.msra.mxu0 %v1898
        %2488 = vmatprep.subr.mxu0 0.0
        %2489 = vmatpush2.msra.mxu0 0.0
        %2490 = vmatprep.subr.mxu0 0.0
        %2491 = vmatpush2.msra.mxu0 0.0
        %2492 = vmatprep.subr.mxu0 0.0
        %2493 = vmatpush2.msra.mxu0 0.0
        %2494 = vmatprep.subr.mxu0 0.0
        %2495 = vmatpush2.msra.mxu0 0.0
        %2496 = vmatprep.subr.mxu0 0.0
        %2497 = vmatpush2.msra.mxu0 0.0
        %2498 = vmatprep.subr.mxu0 0.0
        %2499 = vmatpush2.msra.mxu0 0.0
        %2500 = vmatprep.subr.mxu0 0.0
        %2501 = vmatpush2.msra.mxu0 0.0
        %2502 = vmatprep.subr.mxu0 0.0
        %2503 = vmatpush2.msra.mxu0 0.0
        %2504 = vmatprep.subr.mxu0 0.0
        %2505 = vmatpush2.msra.mxu0 0.0
        %2506 = vmatprep.subr.mxu0 0.0
        %2507 = vmatpush2.msra.mxu0 0.0
        %2508 = vmatprep.subr.mxu0 0.0
        %2509 = vmatpush2.msra.mxu0 0.0
        %2510 = vmatprep.subr.mxu0 0.0
        %2511 = vmatpush2.msra.mxu0 0.0
        %2512 = vmatprep.subr.mxu0 0.0
        %2513 = vmatpush2.msra.mxu0 0.0
        %2514 = vmatprep.subr.mxu0 0.0
        %2515 = vmatpush2.msra.mxu0 0.0
        %2516 = vmatprep.subr.mxu0 0.0
        %2517 = vmatpush2.msra.mxu0 0.0
        %2518 = vmatprep.subr.mxu0 0.0
        %2519 = vmatpush2.msra.mxu0 0.0
        %2520 = vmatprep.mubr.f32.mxu0 0.0
        %2521 = vmatmul.mubr.f32.gmra.mxu0 %v1614
        %v2522 = vpop.f32.mrf.mxu0
        %v2523 = vadd.f32 %v2266, %v2522
        %v2524 = vpop.f32.mrf.mxu0
        %v2525 = vadd.f32 %v2268, %v2524
        %2526 = vmatprep.mubr.f32.mxu0 0.0
        %2527 = vmatmul.mubr.f32.gmra.mxu0 %v1619
        %v2528 = vpop.f32.mrf.mxu0
        %v2529 = vadd.f32 %v2272, %v2528
        %v2530 = vpop.f32.mrf.mxu0
        %v2531 = vadd.f32 %v2274, %v2530
        %2532 = vmatprep.mubr.f32.mxu0 0.0
        %2533 = vmatmul.mubr.f32.gmra.mxu0 %v1624
        %v2534 = vpop.f32.mrf.mxu0
        %v2535 = vadd.f32 %v2278, %v2534
        %v2536 = vpop.f32.mrf.mxu0
        %v2537 = vadd.f32 %v2280, %v2536
        %2538 = vmatprep.mubr.f32.mxu0 0.0
        %2539 = vmatmul.mubr.f32.gmra.mxu0 %v1629
        %v2540 = vpop.f32.mrf.mxu0
        %v2541 = vadd.f32 %v2284, %v2540
        %v2542 = vpop.f32.mrf.mxu0
        %v2543 = vadd.f32 %v2286, %v2542
        %2544 = vmatprep.mubr.f32.mxu0 0.0
        %2545 = vmatmul.mubr.f32.gmra.mxu0 %v1634
        %v2546 = vpop.f32.mrf.mxu0
        %v2547 = vadd.f32 %v2290, %v2546
        %v2548 = vpop.f32.mrf.mxu0
        %v2549 = vadd.f32 %v2292, %v2548
        %2550 = vmatprep.mubr.f32.mxu0 0.0
        %2551 = vmatmul.mubr.f32.gmra.mxu0 %v1639
        %v2552 = vpop.f32.mrf.mxu0
        %v2553 = vadd.f32 %v2296, %v2552
        %v2554 = vpop.f32.mrf.mxu0
        %v2555 = vadd.f32 %v2298, %v2554
        %2556 = vmatprep.mubr.f32.mxu0 0.0
        %2557 = vmatmul.mubr.f32.gmra.mxu0 %v1644
        %v2558 = vpop.f32.mrf.mxu0
        %v2559 = vadd.f32 %v2302, %v2558
        %v2560 = vpop.f32.mrf.mxu0
        %v2561 = vadd.f32 %v2304, %v2560
        %2562 = vmatprep.mubr.f32.mxu0 0.0
        %2563 = vmatmul.mubr.f32.gmra.mxu0 %v1649
        %v2564 = vpop.f32.mrf.mxu0
        %v2565 = vadd.f32 %v2308, %v2564
        %v2566 = vpop.f32.mrf.mxu0
        %v2567 = vadd.f32 %v2310, %v2566
        %2568 = vmatprep.mubr.f32.mxu0 0.0
        %2569 = vmatmul.mubr.f32.gmra.mxu0 %v1654
        %v2570 = vpop.f32.mrf.mxu0
        %v2571 = vadd.f32 %v2314, %v2570
        %v2572 = vpop.f32.mrf.mxu0
        %v2573 = vadd.f32 %v2316, %v2572
        %2574 = vmatprep.mubr.f32.mxu0 0.0
        %2575 = vmatmul.mubr.f32.gmra.mxu0 %v1659
        %v2576 = vpop.f32.mrf.mxu0
        %v2577 = vadd.f32 %v2320, %v2576
        %v2578 = vpop.f32.mrf.mxu0
        %v2579 = vadd.f32 %v2322, %v2578
        %2580 = vmatprep.mubr.f32.mxu0 0.0
        %2581 = vmatmul.mubr.f32.gmra.mxu0 %v1664
        %v2582 = vpop.f32.mrf.mxu0
        %v2583 = vadd.f32 %v2326, %v2582
        %v2584 = vpop.f32.mrf.mxu0
        %v2585 = vadd.f32 %v2328, %v2584
        %2586 = vmatprep.mubr.f32.mxu0 0.0
        %2587 = vmatmul.mubr.f32.gmra.mxu0 %v1669
        %v2588 = vpop.f32.mrf.mxu0
        %v2589 = vadd.f32 %v2332, %v2588
        %v2590 = vpop.f32.mrf.mxu0
        %v2591 = vadd.f32 %v2334, %v2590
        %2592 = vmatprep.mubr.f32.mxu0 0.0
        %2593 = vmatmul.mubr.f32.gmra.mxu0 %v1674
        %v2594 = vpop.f32.mrf.mxu0
        %v2595 = vadd.f32 %v2338, %v2594
        %v2596 = vpop.f32.mrf.mxu0
        %v2597 = vadd.f32 %v2340, %v2596
        %2598 = vmatprep.mubr.f32.mxu0 0.0
        %2599 = vmatmul.mubr.f32.gmra.mxu0 %v1679
        %v2600 = vpop.f32.mrf.mxu0
        %v2601 = vadd.f32 %v2344, %v2600
        %v2602 = vpop.f32.mrf.mxu0
        %v2603 = vadd.f32 %v2346, %v2602
        %2604 = vmatprep.mubr.f32.mxu0 0.0
        %2605 = vmatmul.mubr.f32.gmra.mxu0 %v1684
        %v2606 = vpop.f32.mrf.mxu0
        %v2607 = vadd.f32 %v2350, %v2606
        %v2608 = vpop.f32.mrf.mxu0
        %v2609 = vadd.f32 %v2352, %v2608
        %2610 = vmatprep.mubr.f32.mxu0 0.0
        %2611 = vmatmul.mubr.f32.gmra.mxu0 %v1689
        %v2612 = vpop.f32.mrf.mxu0
        %v2613 = vadd.f32 %v2356, %v2612
        %v2614 = vpop.f32.mrf.mxu0
        %v2615 = vadd.f32 %v2358, %v2614
        %2616 = vmatprep.mubr.f32.mxu0 0.0
        %2617 = vmatmul.mubr.f32.gmra.mxu0 %v1694
        %v2618 = vpop.f32.mrf.mxu0
        %v2619 = vadd.f32 %v2362, %v2618
        %v2620 = vpop.f32.mrf.mxu0
        %v2621 = vadd.f32 %v2364, %v2620
        %2622 = vmatprep.mubr.f32.mxu0 0.0
        %2623 = vmatmul.mubr.f32.gmra.mxu0 %v1699
        %v2624 = vpop.f32.mrf.mxu0
        %v2625 = vadd.f32 %v2368, %v2624
        %v2626 = vpop.f32.mrf.mxu0
        %v2627 = vadd.f32 %v2370, %v2626
        %2628 = vmatprep.mubr.f32.mxu0 0.0
        %2629 = vmatmul.mubr.f32.gmra.mxu0 %v1704
        %v2630 = vpop.f32.mrf.mxu0
        %v2631 = vadd.f32 %v2374, %v2630
        %v2632 = vpop.f32.mrf.mxu0
        %v2633 = vadd.f32 %v2376, %v2632
        %2634 = vmatprep.mubr.f32.mxu0 0.0
        %2635 = vmatmul.mubr.f32.gmra.mxu0 %v1709
        %v2636 = vpop.f32.mrf.mxu0
        %v2637 = vadd.f32 %v2380, %v2636
        %v2638 = vpop.f32.mrf.mxu0
        %v2639 = vadd.f32 %v2382, %v2638
        %2640 = vmatprep.mubr.f32.mxu0 0.0
        %2641 = vmatmul.mubr.f32.gmra.mxu0 %v1714
        %v2642 = vpop.f32.mrf.mxu0
        %v2643 = vadd.f32 %v2386, %v2642
        %v2644 = vpop.f32.mrf.mxu0
        %v2645 = vadd.f32 %v2388, %v2644
        %2646 = vmatprep.mubr.f32.mxu0 0.0
        %2647 = vmatmul.mubr.f32.gmra.mxu0 %v1719
        %v2648 = vpop.f32.mrf.mxu0
        %v2649 = vadd.f32 %v2392, %v2648
        %v2650 = vpop.f32.mrf.mxu0
        %v2651 = vadd.f32 %v2394, %v2650
        %2652 = vmatprep.mubr.f32.mxu0 0.0
        %2653 = vmatmul.mubr.f32.gmra.mxu0 %v1724
        %v2654 = vpop.f32.mrf.mxu0
        %v2655 = vadd.f32 %v2398, %v2654
        %v2656 = vpop.f32.mrf.mxu0
        %v2657 = vadd.f32 %v2400, %v2656
        %2658 = vmatprep.mubr.f32.mxu0 0.0
        %2659 = vmatmul.mubr.f32.gmra.mxu0 %v1729
        %v2660 = vpop.f32.mrf.mxu0
        %v2661 = vadd.f32 %v2404, %v2660
        %v2662 = vpop.f32.mrf.mxu0
        %v2663 = vadd.f32 %v2406, %v2662
        %2664 = vmatprep.mubr.f32.mxu0 0.0
        %2665 = vmatmul.mubr.f32.gmra.mxu0 %v1734
        %v2666 = vpop.f32.mrf.mxu0
        %v2667 = vadd.f32 %v2410, %v2666
        %v2668 = vpop.f32.mrf.mxu0
        %v2669 = vadd.f32 %v2412, %v2668
        %2670 = vmatprep.mubr.f32.mxu0 0.0
        %2671 = vmatmul.mubr.f32.gmra.mxu0 %v1739
        %v2672 = vpop.f32.mrf.mxu0
        %v2673 = vadd.f32 %v2416, %v2672
        %v2674 = vpop.f32.mrf.mxu0
        %v2675 = vadd.f32 %v2418, %v2674
        %2676 = vmatprep.mubr.f32.mxu0 0.0
        %2677 = vmatmul.mubr.f32.gmra.mxu0 %v1744
        %v2678 = vpop.f32.mrf.mxu0
        %v2679 = vadd.f32 %v2422, %v2678
        %v2680 = vpop.f32.mrf.mxu0
        %v2681 = vadd.f32 %v2424, %v2680
        %2682 = vmatprep.mubr.f32.mxu0 0.0
        %2683 = vmatmul.mubr.f32.gmra.mxu0 %v1749
        %v2684 = vpop.f32.mrf.mxu0
        %v2685 = vadd.f32 %v2428, %v2684
        %v2686 = vpop.f32.mrf.mxu0
        %v2687 = vadd.f32 %v2430, %v2686
        %2688 = vmatprep.mubr.f32.mxu0 0.0
        %2689 = vmatmul.mubr.f32.gmra.mxu0 %v1754
        %v2690 = vpop.f32.mrf.mxu0
        %v2691 = vadd.f32 %v2434, %v2690
        %v2692 = vpop.f32.mrf.mxu0
        %v2693 = vadd.f32 %v2436, %v2692
        %2694 = vmatprep.mubr.f32.mxu0 0.0
        %2695 = vmatmul.mubr.f32.gmra.mxu0 %v1759
        %v2696 = vpop.f32.mrf.mxu0
        %v2697 = vadd.f32 %v2440, %v2696
        %v2698 = vpop.f32.mrf.mxu0
        %v2699 = vadd.f32 %v2442, %v2698
        %2700 = vmatprep.mubr.f32.mxu0 0.0
        %2701 = vmatmul.mubr.f32.gmra.mxu0 %v1764
        %v2702 = vpop.f32.mrf.mxu0
        %v2703 = vadd.f32 %v2446, %v2702
        %v2704 = vpop.f32.mrf.mxu0
        %v2705 = vadd.f32 %v2448, %v2704
        %2706 = vmatprep.mubr.f32.mxu0 0.0
        %2707 = vmatmul.mubr.f32.gmra.mxu0 %v1769
        %v2708 = vpop.f32.mrf.mxu0
        %v2709 = vadd.f32 %v2452, %v2708
        %v2710 = vpop.f32.mrf.mxu0
        %v2711 = vadd.f32 %v2454, %v2710
        %2712 = vdwg.mxu0
        %v2713 = vtanh.pop %v2523
        %v2714 = vtanh.pop %v2525
        %v2715 = vtanh.pop %v2529
        %v2716 = vtanh.pop %v2531
        %v2717 = vtanh.pop %v2535
        %v2718 = vtanh.pop %v2537
        %v2719 = vtanh.pop %v2541
        %v2720 = vtanh.pop %v2543
        %v2721 = vtanh.pop %v2547
        %v2722 = vtanh.pop %v2549
        %v2723 = vtanh.pop %v2553
        %v2724 = vtanh.pop %v2555
        %v2725 = vtanh.pop %v2559
        %v2726 = vtanh.pop %v2561
        %v2727 = vtanh.pop %v2565
        %v2728 = vtanh.pop %v2567
        %v2729 = vtanh.pop %v2571
        %v2730 = vtanh.pop %v2573
        %v2731 = vtanh.pop %v2577
        %v2732 = vtanh.pop %v2579
        %v2733 = vtanh.pop %v2583
        %v2734 = vtanh.pop %v2585
        %v2735 = vtanh.pop %v2589
        %v2736 = vtanh.pop %v2591
        %v2737 = vtanh.pop %v2595
        %v2738 = vtanh.pop %v2597
        %v2739 = vtanh.pop %v2601
        %v2740 = vtanh.pop %v2603
        %v2741 = vtanh.pop %v2607
        %v2742 = vtanh.pop %v2609
        %v2743 = vtanh.pop %v2613
        %v2744 = vtanh.pop %v2615
        %v2745 = vtanh.pop %v2619
        %v2746 = vtanh.pop %v2621
        %v2747 = vtanh.pop %v2625
        %v2748 = vtanh.pop %v2627
        %v2749 = vtanh.pop %v2631
        %v2750 = vtanh.pop %v2633
        %v2751 = vtanh.pop %v2637
        %v2752 = vtanh.pop %v2639
        %v2753 = vtanh.pop %v2643
        %v2754 = vtanh.pop %v2645
        %v2755 = vtanh.pop %v2649
        %v2756 = vtanh.pop %v2651
        %v2757 = vtanh.pop %v2655
        %v2758 = vtanh.pop %v2657
        %v2759 = vtanh.pop %v2661
        %v2760 = vtanh.pop %v2663
        %v2761 = vtanh.pop %v2667
        %v2762 = vtanh.pop %v2669
        %v2763 = vtanh.pop %v2673
        %v2764 = vtanh.pop %v2675
        %v2765 = vtanh.pop %v2679
        %v2766 = vtanh.pop %v2681
        %v2767 = vtanh.pop %v2685
        %v2768 = vtanh.pop %v2687
        %v2769 = vtanh.pop %v2691
        %v2770 = vtanh.pop %v2693
        %v2771 = vtanh.pop %v2697
        %v2772 = vtanh.pop %v2699
        %v2773 = vtanh.pop %v2703
        %v2774 = vtanh.pop %v2705
        %v2775 = vtanh.pop %v2709
        %v2776 = vtanh.pop %v2711
        %v2777 = vld [vmem:[#allocation6] sm:$0xff]
        %v2778 = vld [vmem:[#allocation6 + $0x8] sm:$0xff]
        %v2779 = vld [vmem:[#allocation6 + $0x10] sm:$0xff]
        %v2780 = vld [vmem:[#allocation6 + $0x18] sm:$0xff]
        %v2781 = vld [vmem:[#allocation6 + $0x20] sm:$0xff]
        %v2782 = vld [vmem:[#allocation6 + $0x28] sm:$0xff]
        %v2783 = vld [vmem:[#allocation6 + $0x30] sm:$0xff]
        %v2784 = vld [vmem:[#allocation6 + $0x38] sm:$0xff]
        %v2785 = vld [vmem:[#allocation6 + $0x40] sm:$0xff]
        %v2786 = vld [vmem:[#allocation6 + $0x48] sm:$0xff]
        %v2787 = vld [vmem:[#allocation6 + $0x50] sm:$0xff]
        %v2788 = vld [vmem:[#allocation6 + $0x58] sm:$0xff]
        %v2789 = vld [vmem:[#allocation6 + $0x60] sm:$0xff]
        %v2790 = vld [vmem:[#allocation6 + $0x68] sm:$0xff]
        %v2791 = vld [vmem:[#allocation6 + $0x70] sm:$0xff]
        %v2792 = vld [vmem:[#allocation6 + $0x78] sm:$0xff]
        %v2793 = vld [vmem:[#allocation6 + $0x80] sm:$0xff]
        %v2794 = vld [vmem:[#allocation6 + $0x88] sm:$0xff]
        %v2795 = vld [vmem:[#allocation6 + $0x90] sm:$0xff]
        %v2796 = vld [vmem:[#allocation6 + $0x98] sm:$0xff]
        %v2797 = vld [vmem:[#allocation6 + $0xa0] sm:$0xff]
        %v2798 = vld [vmem:[#allocation6 + $0xa8] sm:$0xff]
        %v2799 = vld [vmem:[#allocation6 + $0xb0] sm:$0xff]
        %v2800 = vld [vmem:[#allocation6 + $0xb8] sm:$0xff]
        %v2801 = vld [vmem:[#allocation6 + $0xc0] sm:$0xff]
        %v2802 = vld [vmem:[#allocation6 + $0xc8] sm:$0xff]
        %v2803 = vld [vmem:[#allocation6 + $0xd0] sm:$0xff]
        %v2804 = vld [vmem:[#allocation6 + $0xd8] sm:$0xff]
        %v2805 = vld [vmem:[#allocation6 + $0xe0] sm:$0xff]
        %v2806 = vld [vmem:[#allocation6 + $0xe8] sm:$0xff]
        %v2807 = vld [vmem:[#allocation6 + $0xf0] sm:$0xff]
        %v2808 = vld [vmem:[#allocation6 + $0xf8] sm:$0xff]
        %v2809 = vld [vmem:[%s6] sm:$0x1]
        %v2811 = vlaneseq
        %v2812 = vshrl.u32 %v2811, 7
        %v2813 = vsub.s32 0, %v2812
        %v2814 = vrot.slane %v2809, %v2813
        %2816 = vmatprep.subr.mxu0 0.0
        %2817 = vmatpush1.msra.mxu0 %v2792
        %2818 = vmatprep.subr.mxu0 0.0
        %2819 = vmatpush1.msra.mxu0 %v2791
        %2820 = vmatprep.subr.mxu0 0.0
        %2821 = vmatpush1.msra.mxu0 %v2790
        %2822 = vmatprep.subr.mxu0 0.0
        %2823 = vmatpush1.msra.mxu0 %v2789
        %2824 = vmatprep.subr.mxu0 0.0
        %2825 = vmatpush1.msra.mxu0 %v2788
        %2826 = vmatprep.subr.mxu0 0.0
        %2827 = vmatpush1.msra.mxu0 %v2787
        %2828 = vmatprep.subr.mxu0 0.0
        %2829 = vmatpush1.msra.mxu0 %v2786
        %2830 = vmatprep.subr.mxu0 0.0
        %2831 = vmatpush1.msra.mxu0 %v2785
        %2832 = vmatprep.subr.mxu0 0.0
        %2833 = vmatpush1.msra.mxu0 %v2784
        %2834 = vmatprep.subr.mxu0 0.0
        %2835 = vmatpush1.msra.mxu0 %v2783
        %2836 = vmatprep.subr.mxu0 0.0
        %2837 = vmatpush1.msra.mxu0 %v2782
        %2838 = vmatprep.subr.mxu0 0.0
        %2839 = vmatpush1.msra.mxu0 %v2781
        %2840 = vmatprep.subr.mxu0 0.0
        %2841 = vmatpush1.msra.mxu0 %v2780
        %2842 = vmatprep.subr.mxu0 0.0
        %2843 = vmatpush1.msra.mxu0 %v2779
        %2844 = vmatprep.subr.mxu0 0.0
        %2845 = vmatpush1.msra.mxu0 %v2778
        %2846 = vmatprep.subr.mxu0 0.0
        %2847 = vmatpush1.msra.mxu0 %v2777
        %2848 = vmatprep.subr.mxu0 0.0
        %2849 = vmatpush2.msra.mxu0 %v2808
        %2850 = vmatprep.subr.mxu0 0.0
        %2851 = vmatpush2.msra.mxu0 %v2807
        %2852 = vmatprep.subr.mxu0 0.0
        %2853 = vmatpush2.msra.mxu0 %v2806
        %2854 = vmatprep.subr.mxu0 0.0
        %2855 = vmatpush2.msra.mxu0 %v2805
        %2856 = vmatprep.subr.mxu0 0.0
        %2857 = vmatpush2.msra.mxu0 %v2804
        %2858 = vmatprep.subr.mxu0 0.0
        %2859 = vmatpush2.msra.mxu0 %v2803
        %2860 = vmatprep.subr.mxu0 0.0
        %2861 = vmatpush2.msra.mxu0 %v2802
        %2862 = vmatprep.subr.mxu0 0.0
        %2863 = vmatpush2.msra.mxu0 %v2801
        %2864 = vmatprep.subr.mxu0 0.0
        %2865 = vmatpush2.msra.mxu0 %v2800
        %2866 = vmatprep.subr.mxu0 0.0
        %2867 = vmatpush2.msra.mxu0 %v2799
        %2868 = vmatprep.subr.mxu0 0.0
        %2869 = vmatpush2.msra.mxu0 %v2798
        %2870 = vmatprep.subr.mxu0 0.0
        %2871 = vmatpush2.msra.mxu0 %v2797
        %2872 = vmatprep.subr.mxu0 0.0
        %2873 = vmatpush2.msra.mxu0 %v2796
        %2874 = vmatprep.subr.mxu0 0.0
        %2875 = vmatpush2.msra.mxu0 %v2795
        %2876 = vmatprep.subr.mxu0 0.0
        %2877 = vmatpush2.msra.mxu0 %v2794
        %2878 = vmatprep.subr.mxu0 0.0
        %2879 = vmatpush2.msra.mxu0 %v2793
        %2880 = vmatprep.mubr.f32.mxu0 %v2714
        %2881 = vmatmul.mubr.f32.gmra.mxu0 %v2713
        %v2882 = vpop.f32.mrf.mxu0
        %v2883 = vadd.f32 %v2814, %v2882
        %v2884 = vpop.f32.mrf.mxu0
        %2885 = vmatprep.mubr.f32.mxu0 %v2716
        %2886 = vmatmul.mubr.f32.gmra.mxu0 %v2715
        %v2887 = vpop.f32.mrf.mxu0
        %v2888 = vadd.f32 %v2814, %v2887
        %v2889 = vpop.f32.mrf.mxu0
        %2890 = vmatprep.mubr.f32.mxu0 %v2718
        %2891 = vmatmul.mubr.f32.gmra.mxu0 %v2717
        %v2892 = vpop.f32.mrf.mxu0
        %v2893 = vadd.f32 %v2814, %v2892
        %v2894 = vpop.f32.mrf.mxu0
        %2895 = vmatprep.mubr.f32.mxu0 %v2720
        %2896 = vmatmul.mubr.f32.gmra.mxu0 %v2719
        %v2897 = vpop.f32.mrf.mxu0
        %v2898 = vadd.f32 %v2814, %v2897
        %v2899 = vpop.f32.mrf.mxu0
        %2900 = vmatprep.mubr.f32.mxu0 %v2722
        %2901 = vmatmul.mubr.f32.gmra.mxu0 %v2721
        %v2902 = vpop.f32.mrf.mxu0
        %v2903 = vadd.f32 %v2814, %v2902
        %v2904 = vpop.f32.mrf.mxu0
        %2905 = vmatprep.mubr.f32.mxu0 %v2724
        %2906 = vmatmul.mubr.f32.gmra.mxu0 %v2723
        %v2907 = vpop.f32.mrf.mxu0
        %v2908 = vadd.f32 %v2814, %v2907
        %v2909 = vpop.f32.mrf.mxu0
        %2910 = vmatprep.mubr.f32.mxu0 %v2726
        %2911 = vmatmul.mubr.f32.gmra.mxu0 %v2725
        %v2912 = vpop.f32.mrf.mxu0
        %v2913 = vadd.f32 %v2814, %v2912
        %v2914 = vpop.f32.mrf.mxu0
        %2915 = vmatprep.mubr.f32.mxu0 %v2728
        %2916 = vmatmul.mubr.f32.gmra.mxu0 %v2727
        %v2917 = vpop.f32.mrf.mxu0
        %v2918 = vadd.f32 %v2814, %v2917
        %v2919 = vpop.f32.mrf.mxu0
        %2920 = vmatprep.mubr.f32.mxu0 %v2730
        %2921 = vmatmul.mubr.f32.gmra.mxu0 %v2729
        %v2922 = vpop.f32.mrf.mxu0
        %v2923 = vadd.f32 %v2814, %v2922
        %v2924 = vpop.f32.mrf.mxu0
        %2925 = vmatprep.mubr.f32.mxu0 %v2732
        %2926 = vmatmul.mubr.f32.gmra.mxu0 %v2731
        %v2927 = vpop.f32.mrf.mxu0
        %v2928 = vadd.f32 %v2814, %v2927
        %v2929 = vpop.f32.mrf.mxu0
        %2930 = vmatprep.mubr.f32.mxu0 %v2734
        %2931 = vmatmul.mubr.f32.gmra.mxu0 %v2733
        %v2932 = vpop.f32.mrf.mxu0
        %v2933 = vadd.f32 %v2814, %v2932
        %v2934 = vpop.f32.mrf.mxu0
        %2935 = vmatprep.mubr.f32.mxu0 %v2736
        %2936 = vmatmul.mubr.f32.gmra.mxu0 %v2735
        %v2937 = vpop.f32.mrf.mxu0
        %v2938 = vadd.f32 %v2814, %v2937
        %v2939 = vpop.f32.mrf.mxu0
        %2940 = vmatprep.mubr.f32.mxu0 %v2738
        %2941 = vmatmul.mubr.f32.gmra.mxu0 %v2737
        %v2942 = vpop.f32.mrf.mxu0
        %v2943 = vadd.f32 %v2814, %v2942
        %v2944 = vpop.f32.mrf.mxu0
        %2945 = vmatprep.mubr.f32.mxu0 %v2740
        %2946 = vmatmul.mubr.f32.gmra.mxu0 %v2739
        %v2947 = vpop.f32.mrf.mxu0
        %v2948 = vadd.f32 %v2814, %v2947
        %v2949 = vpop.f32.mrf.mxu0
        %2950 = vmatprep.mubr.f32.mxu0 %v2742
        %2951 = vmatmul.mubr.f32.gmra.mxu0 %v2741
        %v2952 = vpop.f32.mrf.mxu0
        %v2953 = vadd.f32 %v2814, %v2952
        %v2954 = vpop.f32.mrf.mxu0
        %2955 = vmatprep.mubr.f32.mxu0 %v2744
        %2956 = vmatmul.mubr.f32.gmra.mxu0 %v2743
        %v2957 = vpop.f32.mrf.mxu0
        %v2958 = vadd.f32 %v2814, %v2957
        %v2959 = vpop.f32.mrf.mxu0
        %2960 = vmatprep.mubr.f32.mxu0 %v2746
        %2961 = vmatmul.mubr.f32.gmra.mxu0 %v2745
        %v2962 = vpop.f32.mrf.mxu0
        %v2963 = vadd.f32 %v2814, %v2962
        %v2964 = vpop.f32.mrf.mxu0
        %2965 = vmatprep.mubr.f32.mxu0 %v2748
        %2966 = vmatmul.mubr.f32.gmra.mxu0 %v2747
        %v2967 = vpop.f32.mrf.mxu0
        %v2968 = vadd.f32 %v2814, %v2967
        %v2969 = vpop.f32.mrf.mxu0
        %2970 = vmatprep.mubr.f32.mxu0 %v2750
        %2971 = vmatmul.mubr.f32.gmra.mxu0 %v2749
        %v2972 = vpop.f32.mrf.mxu0
        %v2973 = vadd.f32 %v2814, %v2972
        %v2974 = vpop.f32.mrf.mxu0
        %2975 = vmatprep.mubr.f32.mxu0 %v2752
        %2976 = vmatmul.mubr.f32.gmra.mxu0 %v2751
        %v2977 = vpop.f32.mrf.mxu0
        %v2978 = vadd.f32 %v2814, %v2977
        %v2979 = vpop.f32.mrf.mxu0
        %2980 = vmatprep.mubr.f32.mxu0 %v2754
        %2981 = vmatmul.mubr.f32.gmra.mxu0 %v2753
        %v2982 = vpop.f32.mrf.mxu0
        %v2983 = vadd.f32 %v2814, %v2982
        %v2984 = vpop.f32.mrf.mxu0
        %2985 = vmatprep.mubr.f32.mxu0 %v2756
        %2986 = vmatmul.mubr.f32.gmra.mxu0 %v2755
        %v2987 = vpop.f32.mrf.mxu0
        %v2988 = vadd.f32 %v2814, %v2987
        %v2989 = vpop.f32.mrf.mxu0
        %2990 = vmatprep.mubr.f32.mxu0 %v2758
        %2991 = vmatmul.mubr.f32.gmra.mxu0 %v2757
        %v2992 = vpop.f32.mrf.mxu0
        %v2993 = vadd.f32 %v2814, %v2992
        %v2994 = vpop.f32.mrf.mxu0
        %2995 = vmatprep.mubr.f32.mxu0 %v2760
        %2996 = vmatmul.mubr.f32.gmra.mxu0 %v2759
        %v2997 = vpop.f32.mrf.mxu0
        %v2998 = vadd.f32 %v2814, %v2997
        %v2999 = vpop.f32.mrf.mxu0
        %3000 = vmatprep.mubr.f32.mxu0 %v2762
        %3001 = vmatmul.mubr.f32.gmra.mxu0 %v2761
        %v3002 = vpop.f32.mrf.mxu0
        %v3003 = vadd.f32 %v2814, %v3002
        %v3004 = vpop.f32.mrf.mxu0
        %3005 = vmatprep.mubr.f32.mxu0 %v2764
        %3006 = vmatmul.mubr.f32.gmra.mxu0 %v2763
        %v3007 = vpop.f32.mrf.mxu0
        %v3008 = vadd.f32 %v2814, %v3007
        %v3009 = vpop.f32.mrf.mxu0
        %3010 = vmatprep.mubr.f32.mxu0 %v2766
        %3011 = vmatmul.mubr.f32.gmra.mxu0 %v2765
        %v3012 = vpop.f32.mrf.mxu0
        %v3013 = vadd.f32 %v2814, %v3012
        %v3014 = vpop.f32.mrf.mxu0
        %3015 = vmatprep.mubr.f32.mxu0 %v2768
        %3016 = vmatmul.mubr.f32.gmra.mxu0 %v2767
        %v3017 = vpop.f32.mrf.mxu0
        %v3018 = vadd.f32 %v2814, %v3017
        %v3019 = vpop.f32.mrf.mxu0
        %3020 = vmatprep.mubr.f32.mxu0 %v2770
        %3021 = vmatmul.mubr.f32.gmra.mxu0 %v2769
        %v3022 = vpop.f32.mrf.mxu0
        %v3023 = vadd.f32 %v2814, %v3022
        %v3024 = vpop.f32.mrf.mxu0
        %3025 = vmatprep.mubr.f32.mxu0 %v2772
        %3026 = vmatmul.mubr.f32.gmra.mxu0 %v2771
        %v3027 = vpop.f32.mrf.mxu0
        %v3028 = vadd.f32 %v2814, %v3027
        %v3029 = vpop.f32.mrf.mxu0
        %3030 = vmatprep.mubr.f32.mxu0 %v2774
        %3031 = vmatmul.mubr.f32.gmra.mxu0 %v2773
        %v3032 = vpop.f32.mrf.mxu0
        %v3033 = vadd.f32 %v2814, %v3032
        %v3034 = vpop.f32.mrf.mxu0
        %3035 = vmatprep.mubr.f32.mxu0 %v2776
        %3036 = vmatmul.mubr.f32.gmra.mxu0 %v2775
        %v3037 = vpop.f32.mrf.mxu0
        %v3038 = vadd.f32 %v2814, %v3037
        %v3039 = vpop.f32.mrf.mxu0
        %3040 = vdwg.mxu0
        %v3041 = vtanh.pop %v2883
        %v3042 = vtanh.pop %v2888
        %v3043 = vtanh.pop %v2893
        %v3044 = vtanh.pop %v2898
        %v3045 = vtanh.pop %v2903
        %v3046 = vtanh.pop %v2908
        %v3047 = vtanh.pop %v2913
        %v3048 = vtanh.pop %v2918
        %v3049 = vtanh.pop %v2923
        %v3050 = vtanh.pop %v2928
        %v3051 = vtanh.pop %v2933
        %v3052 = vtanh.pop %v2938
        %v3053 = vtanh.pop %v2943
        %v3054 = vtanh.pop %v2948
        %v3055 = vtanh.pop %v2953
        %v3056 = vtanh.pop %v2958
        %v3057 = vtanh.pop %v2963
        %v3058 = vtanh.pop %v2968
        %v3059 = vtanh.pop %v2973
        %v3060 = vtanh.pop %v2978
        %v3061 = vtanh.pop %v2983
        %v3062 = vtanh.pop %v2988
        %v3063 = vtanh.pop %v2993
        %v3064 = vtanh.pop %v2998
        %v3065 = vtanh.pop %v3003
        %v3066 = vtanh.pop %v3008
        %v3067 = vtanh.pop %v3013
        %v3068 = vtanh.pop %v3018
        %v3069 = vtanh.pop %v3023
        %v3070 = vtanh.pop %v3028
        %v3071 = vtanh.pop %v3033
        %v3072 = vtanh.pop %v3038
        %v3073 = vld [vmem:[#allocation7] sm:$0xff]
        %v3074 = vld [vmem:[#allocation7 + $0x8] sm:$0xff]
        %v3075 = vld [vmem:[#allocation7 + $0x10] sm:$0xff]
        %v3076 = vld [vmem:[#allocation7 + $0x18] sm:$0xff]
        %v3077 = vld [vmem:[#allocation7 + $0x20] sm:$0xff]
        %v3078 = vld [vmem:[#allocation7 + $0x28] sm:$0xff]
        %v3079 = vld [vmem:[#allocation7 + $0x30] sm:$0xff]
        %v3080 = vld [vmem:[#allocation7 + $0x38] sm:$0xff]
        %v3081 = vld [vmem:[#allocation7 + $0x40] sm:$0xff]
        %v3082 = vld [vmem:[#allocation7 + $0x48] sm:$0xff]
        %v3083 = vld [vmem:[#allocation7 + $0x50] sm:$0xff]
        %v3084 = vld [vmem:[#allocation7 + $0x58] sm:$0xff]
        %v3085 = vld [vmem:[#allocation7 + $0x60] sm:$0xff]
        %v3086 = vld [vmem:[#allocation7 + $0x68] sm:$0xff]
        %v3087 = vld [vmem:[#allocation7 + $0x70] sm:$0xff]
        %v3088 = vld [vmem:[#allocation7 + $0x78] sm:$0xff]
        %v3089 = vld [vmem:[%s8] sm:$0x1]
        %v3091 = vlaneseq
        %v3092 = vshrl.u32 %v3091, 7
        %v3093 = vsub.s32 0, %v3092
        %v3094 = vrot.slane %v3089, %v3093
        %3096 = vmatprep.subr.mxu0 0.0
        %3097 = vmatpush1.msra.mxu0 %v3088
        %3098 = vmatprep.subr.mxu0 0.0
        %3099 = vmatpush1.msra.mxu0 %v3087
        %3100 = vmatprep.subr.mxu0 0.0
        %3101 = vmatpush1.msra.mxu0 %v3086
        %3102 = vmatprep.subr.mxu0 0.0
        %3103 = vmatpush1.msra.mxu0 %v3085
        %3104 = vmatprep.subr.mxu0 0.0
        %3105 = vmatpush1.msra.mxu0 %v3084
        %3106 = vmatprep.subr.mxu0 0.0
        %3107 = vmatpush1.msra.mxu0 %v3083
        %3108 = vmatprep.subr.mxu0 0.0
        %3109 = vmatpush1.msra.mxu0 %v3082
        %3110 = vmatprep.subr.mxu0 0.0
        %3111 = vmatpush1.msra.mxu0 %v3081
        %3112 = vmatprep.subr.mxu0 0.0
        %3113 = vmatpush1.msra.mxu0 %v3080
        %3114 = vmatprep.subr.mxu0 0.0
        %3115 = vmatpush1.msra.mxu0 %v3079
        %3116 = vmatprep.subr.mxu0 0.0
        %3117 = vmatpush1.msra.mxu0 %v3078
        %3118 = vmatprep.subr.mxu0 0.0
        %3119 = vmatpush1.msra.mxu0 %v3077
        %3120 = vmatprep.subr.mxu0 0.0
        %3121 = vmatpush1.msra.mxu0 %v3076
        %3122 = vmatprep.subr.mxu0 0.0
        %3123 = vmatpush1.msra.mxu0 %v3075
        %3124 = vmatprep.subr.mxu0 0.0
        %3125 = vmatpush1.msra.mxu0 %v3074
        %3126 = vmatprep.subr.mxu0 0.0
        %3127 = vmatpush1.msra.mxu0 %v3073
        %3128 = vmatprep.subr.mxu0 0.0
        %3129 = vmatpush2.msra.mxu0 0.0
        %3130 = vmatprep.subr.mxu0 0.0
        %3131 = vmatpush2.msra.mxu0 0.0
        %3132 = vmatprep.subr.mxu0 0.0
        %3133 = vmatpush2.msra.mxu0 0.0
        %3134 = vmatprep.subr.mxu0 0.0
        %3135 = vmatpush2.msra.mxu0 0.0
        %3136 = vmatprep.subr.mxu0 0.0
        %3137 = vmatpush2.msra.mxu0 0.0
        %3138 = vmatprep.subr.mxu0 0.0
        %3139 = vmatpush2.msra.mxu0 0.0
        %3140 = vmatprep.subr.mxu0 0.0
        %3141 = vmatpush2.msra.mxu0 0.0
        %3142 = vmatprep.subr.mxu0 0.0
        %3143 = vmatpush2.msra.mxu0 0.0
        %3144 = vmatprep.subr.mxu0 0.0
        %3145 = vmatpush2.msra.mxu0 0.0
        %3146 = vmatprep.subr.mxu0 0.0
        %3147 = vmatpush2.msra.mxu0 0.0
        %3148 = vmatprep.subr.mxu0 0.0
        %3149 = vmatpush2.msra.mxu0 0.0
        %3150 = vmatprep.subr.mxu0 0.0
        %3151 = vmatpush2.msra.mxu0 0.0
        %3152 = vmatprep.subr.mxu0 0.0
        %3153 = vmatpush2.msra.mxu0 0.0
        %3154 = vmatprep.subr.mxu0 0.0
        %3155 = vmatpush2.msra.mxu0 0.0
        %3156 = vmatprep.subr.mxu0 0.0
        %3157 = vmatpush2.msra.mxu0 0.0
        %3158 = vmatprep.subr.mxu0 0.0
        %3159 = vmatpush2.msra.mxu0 0.0
        %3160 = vmatprep.mubr.f32.mxu0 0.0
        %3161 = vmatmul.mubr.f32.gmra.mxu0 %v3041
        %v3162 = vpop.f32.mrf.mxu0
        %v3163 = vadd.f32 %v3094, %v3162
        %v3164 = vpop.f32.mrf.mxu0
        %3165 = vmatprep.mubr.f32.mxu0 0.0
        %3166 = vmatmul.mubr.f32.gmra.mxu0 %v3042
        %v3167 = vpop.f32.mrf.mxu0
        %v3168 = vadd.f32 %v3094, %v3167
        %v3169 = vpop.f32.mrf.mxu0
        %3170 = vmatprep.mubr.f32.mxu0 0.0
        %3171 = vmatmul.mubr.f32.gmra.mxu0 %v3043
        %v3172 = vpop.f32.mrf.mxu0
        %v3173 = vadd.f32 %v3094, %v3172
        %v3174 = vpop.f32.mrf.mxu0
        %3175 = vmatprep.mubr.f32.mxu0 0.0
        %3176 = vmatmul.mubr.f32.gmra.mxu0 %v3044
        %v3177 = vpop.f32.mrf.mxu0
        %v3178 = vadd.f32 %v3094, %v3177
        %v3179 = vpop.f32.mrf.mxu0
        %3180 = vmatprep.mubr.f32.mxu0 0.0
        %3181 = vmatmul.mubr.f32.gmra.mxu0 %v3045
        %v3182 = vpop.f32.mrf.mxu0
        %v3183 = vadd.f32 %v3094, %v3182
        %v3184 = vpop.f32.mrf.mxu0
        %3185 = vmatprep.mubr.f32.mxu0 0.0
        %3186 = vmatmul.mubr.f32.gmra.mxu0 %v3046
        %v3187 = vpop.f32.mrf.mxu0
        %v3188 = vadd.f32 %v3094, %v3187
        %v3189 = vpop.f32.mrf.mxu0
        %3190 = vmatprep.mubr.f32.mxu0 0.0
        %3191 = vmatmul.mubr.f32.gmra.mxu0 %v3047
        %v3192 = vpop.f32.mrf.mxu0
        %v3193 = vadd.f32 %v3094, %v3192
        %v3194 = vpop.f32.mrf.mxu0
        %3195 = vmatprep.mubr.f32.mxu0 0.0
        %3196 = vmatmul.mubr.f32.gmra.mxu0 %v3048
        %v3197 = vpop.f32.mrf.mxu0
        %v3198 = vadd.f32 %v3094, %v3197
        %v3199 = vpop.f32.mrf.mxu0
        %3200 = vmatprep.mubr.f32.mxu0 0.0
        %3201 = vmatmul.mubr.f32.gmra.mxu0 %v3049
        %v3202 = vpop.f32.mrf.mxu0
        %v3203 = vadd.f32 %v3094, %v3202
        %v3204 = vpop.f32.mrf.mxu0
        %3205 = vmatprep.mubr.f32.mxu0 0.0
        %3206 = vmatmul.mubr.f32.gmra.mxu0 %v3050
        %v3207 = vpop.f32.mrf.mxu0
        %v3208 = vadd.f32 %v3094, %v3207
        %v3209 = vpop.f32.mrf.mxu0
        %3210 = vmatprep.mubr.f32.mxu0 0.0
        %3211 = vmatmul.mubr.f32.gmra.mxu0 %v3051
        %v3212 = vpop.f32.mrf.mxu0
        %v3213 = vadd.f32 %v3094, %v3212
        %v3214 = vpop.f32.mrf.mxu0
        %3215 = vmatprep.mubr.f32.mxu0 0.0
        %3216 = vmatmul.mubr.f32.gmra.mxu0 %v3052
        %v3217 = vpop.f32.mrf.mxu0
        %v3218 = vadd.f32 %v3094, %v3217
        %v3219 = vpop.f32.mrf.mxu0
        %3220 = vmatprep.mubr.f32.mxu0 0.0
        %3221 = vmatmul.mubr.f32.gmra.mxu0 %v3053
        %v3222 = vpop.f32.mrf.mxu0
        %v3223 = vadd.f32 %v3094, %v3222
        %v3224 = vpop.f32.mrf.mxu0
        %3225 = vmatprep.mubr.f32.mxu0 0.0
        %3226 = vmatmul.mubr.f32.gmra.mxu0 %v3054
        %v3227 = vpop.f32.mrf.mxu0
        %v3228 = vadd.f32 %v3094, %v3227
        %v3229 = vpop.f32.mrf.mxu0
        %3230 = vmatprep.mubr.f32.mxu0 0.0
        %3231 = vmatmul.mubr.f32.gmra.mxu0 %v3055
        %v3232 = vpop.f32.mrf.mxu0
        %v3233 = vadd.f32 %v3094, %v3232
        %v3234 = vpop.f32.mrf.mxu0
        %3235 = vmatprep.mubr.f32.mxu0 0.0
        %3236 = vmatmul.mubr.f32.gmra.mxu0 %v3056
        %v3237 = vpop.f32.mrf.mxu0
        %v3238 = vadd.f32 %v3094, %v3237
        %v3239 = vpop.f32.mrf.mxu0
        %3240 = vmatprep.mubr.f32.mxu0 0.0
        %3241 = vmatmul.mubr.f32.gmra.mxu0 %v3057
        %v3242 = vpop.f32.mrf.mxu0
        %v3243 = vadd.f32 %v3094, %v3242
        %v3244 = vpop.f32.mrf.mxu0
        %3245 = vmatprep.mubr.f32.mxu0 0.0
        %3246 = vmatmul.mubr.f32.gmra.mxu0 %v3058
        %v3247 = vpop.f32.mrf.mxu0
        %v3248 = vadd.f32 %v3094, %v3247
        %v3249 = vpop.f32.mrf.mxu0
        %3250 = vmatprep.mubr.f32.mxu0 0.0
        %3251 = vmatmul.mubr.f32.gmra.mxu0 %v3059
        %v3252 = vpop.f32.mrf.mxu0
        %v3253 = vadd.f32 %v3094, %v3252
        %v3254 = vpop.f32.mrf.mxu0
        %3255 = vmatprep.mubr.f32.mxu0 0.0
        %3256 = vmatmul.mubr.f32.gmra.mxu0 %v3060
        %v3257 = vpop.f32.mrf.mxu0
        %v3258 = vadd.f32 %v3094, %v3257
        %v3259 = vpop.f32.mrf.mxu0
        %3260 = vmatprep.mubr.f32.mxu0 0.0
        %3261 = vmatmul.mubr.f32.gmra.mxu0 %v3061
        %v3262 = vpop.f32.mrf.mxu0
        %v3263 = vadd.f32 %v3094, %v3262
        %v3264 = vpop.f32.mrf.mxu0
        %3265 = vmatprep.mubr.f32.mxu0 0.0
        %3266 = vmatmul.mubr.f32.gmra.mxu0 %v3062
        %v3267 = vpop.f32.mrf.mxu0
        %v3268 = vadd.f32 %v3094, %v3267
        %v3269 = vpop.f32.mrf.mxu0
        %3270 = vmatprep.mubr.f32.mxu0 0.0
        %3271 = vmatmul.mubr.f32.gmra.mxu0 %v3063
        %v3272 = vpop.f32.mrf.mxu0
        %v3273 = vadd.f32 %v3094, %v3272
        %v3274 = vpop.f32.mrf.mxu0
        %3275 = vmatprep.mubr.f32.mxu0 0.0
        %3276 = vmatmul.mubr.f32.gmra.mxu0 %v3064
        %v3277 = vpop.f32.mrf.mxu0
        %v3278 = vadd.f32 %v3094, %v3277
        %v3279 = vpop.f32.mrf.mxu0
        %3280 = vmatprep.mubr.f32.mxu0 0.0
        %3281 = vmatmul.mubr.f32.gmra.mxu0 %v3065
        %v3282 = vpop.f32.mrf.mxu0
        %v3283 = vadd.f32 %v3094, %v3282
        %v3284 = vpop.f32.mrf.mxu0
        %3285 = vmatprep.mubr.f32.mxu0 0.0
        %3286 = vmatmul.mubr.f32.gmra.mxu0 %v3066
        %v3287 = vpop.f32.mrf.mxu0
        %v3288 = vadd.f32 %v3094, %v3287
        %v3289 = vpop.f32.mrf.mxu0
        %3290 = vmatprep.mubr.f32.mxu0 0.0
        %3291 = vmatmul.mubr.f32.gmra.mxu0 %v3067
        %v3292 = vpop.f32.mrf.mxu0
        %v3293 = vadd.f32 %v3094, %v3292
        %v3294 = vpop.f32.mrf.mxu0
        %3295 = vmatprep.mubr.f32.mxu0 0.0
        %3296 = vmatmul.mubr.f32.gmra.mxu0 %v3068
        %v3297 = vpop.f32.mrf.mxu0
        %v3298 = vadd.f32 %v3094, %v3297
        %v3299 = vpop.f32.mrf.mxu0
        %3300 = vmatprep.mubr.f32.mxu0 0.0
        %3301 = vmatmul.mubr.f32.gmra.mxu0 %v3069
        %v3302 = vpop.f32.mrf.mxu0
        %v3303 = vadd.f32 %v3094, %v3302
        %v3304 = vpop.f32.mrf.mxu0
        %3305 = vmatprep.mubr.f32.mxu0 0.0
        %3306 = vmatmul.mubr.f32.gmra.mxu0 %v3070
        %v3307 = vpop.f32.mrf.mxu0
        %v3308 = vadd.f32 %v3094, %v3307
        %v3309 = vpop.f32.mrf.mxu0
        %3310 = vmatprep.mubr.f32.mxu0 0.0
        %3311 = vmatmul.mubr.f32.gmra.mxu0 %v3071
        %v3312 = vpop.f32.mrf.mxu0
        %v3313 = vadd.f32 %v3094, %v3312
        %v3314 = vpop.f32.mrf.mxu0
        %3315 = vmatprep.mubr.f32.mxu0 0.0
        %3316 = vmatmul.mubr.f32.gmra.mxu0 %v3072
        %v3317 = vpop.f32.mrf.mxu0
        %v3318 = vadd.f32 %v3094, %v3317
        %v3319 = vpop.f32.mrf.mxu0
        %3320 = vdwg.mxu0
        %v3321 = vtanh.pop %v3163
        %v3322 = vtanh.pop %v3168
        %v3323 = vtanh.pop %v3173
        %v3324 = vtanh.pop %v3178
        %v3325 = vtanh.pop %v3183
        %v3326 = vtanh.pop %v3188
        %v3327 = vtanh.pop %v3193
        %v3328 = vtanh.pop %v3198
        %v3329 = vtanh.pop %v3203
        %v3330 = vtanh.pop %v3208
        %v3331 = vtanh.pop %v3213
        %v3332 = vtanh.pop %v3218
        %v3333 = vtanh.pop %v3223
        %v3334 = vtanh.pop %v3228
        %v3335 = vtanh.pop %v3233
        %v3336 = vtanh.pop %v3238
        %v3337 = vtanh.pop %v3243
        %v3338 = vtanh.pop %v3248
        %v3339 = vtanh.pop %v3253
        %v3340 = vtanh.pop %v3258
        %v3341 = vtanh.pop %v3263
        %v3342 = vtanh.pop %v3268
        %v3343 = vtanh.pop %v3273
        %v3344 = vtanh.pop %v3278
        %v3345 = vtanh.pop %v3283
        %v3346 = vtanh.pop %v3288
        %v3347 = vtanh.pop %v3293
        %v3348 = vtanh.pop %v3298
        %v3349 = vtanh.pop %v3303
        %v3350 = vtanh.pop %v3308
        %v3351 = vtanh.pop %v3313
        %v3352 = vtanh.pop %v3318
        %v3353 = vadd.f32 %v3321, %v1422
        %v3354 = vadd.f32 %v3322, %v1428
        %v3355 = vadd.f32 %v3323, %v1434
        %v3356 = vadd.f32 %v3324, %v1440
        %v3357 = vadd.f32 %v3325, %v1446
        %v3358 = vadd.f32 %v3326, %v1452
        %v3359 = vadd.f32 %v3327, %v1458
        %v3360 = vadd.f32 %v3328, %v1464
        %v3361 = vadd.f32 %v3329, %v1470
        %v3362 = vadd.f32 %v3330, %v1476
        %v3363 = vadd.f32 %v3331, %v1482
        %v3364 = vadd.f32 %v3332, %v1488
        %v3365 = vadd.f32 %v3333, %v1494
        %v3366 = vadd.f32 %v3334, %v1500
        %v3367 = vadd.f32 %v3335, %v1506
        %v3368 = vadd.f32 %v3336, %v1512
        %v3369 = vadd.f32 %v3337, %v1518
        %v3370 = vadd.f32 %v3338, %v1524
        %v3371 = vadd.f32 %v3339, %v1530
        %v3372 = vadd.f32 %v3340, %v1536
        %v3373 = vadd.f32 %v3341, %v1542
        %v3374 = vadd.f32 %v3342, %v1548
        %v3375 = vadd.f32 %v3343, %v1554
        %v3376 = vadd.f32 %v3344, %v1560
        %v3377 = vadd.f32 %v3345, %v1566
        %v3378 = vadd.f32 %v3346, %v1572
        %v3379 = vadd.f32 %v3347, %v1578
        %v3380 = vadd.f32 %v3348, %v1584
        %v3381 = vadd.f32 %v3349, %v1590
        %v3382 = vadd.f32 %v3350, %v1596
        %v3383 = vadd.f32 %v3351, %v1602
        %v3384 = vadd.f32 %v3352, %v1608
        %v3385 = vld [vmem:[#allocation9] sm:$0xff]
        %v3386 = vld [vmem:[#allocation9 + $0x8] sm:$0xff]
        %v3387 = vld [vmem:[#allocation9 + $0x10] sm:$0xff]
        %v3388 = vld [vmem:[#allocation9 + $0x18] sm:$0xff]
        %v3389 = vld [vmem:[#allocation9 + $0x20] sm:$0xff]
        %v3390 = vld [vmem:[#allocation9 + $0x28] sm:$0xff]
        %v3391 = vld [vmem:[#allocation9 + $0x30] sm:$0xff]
        %v3392 = vld [vmem:[#allocation9 + $0x38] sm:$0xff]
        %v3393 = vld [vmem:[#allocation9 + $0x40] sm:$0xff]
        %v3394 = vld [vmem:[#allocation9 + $0x48] sm:$0xff]
        %v3395 = vld [vmem:[#allocation9 + $0x50] sm:$0xff]
        %v3396 = vld [vmem:[#allocation9 + $0x58] sm:$0xff]
        %v3397 = vld [vmem:[#allocation9 + $0x60] sm:$0xff]
        %v3398 = vld [vmem:[#allocation9 + $0x68] sm:$0xff]
        %v3399 = vld [vmem:[#allocation9 + $0x70] sm:$0xff]
        %v3400 = vld [vmem:[#allocation9 + $0x78] sm:$0xff]
        %v3401 = vld [vmem:[%s10] sm:$0x1]
        %v3403 = vlaneseq
        %v3404 = vshrl.u32 %v3403, 7
        %v3405 = vsub.s32 0, %v3404
        %v3406 = vrot.slane %v3401, %v3405
        %3408 = vmatprep.subr.mxu0 0.0
        %3409 = vmatpush1.msra.mxu0 %v3400
        %3410 = vmatprep.subr.mxu0 0.0
        %3411 = vmatpush1.msra.mxu0 %v3399
        %3412 = vmatprep.subr.mxu0 0.0
        %3413 = vmatpush1.msra.mxu0 %v3398
        %3414 = vmatprep.subr.mxu0 0.0
        %3415 = vmatpush1.msra.mxu0 %v3397
        %3416 = vmatprep.subr.mxu0 0.0
        %3417 = vmatpush1.msra.mxu0 %v3396
        %3418 = vmatprep.subr.mxu0 0.0
        %3419 = vmatpush1.msra.mxu0 %v3395
        %3420 = vmatprep.subr.mxu0 0.0
        %3421 = vmatpush1.msra.mxu0 %v3394
        %3422 = vmatprep.subr.mxu0 0.0
        %3423 = vmatpush1.msra.mxu0 %v3393
        %3424 = vmatprep.subr.mxu0 0.0
        %3425 = vmatpush1.msra.mxu0 %v3392
        %3426 = vmatprep.subr.mxu0 0.0
        %3427 = vmatpush1.msra.mxu0 %v3391
        %3428 = vmatprep.subr.mxu0 0.0
        %3429 = vmatpush1.msra.mxu0 %v3390
        %3430 = vmatprep.subr.mxu0 0.0
        %3431 = vmatpush1.msra.mxu0 %v3389
        %3432 = vmatprep.subr.mxu0 0.0
        %3433 = vmatpush1.msra.mxu0 %v3388
        %3434 = vmatprep.subr.mxu0 0.0
        %3435 = vmatpush1.msra.mxu0 %v3387
        %3436 = vmatprep.subr.mxu0 0.0
        %3437 = vmatpush1.msra.mxu0 %v3386
        %3438 = vmatprep.subr.mxu0 0.0
        %3439 = vmatpush1.msra.mxu0 %v3385
        %3440 = vmatprep.subr.mxu0 0.0
        %3441 = vmatpush2.msra.mxu0 0.0
        %3442 = vmatprep.subr.mxu0 0.0
        %3443 = vmatpush2.msra.mxu0 0.0
        %3444 = vmatprep.subr.mxu0 0.0
        %3445 = vmatpush2.msra.mxu0 0.0
        %3446 = vmatprep.subr.mxu0 0.0
        %3447 = vmatpush2.msra.mxu0 0.0
        %3448 = vmatprep.subr.mxu0 0.0
        %3449 = vmatpush2.msra.mxu0 0.0
        %3450 = vmatprep.subr.mxu0 0.0
        %3451 = vmatpush2.msra.mxu0 0.0
        %3452 = vmatprep.subr.mxu0 0.0
        %3453 = vmatpush2.msra.mxu0 0.0
        %3454 = vmatprep.subr.mxu0 0.0
        %3455 = vmatpush2.msra.mxu0 0.0
        %3456 = vmatprep.subr.mxu0 0.0
        %3457 = vmatpush2.msra.mxu0 0.0
        %3458 = vmatprep.subr.mxu0 0.0
        %3459 = vmatpush2.msra.mxu0 0.0
        %3460 = vmatprep.subr.mxu0 0.0
        %3461 = vmatpush2.msra.mxu0 0.0
        %3462 = vmatprep.subr.mxu0 0.0
        %3463 = vmatpush2.msra.mxu0 0.0
        %3464 = vmatprep.subr.mxu0 0.0
        %3465 = vmatpush2.msra.mxu0 0.0
        %3466 = vmatprep.subr.mxu0 0.0
        %3467 = vmatpush2.msra.mxu0 0.0
        %3468 = vmatprep.subr.mxu0 0.0
        %3469 = vmatpush2.msra.mxu0 0.0
        %3470 = vmatprep.subr.mxu0 0.0
        %3471 = vmatpush2.msra.mxu0 0.0
        %3472 = vmatprep.mubr.f32.mxu0 0.0
        %3473 = vmatmul.mubr.f32.gmra.mxu0 %v3353
        %v3474 = vpop.f32.mrf.mxu0
        %v3475 = vadd.f32 %v3406, %v3474
        %v3476 = vpop.f32.mrf.mxu0
        %3477 = vmatprep.mubr.f32.mxu0 0.0
        %3478 = vmatmul.mubr.f32.gmra.mxu0 %v3354
        %v3479 = vpop.f32.mrf.mxu0
        %v3480 = vadd.f32 %v3406, %v3479
        %v3481 = vpop.f32.mrf.mxu0
        %3482 = vmatprep.mubr.f32.mxu0 0.0
        %3483 = vmatmul.mubr.f32.gmra.mxu0 %v3355
        %v3484 = vpop.f32.mrf.mxu0
        %v3485 = vadd.f32 %v3406, %v3484
        %v3486 = vpop.f32.mrf.mxu0
        %3487 = vmatprep.mubr.f32.mxu0 0.0
        %3488 = vmatmul.mubr.f32.gmra.mxu0 %v3356
        %v3489 = vpop.f32.mrf.mxu0
        %v3490 = vadd.f32 %v3406, %v3489
        %v3491 = vpop.f32.mrf.mxu0
        %3492 = vmatprep.mubr.f32.mxu0 0.0
        %3493 = vmatmul.mubr.f32.gmra.mxu0 %v3357
        %v3494 = vpop.f32.mrf.mxu0
        %v3495 = vadd.f32 %v3406, %v3494
        %v3496 = vpop.f32.mrf.mxu0
        %3497 = vmatprep.mubr.f32.mxu0 0.0
        %3498 = vmatmul.mubr.f32.gmra.mxu0 %v3358
        %v3499 = vpop.f32.mrf.mxu0
        %v3500 = vadd.f32 %v3406, %v3499
        %v3501 = vpop.f32.mrf.mxu0
        %3502 = vmatprep.mubr.f32.mxu0 0.0
        %3503 = vmatmul.mubr.f32.gmra.mxu0 %v3359
        %v3504 = vpop.f32.mrf.mxu0
        %v3505 = vadd.f32 %v3406, %v3504
        %v3506 = vpop.f32.mrf.mxu0
        %3507 = vmatprep.mubr.f32.mxu0 0.0
        %3508 = vmatmul.mubr.f32.gmra.mxu0 %v3360
        %v3509 = vpop.f32.mrf.mxu0
        %v3510 = vadd.f32 %v3406, %v3509
        %v3511 = vpop.f32.mrf.mxu0
        %3512 = vmatprep.mubr.f32.mxu0 0.0
        %3513 = vmatmul.mubr.f32.gmra.mxu0 %v3361
        %v3514 = vpop.f32.mrf.mxu0
        %v3515 = vadd.f32 %v3406, %v3514
        %v3516 = vpop.f32.mrf.mxu0
        %3517 = vmatprep.mubr.f32.mxu0 0.0
        %3518 = vmatmul.mubr.f32.gmra.mxu0 %v3362
        %v3519 = vpop.f32.mrf.mxu0
        %v3520 = vadd.f32 %v3406, %v3519
        %v3521 = vpop.f32.mrf.mxu0
        %3522 = vmatprep.mubr.f32.mxu0 0.0
        %3523 = vmatmul.mubr.f32.gmra.mxu0 %v3363
        %v3524 = vpop.f32.mrf.mxu0
        %v3525 = vadd.f32 %v3406, %v3524
        %v3526 = vpop.f32.mrf.mxu0
        %3527 = vmatprep.mubr.f32.mxu0 0.0
        %3528 = vmatmul.mubr.f32.gmra.mxu0 %v3364
        %v3529 = vpop.f32.mrf.mxu0
        %v3530 = vadd.f32 %v3406, %v3529
        %v3531 = vpop.f32.mrf.mxu0
        %3532 = vmatprep.mubr.f32.mxu0 0.0
        %3533 = vmatmul.mubr.f32.gmra.mxu0 %v3365
        %v3534 = vpop.f32.mrf.mxu0
        %v3535 = vadd.f32 %v3406, %v3534
        %v3536 = vpop.f32.mrf.mxu0
        %3537 = vmatprep.mubr.f32.mxu0 0.0
        %3538 = vmatmul.mubr.f32.gmra.mxu0 %v3366
        %v3539 = vpop.f32.mrf.mxu0
        %v3540 = vadd.f32 %v3406, %v3539
        %v3541 = vpop.f32.mrf.mxu0
        %3542 = vmatprep.mubr.f32.mxu0 0.0
        %3543 = vmatmul.mubr.f32.gmra.mxu0 %v3367
        %v3544 = vpop.f32.mrf.mxu0
        %v3545 = vadd.f32 %v3406, %v3544
        %v3546 = vpop.f32.mrf.mxu0
        %3547 = vmatprep.mubr.f32.mxu0 0.0
        %3548 = vmatmul.mubr.f32.gmra.mxu0 %v3368
        %v3549 = vpop.f32.mrf.mxu0
        %v3550 = vadd.f32 %v3406, %v3549
        %v3551 = vpop.f32.mrf.mxu0
        %3552 = vmatprep.mubr.f32.mxu0 0.0
        %3553 = vmatmul.mubr.f32.gmra.mxu0 %v3369
        %v3554 = vpop.f32.mrf.mxu0
        %v3555 = vadd.f32 %v3406, %v3554
        %v3556 = vpop.f32.mrf.mxu0
        %3557 = vmatprep.mubr.f32.mxu0 0.0
        %3558 = vmatmul.mubr.f32.gmra.mxu0 %v3370
        %v3559 = vpop.f32.mrf.mxu0
        %v3560 = vadd.f32 %v3406, %v3559
        %v3561 = vpop.f32.mrf.mxu0
        %3562 = vmatprep.mubr.f32.mxu0 0.0
        %3563 = vmatmul.mubr.f32.gmra.mxu0 %v3371
        %v3564 = vpop.f32.mrf.mxu0
        %v3565 = vadd.f32 %v3406, %v3564
        %v3566 = vpop.f32.mrf.mxu0
        %3567 = vmatprep.mubr.f32.mxu0 0.0
        %3568 = vmatmul.mubr.f32.gmra.mxu0 %v3372
        %v3569 = vpop.f32.mrf.mxu0
        %v3570 = vadd.f32 %v3406, %v3569
        %v3571 = vpop.f32.mrf.mxu0
        %3572 = vmatprep.mubr.f32.mxu0 0.0
        %3573 = vmatmul.mubr.f32.gmra.mxu0 %v3373
        %v3574 = vpop.f32.mrf.mxu0
        %v3575 = vadd.f32 %v3406, %v3574
        %v3576 = vpop.f32.mrf.mxu0
        %3577 = vmatprep.mubr.f32.mxu0 0.0
        %3578 = vmatmul.mubr.f32.gmra.mxu0 %v3374
        %v3579 = vpop.f32.mrf.mxu0
        %v3580 = vadd.f32 %v3406, %v3579
        %v3581 = vpop.f32.mrf.mxu0
        %3582 = vmatprep.mubr.f32.mxu0 0.0
        %3583 = vmatmul.mubr.f32.gmra.mxu0 %v3375
        %v3584 = vpop.f32.mrf.mxu0
        %v3585 = vadd.f32 %v3406, %v3584
        %v3586 = vpop.f32.mrf.mxu0
        %3587 = vmatprep.mubr.f32.mxu0 0.0
        %3588 = vmatmul.mubr.f32.gmra.mxu0 %v3376
        %v3589 = vpop.f32.mrf.mxu0
        %v3590 = vadd.f32 %v3406, %v3589
        %v3591 = vpop.f32.mrf.mxu0
        %3592 = vmatprep.mubr.f32.mxu0 0.0
        %3593 = vmatmul.mubr.f32.gmra.mxu0 %v3377
        %v3594 = vpop.f32.mrf.mxu0
        %v3595 = vadd.f32 %v3406, %v3594
        %v3596 = vpop.f32.mrf.mxu0
        %3597 = vmatprep.mubr.f32.mxu0 0.0
        %3598 = vmatmul.mubr.f32.gmra.mxu0 %v3378
        %v3599 = vpop.f32.mrf.mxu0
        %v3600 = vadd.f32 %v3406, %v3599
        %v3601 = vpop.f32.mrf.mxu0
        %3602 = vmatprep.mubr.f32.mxu0 0.0
        %3603 = vmatmul.mubr.f32.gmra.mxu0 %v3379
        %v3604 = vpop.f32.mrf.mxu0
        %v3605 = vadd.f32 %v3406, %v3604
        %v3606 = vpop.f32.mrf.mxu0
        %3607 = vmatprep.mubr.f32.mxu0 0.0
        %3608 = vmatmul.mubr.f32.gmra.mxu0 %v3380
        %v3609 = vpop.f32.mrf.mxu0
        %v3610 = vadd.f32 %v3406, %v3609
        %v3611 = vpop.f32.mrf.mxu0
        %3612 = vmatprep.mubr.f32.mxu0 0.0
        %3613 = vmatmul.mubr.f32.gmra.mxu0 %v3381
        %v3614 = vpop.f32.mrf.mxu0
        %v3615 = vadd.f32 %v3406, %v3614
        %v3616 = vpop.f32.mrf.mxu0
        %3617 = vmatprep.mubr.f32.mxu0 0.0
        %3618 = vmatmul.mubr.f32.gmra.mxu0 %v3382
        %v3619 = vpop.f32.mrf.mxu0
        %v3620 = vadd.f32 %v3406, %v3619
        %v3621 = vpop.f32.mrf.mxu0
        %3622 = vmatprep.mubr.f32.mxu0 0.0
        %3623 = vmatmul.mubr.f32.gmra.mxu0 %v3383
        %v3624 = vpop.f32.mrf.mxu0
        %v3625 = vadd.f32 %v3406, %v3624
        %v3626 = vpop.f32.mrf.mxu0
        %3627 = vmatprep.mubr.f32.mxu0 0.0
        %3628 = vmatmul.mubr.f32.gmra.mxu0 %v3384
        %v3629 = vpop.f32.mrf.mxu0
        %v3630 = vadd.f32 %v3406, %v3629
        %v3631 = vpop.f32.mrf.mxu0
        %3632 = vdwg.mxu0
        %v3633 = vtanh.pop %v3475
        %v3634 = vtanh.pop %v3480
        %v3635 = vtanh.pop %v3485
        %v3636 = vtanh.pop %v3490
        %v3637 = vtanh.pop %v3495
        %v3638 = vtanh.pop %v3500
        %v3639 = vtanh.pop %v3505
        %v3640 = vtanh.pop %v3510
        %v3641 = vtanh.pop %v3515
        %v3642 = vtanh.pop %v3520
        %v3643 = vtanh.pop %v3525
        %v3644 = vtanh.pop %v3530
        %v3645 = vtanh.pop %v3535
        %v3646 = vtanh.pop %v3540
        %v3647 = vtanh.pop %v3545
        %v3648 = vtanh.pop %v3550
        %v3649 = vtanh.pop %v3555
        %v3650 = vtanh.pop %v3560
        %v3651 = vtanh.pop %v3565
        %v3652 = vtanh.pop %v3570
        %v3653 = vtanh.pop %v3575
        %v3654 = vtanh.pop %v3580
        %v3655 = vtanh.pop %v3585
        %v3656 = vtanh.pop %v3590
        %v3657 = vtanh.pop %v3595
        %v3658 = vtanh.pop %v3600
        %v3659 = vtanh.pop %v3605
        %v3660 = vtanh.pop %v3610
        %v3661 = vtanh.pop %v3615
        %v3662 = vtanh.pop %v3620
        %v3663 = vtanh.pop %v3625
        %v3664 = vtanh.pop %v3630
        %v3665 = vld [vmem:[#allocation10] sm:$0xff]
        %v3666 = vld [vmem:[#allocation10 + $0x8] sm:$0xff]
        %v3667 = vld [vmem:[#allocation10 + $0x10] sm:$0xff]
        %v3668 = vld [vmem:[#allocation10 + $0x18] sm:$0xff]
        %v3669 = vld [vmem:[#allocation10 + $0x20] sm:$0xff]
        %v3670 = vld [vmem:[#allocation10 + $0x28] sm:$0xff]
        %v3671 = vld [vmem:[#allocation10 + $0x30] sm:$0xff]
        %v3672 = vld [vmem:[#allocation10 + $0x38] sm:$0xff]
        %v3673 = vld [vmem:[#allocation10 + $0x40] sm:$0xff]
        %v3674 = vld [vmem:[#allocation10 + $0x48] sm:$0xff]
        %v3675 = vld [vmem:[#allocation10 + $0x50] sm:$0xff]
        %v3676 = vld [vmem:[#allocation10 + $0x58] sm:$0xff]
        %v3677 = vld [vmem:[#allocation10 + $0x60] sm:$0xff]
        %v3678 = vld [vmem:[#allocation10 + $0x68] sm:$0xff]
        %v3679 = vld [vmem:[#allocation10 + $0x70] sm:$0xff]
        %v3680 = vld [vmem:[#allocation10 + $0x78] sm:$0xff]
        %v3681 = vld [vmem:[#allocation10 + $0x80] sm:$0xff]
        %v3682 = vld [vmem:[#allocation10 + $0x88] sm:$0xff]
        %v3683 = vld [vmem:[#allocation10 + $0x90] sm:$0xff]
        %v3684 = vld [vmem:[#allocation10 + $0x98] sm:$0xff]
        %v3685 = vld [vmem:[#allocation10 + $0xa0] sm:$0xff]
        %v3686 = vld [vmem:[#allocation10 + $0xa8] sm:$0xff]
        %v3687 = vld [vmem:[#allocation10 + $0xb0] sm:$0xff]
        %v3688 = vld [vmem:[#allocation10 + $0xb8] sm:$0xff]
        %v3689 = vld [vmem:[#allocation10 + $0xc0] sm:$0xff]
        %v3690 = vld [vmem:[#allocation10 + $0xc8] sm:$0xff]
        %v3691 = vld [vmem:[#allocation10 + $0xd0] sm:$0xff]
        %v3692 = vld [vmem:[#allocation10 + $0xd8] sm:$0xff]
        %v3693 = vld [vmem:[#allocation10 + $0xe0] sm:$0xff]
        %v3694 = vld [vmem:[#allocation10 + $0xe8] sm:$0xff]
        %v3695 = vld [vmem:[#allocation10 + $0xf0] sm:$0xff]
        %v3696 = vld [vmem:[#allocation10 + $0xf8] sm:$0xff]
        %v3697 = vld [vmem:[%s12] sm:$0x3]
        %v3699 = vlaneseq
        %v3700 = vshrl.u32 %v3699, 7
        %v3701 = vsub.s32 0, %v3700
        %v3702 = vrot.slane %v3697, %v3701
        %v3703 = vlaneseq
        %v3704 = vshrl.u32 %v3703, 7
        %v3705 = vsub.s32 1, %v3704
        %v3706 = vrot.slane %v3697, %v3705
        %3709 = vmatprep.subr.mxu0 %v3696
        %3710 = vmatpush1.msra.mxu0 %v3695
        %3711 = vmatprep.subr.mxu0 %v3694
        %3712 = vmatpush1.msra.mxu0 %v3693
        %3713 = vmatprep.subr.mxu0 %v3692
        %3714 = vmatpush1.msra.mxu0 %v3691
        %3715 = vmatprep.subr.mxu0 %v3690
        %3716 = vmatpush1.msra.mxu0 %v3689
        %3717 = vmatprep.subr.mxu0 %v3688
        %3718 = vmatpush1.msra.mxu0 %v3687
        %3719 = vmatprep.subr.mxu0 %v3686
        %3720 = vmatpush1.msra.mxu0 %v3685
        %3721 = vmatprep.subr.mxu0 %v3684
        %3722 = vmatpush1.msra.mxu0 %v3683
        %3723 = vmatprep.subr.mxu0 %v3682
        %3724 = vmatpush1.msra.mxu0 %v3681
        %3725 = vmatprep.subr.mxu0 %v3680
        %3726 = vmatpush1.msra.mxu0 %v3679
        %3727 = vmatprep.subr.mxu0 %v3678
        %3728 = vmatpush1.msra.mxu0 %v3677
        %3729 = vmatprep.subr.mxu0 %v3676
        %3730 = vmatpush1.msra.mxu0 %v3675
        %3731 = vmatprep.subr.mxu0 %v3674
        %3732 = vmatpush1.msra.mxu0 %v3673
        %3733 = vmatprep.subr.mxu0 %v3672
        %3734 = vmatpush1.msra.mxu0 %v3671
        %3735 = vmatprep.subr.mxu0 %v3670
        %3736 = vmatpush1.msra.mxu0 %v3669
        %3737 = vmatprep.subr.mxu0 %v3668
        %3738 = vmatpush1.msra.mxu0 %v3667
        %3739 = vmatprep.subr.mxu0 %v3666
        %3740 = vmatpush1.msra.mxu0 %v3665
        %3741 = vmatprep.subr.mxu0 0.0
        %3742 = vmatpush2.msra.mxu0 0.0
        %3743 = vmatprep.subr.mxu0 0.0
        %3744 = vmatpush2.msra.mxu0 0.0
        %3745 = vmatprep.subr.mxu0 0.0
        %3746 = vmatpush2.msra.mxu0 0.0
        %3747 = vmatprep.subr.mxu0 0.0
        %3748 = vmatpush2.msra.mxu0 0.0
        %3749 = vmatprep.subr.mxu0 0.0
        %3750 = vmatpush2.msra.mxu0 0.0
        %3751 = vmatprep.subr.mxu0 0.0
        %3752 = vmatpush2.msra.mxu0 0.0
        %3753 = vmatprep.subr.mxu0 0.0
        %3754 = vmatpush2.msra.mxu0 0.0
        %3755 = vmatprep.subr.mxu0 0.0
        %3756 = vmatpush2.msra.mxu0 0.0
        %3757 = vmatprep.subr.mxu0 0.0
        %3758 = vmatpush2.msra.mxu0 0.0
        %3759 = vmatprep.subr.mxu0 0.0
        %3760 = vmatpush2.msra.mxu0 0.0
        %3761 = vmatprep.subr.mxu0 0.0
        %3762 = vmatpush2.msra.mxu0 0.0
        %3763 = vmatprep.subr.mxu0 0.0
        %3764 = vmatpush2.msra.mxu0 0.0
        %3765 = vmatprep.subr.mxu0 0.0
        %3766 = vmatpush2.msra.mxu0 0.0
        %3767 = vmatprep.subr.mxu0 0.0
        %3768 = vmatpush2.msra.mxu0 0.0
        %3769 = vmatprep.subr.mxu0 0.0
        %3770 = vmatpush2.msra.mxu0 0.0
        %3771 = vmatprep.subr.mxu0 0.0
        %3772 = vmatpush2.msra.mxu0 0.0
        %3773 = vmatprep.mubr.f32.mxu0 0.0
        %3774 = vmatmul.mubr.f32.gmra.mxu0 %v3633
        %v3775 = vpop.f32.mrf.mxu0
        %v3776 = vadd.f32 %v3702, %v3775
        %v3777 = vpop.f32.mrf.mxu0
        %v3778 = vadd.f32 %v3706, %v3777
        %3779 = vmatprep.mubr.f32.mxu0 0.0
        %3780 = vmatmul.mubr.f32.gmra.mxu0 %v3634
        %v3781 = vpop.f32.mrf.mxu0
        %v3782 = vadd.f32 %v3702, %v3781
        %v3783 = vpop.f32.mrf.mxu0
        %v3784 = vadd.f32 %v3706, %v3783
        %3785 = vmatprep.mubr.f32.mxu0 0.0
        %3786 = vmatmul.mubr.f32.gmra.mxu0 %v3635
        %v3787 = vpop.f32.mrf.mxu0
        %v3788 = vadd.f32 %v3702, %v3787
        %v3789 = vpop.f32.mrf.mxu0
        %v3790 = vadd.f32 %v3706, %v3789
        %3791 = vmatprep.mubr.f32.mxu0 0.0
        %3792 = vmatmul.mubr.f32.gmra.mxu0 %v3636
        %v3793 = vpop.f32.mrf.mxu0
        %v3794 = vadd.f32 %v3702, %v3793
        %v3795 = vpop.f32.mrf.mxu0
        %v3796 = vadd.f32 %v3706, %v3795
        %3797 = vmatprep.mubr.f32.mxu0 0.0
        %3798 = vmatmul.mubr.f32.gmra.mxu0 %v3637
        %v3799 = vpop.f32.mrf.mxu0
        %v3800 = vadd.f32 %v3702, %v3799
        %v3801 = vpop.f32.mrf.mxu0
        %v3802 = vadd.f32 %v3706, %v3801
        %3803 = vmatprep.mubr.f32.mxu0 0.0
        %3804 = vmatmul.mubr.f32.gmra.mxu0 %v3638
        %v3805 = vpop.f32.mrf.mxu0
        %v3806 = vadd.f32 %v3702, %v3805
        %v3807 = vpop.f32.mrf.mxu0
        %v3808 = vadd.f32 %v3706, %v3807
        %3809 = vmatprep.mubr.f32.mxu0 0.0
        %3810 = vmatmul.mubr.f32.gmra.mxu0 %v3639
        %v3811 = vpop.f32.mrf.mxu0
        %v3812 = vadd.f32 %v3702, %v3811
        %v3813 = vpop.f32.mrf.mxu0
        %v3814 = vadd.f32 %v3706, %v3813
        %3815 = vmatprep.mubr.f32.mxu0 0.0
        %3816 = vmatmul.mubr.f32.gmra.mxu0 %v3640
        %v3817 = vpop.f32.mrf.mxu0
        %v3818 = vadd.f32 %v3702, %v3817
        %v3819 = vpop.f32.mrf.mxu0
        %v3820 = vadd.f32 %v3706, %v3819
        %3821 = vmatprep.mubr.f32.mxu0 0.0
        %3822 = vmatmul.mubr.f32.gmra.mxu0 %v3641
        %v3823 = vpop.f32.mrf.mxu0
        %v3824 = vadd.f32 %v3702, %v3823
        %v3825 = vpop.f32.mrf.mxu0
        %v3826 = vadd.f32 %v3706, %v3825
        %3827 = vmatprep.mubr.f32.mxu0 0.0
        %3828 = vmatmul.mubr.f32.gmra.mxu0 %v3642
        %v3829 = vpop.f32.mrf.mxu0
        %v3830 = vadd.f32 %v3702, %v3829
        %v3831 = vpop.f32.mrf.mxu0
        %v3832 = vadd.f32 %v3706, %v3831
        %3833 = vmatprep.mubr.f32.mxu0 0.0
        %3834 = vmatmul.mubr.f32.gmra.mxu0 %v3643
        %v3835 = vpop.f32.mrf.mxu0
        %v3836 = vadd.f32 %v3702, %v3835
        %v3837 = vpop.f32.mrf.mxu0
        %v3838 = vadd.f32 %v3706, %v3837
        %3839 = vmatprep.mubr.f32.mxu0 0.0
        %3840 = vmatmul.mubr.f32.gmra.mxu0 %v3644
        %v3841 = vpop.f32.mrf.mxu0
        %v3842 = vadd.f32 %v3702, %v3841
        %v3843 = vpop.f32.mrf.mxu0
        %v3844 = vadd.f32 %v3706, %v3843
        %3845 = vmatprep.mubr.f32.mxu0 0.0
        %3846 = vmatmul.mubr.f32.gmra.mxu0 %v3645
        %v3847 = vpop.f32.mrf.mxu0
        %v3848 = vadd.f32 %v3702, %v3847
        %v3849 = vpop.f32.mrf.mxu0
        %v3850 = vadd.f32 %v3706, %v3849
        %3851 = vmatprep.mubr.f32.mxu0 0.0
        %3852 = vmatmul.mubr.f32.gmra.mxu0 %v3646
        %v3853 = vpop.f32.mrf.mxu0
        %v3854 = vadd.f32 %v3702, %v3853
        %v3855 = vpop.f32.mrf.mxu0
        %v3856 = vadd.f32 %v3706, %v3855
        %3857 = vmatprep.mubr.f32.mxu0 0.0
        %3858 = vmatmul.mubr.f32.gmra.mxu0 %v3647
        %v3859 = vpop.f32.mrf.mxu0
        %v3860 = vadd.f32 %v3702, %v3859
        %v3861 = vpop.f32.mrf.mxu0
        %v3862 = vadd.f32 %v3706, %v3861
        %3863 = vmatprep.mubr.f32.mxu0 0.0
        %3864 = vmatmul.mubr.f32.gmra.mxu0 %v3648
        %v3865 = vpop.f32.mrf.mxu0
        %v3866 = vadd.f32 %v3702, %v3865
        %v3867 = vpop.f32.mrf.mxu0
        %v3868 = vadd.f32 %v3706, %v3867
        %3869 = vmatprep.mubr.f32.mxu0 0.0
        %3870 = vmatmul.mubr.f32.gmra.mxu0 %v3649
        %v3871 = vpop.f32.mrf.mxu0
        %v3872 = vadd.f32 %v3702, %v3871
        %v3873 = vpop.f32.mrf.mxu0
        %v3874 = vadd.f32 %v3706, %v3873
        %3875 = vmatprep.mubr.f32.mxu0 0.0
        %3876 = vmatmul.mubr.f32.gmra.mxu0 %v3650
        %v3877 = vpop.f32.mrf.mxu0
        %v3878 = vadd.f32 %v3702, %v3877
        %v3879 = vpop.f32.mrf.mxu0
        %v3880 = vadd.f32 %v3706, %v3879
        %3881 = vmatprep.mubr.f32.mxu0 0.0
        %3882 = vmatmul.mubr.f32.gmra.mxu0 %v3651
        %v3883 = vpop.f32.mrf.mxu0
        %v3884 = vadd.f32 %v3702, %v3883
        %v3885 = vpop.f32.mrf.mxu0
        %v3886 = vadd.f32 %v3706, %v3885
        %3887 = vmatprep.mubr.f32.mxu0 0.0
        %3888 = vmatmul.mubr.f32.gmra.mxu0 %v3652
        %v3889 = vpop.f32.mrf.mxu0
        %v3890 = vadd.f32 %v3702, %v3889
        %v3891 = vpop.f32.mrf.mxu0
        %v3892 = vadd.f32 %v3706, %v3891
        %3893 = vmatprep.mubr.f32.mxu0 0.0
        %3894 = vmatmul.mubr.f32.gmra.mxu0 %v3653
        %v3895 = vpop.f32.mrf.mxu0
        %v3896 = vadd.f32 %v3702, %v3895
        %v3897 = vpop.f32.mrf.mxu0
        %v3898 = vadd.f32 %v3706, %v3897
        %3899 = vmatprep.mubr.f32.mxu0 0.0
        %3900 = vmatmul.mubr.f32.gmra.mxu0 %v3654
        %v3901 = vpop.f32.mrf.mxu0
        %v3902 = vadd.f32 %v3702, %v3901
        %v3903 = vpop.f32.mrf.mxu0
        %v3904 = vadd.f32 %v3706, %v3903
        %3905 = vmatprep.mubr.f32.mxu0 0.0
        %3906 = vmatmul.mubr.f32.gmra.mxu0 %v3655
        %v3907 = vpop.f32.mrf.mxu0
        %v3908 = vadd.f32 %v3702, %v3907
        %v3909 = vpop.f32.mrf.mxu0
        %v3910 = vadd.f32 %v3706, %v3909
        %3911 = vmatprep.mubr.f32.mxu0 0.0
        %3912 = vmatmul.mubr.f32.gmra.mxu0 %v3656
        %v3913 = vpop.f32.mrf.mxu0
        %v3914 = vadd.f32 %v3702, %v3913
        %v3915 = vpop.f32.mrf.mxu0
        %v3916 = vadd.f32 %v3706, %v3915
        %3917 = vmatprep.mubr.f32.mxu0 0.0
        %3918 = vmatmul.mubr.f32.gmra.mxu0 %v3657
        %v3919 = vpop.f32.mrf.mxu0
        %v3920 = vadd.f32 %v3702, %v3919
        %v3921 = vpop.f32.mrf.mxu0
        %v3922 = vadd.f32 %v3706, %v3921
        %3923 = vmatprep.mubr.f32.mxu0 0.0
        %3924 = vmatmul.mubr.f32.gmra.mxu0 %v3658
        %v3925 = vpop.f32.mrf.mxu0
        %v3926 = vadd.f32 %v3702, %v3925
        %v3927 = vpop.f32.mrf.mxu0
        %v3928 = vadd.f32 %v3706, %v3927
        %3929 = vmatprep.mubr.f32.mxu0 0.0
        %3930 = vmatmul.mubr.f32.gmra.mxu0 %v3659
        %v3931 = vpop.f32.mrf.mxu0
        %v3932 = vadd.f32 %v3702, %v3931
        %v3933 = vpop.f32.mrf.mxu0
        %v3934 = vadd.f32 %v3706, %v3933
        %3935 = vmatprep.mubr.f32.mxu0 0.0
        %3936 = vmatmul.mubr.f32.gmra.mxu0 %v3660
        %v3937 = vpop.f32.mrf.mxu0
        %v3938 = vadd.f32 %v3702, %v3937
        %v3939 = vpop.f32.mrf.mxu0
        %v3940 = vadd.f32 %v3706, %v3939
        %3941 = vmatprep.mubr.f32.mxu0 0.0
        %3942 = vmatmul.mubr.f32.gmra.mxu0 %v3661
        %v3943 = vpop.f32.mrf.mxu0
        %v3944 = vadd.f32 %v3702, %v3943
        %v3945 = vpop.f32.mrf.mxu0
        %v3946 = vadd.f32 %v3706, %v3945
        %3947 = vmatprep.mubr.f32.mxu0 0.0
        %3948 = vmatmul.mubr.f32.gmra.mxu0 %v3662
        %v3949 = vpop.f32.mrf.mxu0
        %v3950 = vadd.f32 %v3702, %v3949
        %v3951 = vpop.f32.mrf.mxu0
        %v3952 = vadd.f32 %v3706, %v3951
        %3953 = vmatprep.mubr.f32.mxu0 0.0
        %3954 = vmatmul.mubr.f32.gmra.mxu0 %v3663
        %v3955 = vpop.f32.mrf.mxu0
        %v3956 = vadd.f32 %v3702, %v3955
        %v3957 = vpop.f32.mrf.mxu0
        %v3958 = vadd.f32 %v3706, %v3957
        %3959 = vmatprep.mubr.f32.mxu0 0.0
        %3960 = vmatmul.mubr.f32.gmra.mxu0 %v3664
        %v3961 = vpop.f32.mrf.mxu0
        %v3962 = vadd.f32 %v3702, %v3961
        %v3963 = vpop.f32.mrf.mxu0
        %v3964 = vadd.f32 %v3706, %v3963
        %3965 = vdwg.mxu0
        %v3966 = vtanh.pop %v3776
        %v3967 = vtanh.pop %v3778
        %v3968 = vtanh.pop %v3782
        %v3969 = vtanh.pop %v3784
        %v3970 = vtanh.pop %v3788
        %v3971 = vtanh.pop %v3790
        %v3972 = vtanh.pop %v3794
        %v3973 = vtanh.pop %v3796
        %v3974 = vtanh.pop %v3800
        %v3975 = vtanh.pop %v3802
        %v3976 = vtanh.pop %v3806
        %v3977 = vtanh.pop %v3808
        %v3978 = vtanh.pop %v3812
        %v3979 = vtanh.pop %v3814
        %v3980 = vtanh.pop %v3818
        %v3981 = vtanh.pop %v3820
        %v3982 = vtanh.pop %v3824
        %v3983 = vtanh.pop %v3826
        %v3984 = vtanh.pop %v3830
        %v3985 = vtanh.pop %v3832
        %v3986 = vtanh.pop %v3836
        %v3987 = vtanh.pop %v3838
        %v3988 = vtanh.pop %v3842
        %v3989 = vtanh.pop %v3844
        %v3990 = vtanh.pop %v3848
        %v3991 = vtanh.pop %v3850
        %v3992 = vtanh.pop %v3854
        %v3993 = vtanh.pop %v3856
        %v3994 = vtanh.pop %v3860
        %v3995 = vtanh.pop %v3862
        %v3996 = vtanh.pop %v3866
        %v3997 = vtanh.pop %v3868
        %v3998 = vtanh.pop %v3872
        %v3999 = vtanh.pop %v3874
        %v4000 = vtanh.pop %v3878
        %v4001 = vtanh.pop %v3880
        %v4002 = vtanh.pop %v3884
        %v4003 = vtanh.pop %v3886
        %v4004 = vtanh.pop %v3890
        %v4005 = vtanh.pop %v3892
        %v4006 = vtanh.pop %v3896
        %v4007 = vtanh.pop %v3898
        %v4008 = vtanh.pop %v3902
        %v4009 = vtanh.pop %v3904
        %v4010 = vtanh.pop %v3908
        %v4011 = vtanh.pop %v3910
        %v4012 = vtanh.pop %v3914
        %v4013 = vtanh.pop %v3916
        %v4014 = vtanh.pop %v3920
        %v4015 = vtanh.pop %v3922
        %v4016 = vtanh.pop %v3926
        %v4017 = vtanh.pop %v3928
        %v4018 = vtanh.pop %v3932
        %v4019 = vtanh.pop %v3934
        %v4020 = vtanh.pop %v3938
        %v4021 = vtanh.pop %v3940
        %v4022 = vtanh.pop %v3944
        %v4023 = vtanh.pop %v3946
        %v4024 = vtanh.pop %v3950
        %v4025 = vtanh.pop %v3952
        %v4026 = vtanh.pop %v3956
        %v4027 = vtanh.pop %v3958
        %v4028 = vtanh.pop %v3962
        %v4029 = vtanh.pop %v3964
        %v4030 = vld [vmem:[#allocation12] sm:$0xff]
        %v4031 = vld [vmem:[#allocation12 + $0x8] sm:$0xff]
        %v4032 = vld [vmem:[#allocation12 + $0x10] sm:$0xff]
        %v4033 = vld [vmem:[#allocation12 + $0x18] sm:$0xff]
        %v4034 = vld [vmem:[#allocation12 + $0x20] sm:$0xff]
        %v4035 = vld [vmem:[#allocation12 + $0x28] sm:$0xff]
        %v4036 = vld [vmem:[#allocation12 + $0x30] sm:$0xff]
        %v4037 = vld [vmem:[#allocation12 + $0x38] sm:$0xff]
        %v4038 = vld [vmem:[#allocation12 + $0x40] sm:$0xff]
        %v4039 = vld [vmem:[#allocation12 + $0x48] sm:$0xff]
        %v4040 = vld [vmem:[#allocation12 + $0x50] sm:$0xff]
        %v4041 = vld [vmem:[#allocation12 + $0x58] sm:$0xff]
        %v4042 = vld [vmem:[#allocation12 + $0x60] sm:$0xff]
        %v4043 = vld [vmem:[#allocation12 + $0x68] sm:$0xff]
        %v4044 = vld [vmem:[#allocation12 + $0x70] sm:$0xff]
        %v4045 = vld [vmem:[#allocation12 + $0x78] sm:$0xff]
        %v4046 = vld [vmem:[#allocation12 + $0x80] sm:$0xff]
        %v4047 = vld [vmem:[#allocation12 + $0x88] sm:$0xff]
        %v4048 = vld [vmem:[#allocation12 + $0x90] sm:$0xff]
        %v4049 = vld [vmem:[#allocation12 + $0x98] sm:$0xff]
        %v4050 = vld [vmem:[#allocation12 + $0xa0] sm:$0xff]
        %v4051 = vld [vmem:[#allocation12 + $0xa8] sm:$0xff]
        %v4052 = vld [vmem:[#allocation12 + $0xb0] sm:$0xff]
        %v4053 = vld [vmem:[#allocation12 + $0xb8] sm:$0xff]
        %v4054 = vld [vmem:[#allocation12 + $0xc0] sm:$0xff]
        %v4055 = vld [vmem:[#allocation12 + $0xc8] sm:$0xff]
        %v4056 = vld [vmem:[#allocation12 + $0xd0] sm:$0xff]
        %v4057 = vld [vmem:[#allocation12 + $0xd8] sm:$0xff]
        %v4058 = vld [vmem:[#allocation12 + $0xe0] sm:$0xff]
        %v4059 = vld [vmem:[#allocation12 + $0xe8] sm:$0xff]
        %v4060 = vld [vmem:[#allocation12 + $0xf0] sm:$0xff]
        %v4061 = vld [vmem:[#allocation12 + $0xf8] sm:$0xff]
        %v4062 = vld [vmem:[#allocation12 + $0x100] sm:$0xff]
        %v4063 = vld [vmem:[#allocation12 + $0x108] sm:$0xff]
        %v4064 = vld [vmem:[#allocation12 + $0x110] sm:$0xff]
        %v4065 = vld [vmem:[#allocation12 + $0x118] sm:$0xff]
        %v4066 = vld [vmem:[#allocation12 + $0x120] sm:$0xff]
        %v4067 = vld [vmem:[#allocation12 + $0x128] sm:$0xff]
        %v4068 = vld [vmem:[#allocation12 + $0x130] sm:$0xff]
        %v4069 = vld [vmem:[#allocation12 + $0x138] sm:$0xff]
        %v4070 = vld [vmem:[#allocation12 + $0x140] sm:$0xff]
        %v4071 = vld [vmem:[#allocation12 + $0x148] sm:$0xff]
        %v4072 = vld [vmem:[#allocation12 + $0x150] sm:$0xff]
        %v4073 = vld [vmem:[#allocation12 + $0x158] sm:$0xff]
        %v4074 = vld [vmem:[#allocation12 + $0x160] sm:$0xff]
        %v4075 = vld [vmem:[#allocation12 + $0x168] sm:$0xff]
        %v4076 = vld [vmem:[#allocation12 + $0x170] sm:$0xff]
        %v4077 = vld [vmem:[#allocation12 + $0x178] sm:$0xff]
        %v4078 = vld [vmem:[#allocation12 + $0x180] sm:$0xff]
        %v4079 = vld [vmem:[#allocation12 + $0x188] sm:$0xff]
        %v4080 = vld [vmem:[#allocation12 + $0x190] sm:$0xff]
        %v4081 = vld [vmem:[#allocation12 + $0x198] sm:$0xff]
        %v4082 = vld [vmem:[#allocation12 + $0x1a0] sm:$0xff]
        %v4083 = vld [vmem:[#allocation12 + $0x1a8] sm:$0xff]
        %v4084 = vld [vmem:[#allocation12 + $0x1b0] sm:$0xff]
        %v4085 = vld [vmem:[#allocation12 + $0x1b8] sm:$0xff]
        %v4086 = vld [vmem:[#allocation12 + $0x1c0] sm:$0xff]
        %v4087 = vld [vmem:[#allocation12 + $0x1c8] sm:$0xff]
        %v4088 = vld [vmem:[#allocation12 + $0x1d0] sm:$0xff]
        %v4089 = vld [vmem:[#allocation12 + $0x1d8] sm:$0xff]
        %v4090 = vld [vmem:[#allocation12 + $0x1e0] sm:$0xff]
        %v4091 = vld [vmem:[#allocation12 + $0x1e8] sm:$0xff]
        %v4092 = vld [vmem:[#allocation12 + $0x1f0] sm:$0xff]
        %v4093 = vld [vmem:[#allocation12 + $0x1f8] sm:$0xff]
        %v4094 = vld [vmem:[#allocation12 + $0x200] sm:$0xff]
        %v4095 = vld [vmem:[#allocation12 + $0x208] sm:$0xff]
        %v4096 = vld [vmem:[#allocation12 + $0x210] sm:$0xff]
        %v4097 = vld [vmem:[#allocation12 + $0x218] sm:$0xff]
        %v4098 = vld [vmem:[#allocation12 + $0x220] sm:$0xff]
        %v4099 = vld [vmem:[#allocation12 + $0x228] sm:$0xff]
        %v4100 = vld [vmem:[#allocation12 + $0x230] sm:$0xff]
        %v4101 = vld [vmem:[#allocation12 + $0x238] sm:$0xff]
        %v4102 = vld [vmem:[#allocation12 + $0x240] sm:$0xff]
        %v4103 = vld [vmem:[#allocation12 + $0x248] sm:$0xff]
        %v4104 = vld [vmem:[#allocation12 + $0x250] sm:$0xff]
        %v4105 = vld [vmem:[#allocation12 + $0x258] sm:$0xff]
        %v4106 = vld [vmem:[#allocation12 + $0x260] sm:$0xff]
        %v4107 = vld [vmem:[#allocation12 + $0x268] sm:$0xff]
        %v4108 = vld [vmem:[#allocation12 + $0x270] sm:$0xff]
        %v4109 = vld [vmem:[#allocation12 + $0x278] sm:$0xff]
        %v4110 = vld [vmem:[#allocation12 + $0x280] sm:$0xff]
        %v4111 = vld [vmem:[#allocation12 + $0x288] sm:$0xff]
        %v4112 = vld [vmem:[#allocation12 + $0x290] sm:$0xff]
        %v4113 = vld [vmem:[#allocation12 + $0x298] sm:$0xff]
        %v4114 = vld [vmem:[#allocation12 + $0x2a0] sm:$0xff]
        %v4115 = vld [vmem:[#allocation12 + $0x2a8] sm:$0xff]
        %v4116 = vld [vmem:[#allocation12 + $0x2b0] sm:$0xff]
        %v4117 = vld [vmem:[#allocation12 + $0x2b8] sm:$0xff]
        %v4118 = vld [vmem:[#allocation12 + $0x2c0] sm:$0xff]
        %v4119 = vld [vmem:[#allocation12 + $0x2c8] sm:$0xff]
        %v4120 = vld [vmem:[#allocation12 + $0x2d0] sm:$0xff]
        %v4121 = vld [vmem:[#allocation12 + $0x2d8] sm:$0xff]
        %v4122 = vld [vmem:[#allocation12 + $0x2e0] sm:$0xff]
        %v4123 = vld [vmem:[#allocation12 + $0x2e8] sm:$0xff]
        %v4124 = vld [vmem:[#allocation12 + $0x2f0] sm:$0xff]
        %v4125 = vld [vmem:[#allocation12 + $0x2f8] sm:$0xff]
        %v4126 = vld [vmem:[#allocation12 + $0x300] sm:$0xff]
        %v4127 = vld [vmem:[#allocation12 + $0x308] sm:$0xff]
        %v4128 = vld [vmem:[#allocation12 + $0x310] sm:$0xff]
        %v4129 = vld [vmem:[#allocation12 + $0x318] sm:$0xff]
        %v4130 = vld [vmem:[#allocation12 + $0x320] sm:$0xff]
        %v4131 = vld [vmem:[#allocation12 + $0x328] sm:$0xff]
        %v4132 = vld [vmem:[#allocation12 + $0x330] sm:$0xff]
        %v4133 = vld [vmem:[#allocation12 + $0x338] sm:$0xff]
        %v4134 = vld [vmem:[#allocation12 + $0x340] sm:$0xff]
        %v4135 = vld [vmem:[#allocation12 + $0x348] sm:$0xff]
        %v4136 = vld [vmem:[#allocation12 + $0x350] sm:$0xff]
        %v4137 = vld [vmem:[#allocation12 + $0x358] sm:$0xff]
        %v4138 = vld [vmem:[#allocation12 + $0x360] sm:$0xff]
        %v4139 = vld [vmem:[#allocation12 + $0x368] sm:$0xff]
        %v4140 = vld [vmem:[#allocation12 + $0x370] sm:$0xff]
        %v4141 = vld [vmem:[#allocation12 + $0x378] sm:$0xff]
        %v4142 = vld [vmem:[#allocation12 + $0x380] sm:$0xff]
        %v4143 = vld [vmem:[#allocation12 + $0x388] sm:$0xff]
        %v4144 = vld [vmem:[#allocation12 + $0x390] sm:$0xff]
        %v4145 = vld [vmem:[#allocation12 + $0x398] sm:$0xff]
        %v4146 = vld [vmem:[#allocation12 + $0x3a0] sm:$0xff]
        %v4147 = vld [vmem:[#allocation12 + $0x3a8] sm:$0xff]
        %v4148 = vld [vmem:[#allocation12 + $0x3b0] sm:$0xff]
        %v4149 = vld [vmem:[#allocation12 + $0x3b8] sm:$0xff]
        %v4150 = vld [vmem:[#allocation12 + $0x3c0] sm:$0xff]
        %v4151 = vld [vmem:[#allocation12 + $0x3c8] sm:$0xff]
        %v4152 = vld [vmem:[#allocation12 + $0x3d0] sm:$0xff]
        %v4153 = vld [vmem:[#allocation12 + $0x3d8] sm:$0xff]
        %v4154 = vld [vmem:[#allocation12 + $0x3e0] sm:$0xff]
        %v4155 = vld [vmem:[#allocation12 + $0x3e8] sm:$0xff]
        %v4156 = vld [vmem:[#allocation12 + $0x3f0] sm:$0xff]
        %v4157 = vld [vmem:[#allocation12 + $0x3f8] sm:$0xff]
        %v4158 = vld [vmem:[#allocation12 + $0x400] sm:$0xff]
        %v4159 = vld [vmem:[#allocation12 + $0x408] sm:$0xff]
        %v4160 = vld [vmem:[#allocation12 + $0x410] sm:$0xff]
        %v4161 = vld [vmem:[#allocation12 + $0x418] sm:$0xff]
        %v4162 = vld [vmem:[#allocation12 + $0x420] sm:$0xff]
        %v4163 = vld [vmem:[#allocation12 + $0x428] sm:$0xff]
        %v4164 = vld [vmem:[#allocation12 + $0x430] sm:$0xff]
        %v4165 = vld [vmem:[#allocation12 + $0x438] sm:$0xff]
        %v4166 = vld [vmem:[#allocation12 + $0x440] sm:$0xff]
        %v4167 = vld [vmem:[#allocation12 + $0x448] sm:$0xff]
        %v4168 = vld [vmem:[#allocation12 + $0x450] sm:$0xff]
        %v4169 = vld [vmem:[#allocation12 + $0x458] sm:$0xff]
        %v4170 = vld [vmem:[#allocation12 + $0x460] sm:$0xff]
        %v4171 = vld [vmem:[#allocation12 + $0x468] sm:$0xff]
        %v4172 = vld [vmem:[#allocation12 + $0x470] sm:$0xff]
        %v4173 = vld [vmem:[#allocation12 + $0x478] sm:$0xff]
        %v4174 = vld [vmem:[#allocation12 + $0x480] sm:$0xff]
        %v4175 = vld [vmem:[#allocation12 + $0x488] sm:$0xff]
        %v4176 = vld [vmem:[#allocation12 + $0x490] sm:$0xff]
        %v4177 = vld [vmem:[#allocation12 + $0x498] sm:$0xff]
        %v4178 = vld [vmem:[#allocation12 + $0x4a0] sm:$0xff]
        %v4179 = vld [vmem:[#allocation12 + $0x4a8] sm:$0xff]
        %v4180 = vld [vmem:[#allocation12 + $0x4b0] sm:$0xff]
        %v4181 = vld [vmem:[#allocation12 + $0x4b8] sm:$0xff]
        %v4182 = vld [vmem:[#allocation12 + $0x4c0] sm:$0xff]
        %v4183 = vld [vmem:[#allocation12 + $0x4c8] sm:$0xff]
        %v4184 = vld [vmem:[#allocation12 + $0x4d0] sm:$0xff]
        %v4185 = vld [vmem:[#allocation12 + $0x4d8] sm:$0xff]
        %v4186 = vld [vmem:[#allocation12 + $0x4e0] sm:$0xff]
        %v4187 = vld [vmem:[#allocation12 + $0x4e8] sm:$0xff]
        %v4188 = vld [vmem:[#allocation12 + $0x4f0] sm:$0xff]
        %v4189 = vld [vmem:[#allocation12 + $0x4f8] sm:$0xff]
        %v4190 = vld [vmem:[%s14] sm:$0x1f]
        %v4192 = vlaneseq
        %v4193 = vshrl.u32 %v4192, 7
        %v4194 = vsub.s32 0, %v4193
        %v4195 = vrot.slane %v4190, %v4194
        %v4196 = vlaneseq
        %v4197 = vshrl.u32 %v4196, 7
        %v4198 = vsub.s32 1, %v4197
        %v4199 = vrot.slane %v4190, %v4198
        %v4200 = vlaneseq
        %v4201 = vshrl.u32 %v4200, 7
        %v4202 = vsub.s32 2, %v4201
        %v4203 = vrot.slane %v4190, %v4202
        %v4204 = vlaneseq
        %v4205 = vshrl.u32 %v4204, 7
        %v4206 = vsub.s32 3, %v4205
        %v4207 = vrot.slane %v4190, %v4206
        %v4208 = vlaneseq
        %v4209 = vshrl.u32 %v4208, 7
        %v4210 = vsub.s32 4, %v4209
        %v4211 = vrot.slane %v4190, %v4210
        %4217 = vmatprep.subr.mxu0 %v4106
        %4218 = vmatpush1.msra.mxu0 %v4105
        %4219 = vmatprep.subr.mxu0 %v4101
        %4220 = vmatpush1.msra.mxu0 %v4100
        %4221 = vmatprep.subr.mxu0 %v4096
        %4222 = vmatpush1.msra.mxu0 %v4095
        %4223 = vmatprep.subr.mxu0 %v4091
        %4224 = vmatpush1.msra.mxu0 %v4090
        %4225 = vmatprep.subr.mxu0 %v4086
        %4226 = vmatpush1.msra.mxu0 %v4085
        %4227 = vmatprep.subr.mxu0 %v4081
        %4228 = vmatpush1.msra.mxu0 %v4080
        %4229 = vmatprep.subr.mxu0 %v4076
        %4230 = vmatpush1.msra.mxu0 %v4075
        %4231 = vmatprep.subr.mxu0 %v4071
        %4232 = vmatpush1.msra.mxu0 %v4070
        %4233 = vmatprep.subr.mxu0 %v4066
        %4234 = vmatpush1.msra.mxu0 %v4065
        %4235 = vmatprep.subr.mxu0 %v4061
        %4236 = vmatpush1.msra.mxu0 %v4060
        %4237 = vmatprep.subr.mxu0 %v4056
        %4238 = vmatpush1.msra.mxu0 %v4055
        %4239 = vmatprep.subr.mxu0 %v4051
        %4240 = vmatpush1.msra.mxu0 %v4050
        %4241 = vmatprep.subr.mxu0 %v4046
        %4242 = vmatpush1.msra.mxu0 %v4045
        %4243 = vmatprep.subr.mxu0 %v4041
        %4244 = vmatpush1.msra.mxu0 %v4040
        %4245 = vmatprep.subr.mxu0 %v4036
        %4246 = vmatpush1.msra.mxu0 %v4035
        %4247 = vmatprep.subr.mxu0 %v4031
        %4248 = vmatpush1.msra.mxu0 %v4030
        %4249 = vmatprep.subr.mxu0 %v4186
        %4250 = vmatpush2.msra.mxu0 %v4185
        %4251 = vmatprep.subr.mxu0 %v4181
        %4252 = vmatpush2.msra.mxu0 %v4180
        %4253 = vmatprep.subr.mxu0 %v4176
        %4254 = vmatpush2.msra.mxu0 %v4175
        %4255 = vmatprep.subr.mxu0 %v4171
        %4256 = vmatpush2.msra.mxu0 %v4170
        %4257 = vmatprep.subr.mxu0 %v4166
        %4258 = vmatpush2.msra.mxu0 %v4165
        %4259 = vmatprep.subr.mxu0 %v4161
        %4260 = vmatpush2.msra.mxu0 %v4160
        %4261 = vmatprep.subr.mxu0 %v4156
        %4262 = vmatpush2.msra.mxu0 %v4155
        %4263 = vmatprep.subr.mxu0 %v4151
        %4264 = vmatpush2.msra.mxu0 %v4150
        %4265 = vmatprep.subr.mxu0 %v4146
        %4266 = vmatpush2.msra.mxu0 %v4145
        %4267 = vmatprep.subr.mxu0 %v4141
        %4268 = vmatpush2.msra.mxu0 %v4140
        %4269 = vmatprep.subr.mxu0 %v4136
        %4270 = vmatpush2.msra.mxu0 %v4135
        %4271 = vmatprep.subr.mxu0 %v4131
        %4272 = vmatpush2.msra.mxu0 %v4130
        %4273 = vmatprep.subr.mxu0 %v4126
        %4274 = vmatpush2.msra.mxu0 %v4125
        %4275 = vmatprep.subr.mxu0 %v4121
        %4276 = vmatpush2.msra.mxu0 %v4120
        %4277 = vmatprep.subr.mxu0 %v4116
        %4278 = vmatpush2.msra.mxu0 %v4115
        %4279 = vmatprep.subr.mxu0 %v4111
        %4280 = vmatpush2.msra.mxu0 %v4110
        %4281 = vmatprep.mubr.f32.mxu0 %v3967
        %4282 = vmatmul.mubr.f32.gmra.mxu0 %v3966
        %v4283 = vpop.f32.mrf.mxu0
        %v4284 = vadd.f32 %v4195, %v4283
        %v4285 = vpop.f32.mrf.mxu0
        %v4286 = vadd.f32 %v4199, %v4285
        %4287 = vmatprep.mubr.f32.mxu0 %v3969
        %4288 = vmatmul.mubr.f32.gmra.mxu0 %v3968
        %v4289 = vpop.f32.mrf.mxu0
        %v4290 = vadd.f32 %v4195, %v4289
        %v4291 = vpop.f32.mrf.mxu0
        %v4292 = vadd.f32 %v4199, %v4291
        %4293 = vmatprep.mubr.f32.mxu0 %v3971
        %4294 = vmatmul.mubr.f32.gmra.mxu0 %v3970
        %v4295 = vpop.f32.mrf.mxu0
        %v4296 = vadd.f32 %v4195, %v4295
        %v4297 = vpop.f32.mrf.mxu0
        %v4298 = vadd.f32 %v4199, %v4297
        %4299 = vmatprep.mubr.f32.mxu0 %v3973
        %4300 = vmatmul.mubr.f32.gmra.mxu0 %v3972
        %v4301 = vpop.f32.mrf.mxu0
        %v4302 = vadd.f32 %v4195, %v4301
        %v4303 = vpop.f32.mrf.mxu0
        %v4304 = vadd.f32 %v4199, %v4303
        %4305 = vmatprep.mubr.f32.mxu0 %v3975
        %4306 = vmatmul.mubr.f32.gmra.mxu0 %v3974
        %v4307 = vpop.f32.mrf.mxu0
        %v4308 = vadd.f32 %v4195, %v4307
        %v4309 = vpop.f32.mrf.mxu0
        %v4310 = vadd.f32 %v4199, %v4309
        %4311 = vmatprep.mubr.f32.mxu0 %v3977
        %4312 = vmatmul.mubr.f32.gmra.mxu0 %v3976
        %v4313 = vpop.f32.mrf.mxu0
        %v4314 = vadd.f32 %v4195, %v4313
        %v4315 = vpop.f32.mrf.mxu0
        %v4316 = vadd.f32 %v4199, %v4315
        %4317 = vmatprep.mubr.f32.mxu0 %v3979
        %4318 = vmatmul.mubr.f32.gmra.mxu0 %v3978
        %v4319 = vpop.f32.mrf.mxu0
        %v4320 = vadd.f32 %v4195, %v4319
        %v4321 = vpop.f32.mrf.mxu0
        %v4322 = vadd.f32 %v4199, %v4321
        %4323 = vmatprep.mubr.f32.mxu0 %v3981
        %4324 = vmatmul.mubr.f32.gmra.mxu0 %v3980
        %v4325 = vpop.f32.mrf.mxu0
        %v4326 = vadd.f32 %v4195, %v4325
        %v4327 = vpop.f32.mrf.mxu0
        %v4328 = vadd.f32 %v4199, %v4327
        %4329 = vmatprep.mubr.f32.mxu0 %v3983
        %4330 = vmatmul.mubr.f32.gmra.mxu0 %v3982
        %v4331 = vpop.f32.mrf.mxu0
        %v4332 = vadd.f32 %v4195, %v4331
        %v4333 = vpop.f32.mrf.mxu0
        %v4334 = vadd.f32 %v4199, %v4333
        %4335 = vmatprep.mubr.f32.mxu0 %v3985
        %4336 = vmatmul.mubr.f32.gmra.mxu0 %v3984
        %v4337 = vpop.f32.mrf.mxu0
        %v4338 = vadd.f32 %v4195, %v4337
        %v4339 = vpop.f32.mrf.mxu0
        %v4340 = vadd.f32 %v4199, %v4339
        %4341 = vmatprep.mubr.f32.mxu0 %v3987
        %4342 = vmatmul.mubr.f32.gmra.mxu0 %v3986
        %v4343 = vpop.f32.mrf.mxu0
        %v4344 = vadd.f32 %v4195, %v4343
        %v4345 = vpop.f32.mrf.mxu0
        %v4346 = vadd.f32 %v4199, %v4345
        %4347 = vmatprep.mubr.f32.mxu0 %v3989
        %4348 = vmatmul.mubr.f32.gmra.mxu0 %v3988
        %v4349 = vpop.f32.mrf.mxu0
        %v4350 = vadd.f32 %v4195, %v4349
        %v4351 = vpop.f32.mrf.mxu0
        %v4352 = vadd.f32 %v4199, %v4351
        %4353 = vmatprep.mubr.f32.mxu0 %v3991
        %4354 = vmatmul.mubr.f32.gmra.mxu0 %v3990
        %v4355 = vpop.f32.mrf.mxu0
        %v4356 = vadd.f32 %v4195, %v4355
        %v4357 = vpop.f32.mrf.mxu0
        %v4358 = vadd.f32 %v4199, %v4357
        %4359 = vmatprep.mubr.f32.mxu0 %v3993
        %4360 = vmatmul.mubr.f32.gmra.mxu0 %v3992
        %v4361 = vpop.f32.mrf.mxu0
        %v4362 = vadd.f32 %v4195, %v4361
        %v4363 = vpop.f32.mrf.mxu0
        %v4364 = vadd.f32 %v4199, %v4363
        %4365 = vmatprep.mubr.f32.mxu0 %v3995
        %4366 = vmatmul.mubr.f32.gmra.mxu0 %v3994
        %v4367 = vpop.f32.mrf.mxu0
        %v4368 = vadd.f32 %v4195, %v4367
        %v4369 = vpop.f32.mrf.mxu0
        %v4370 = vadd.f32 %v4199, %v4369
        %4371 = vmatprep.mubr.f32.mxu0 %v3997
        %4372 = vmatmul.mubr.f32.gmra.mxu0 %v3996
        %v4373 = vpop.f32.mrf.mxu0
        %v4374 = vadd.f32 %v4195, %v4373
        %v4375 = vpop.f32.mrf.mxu0
        %v4376 = vadd.f32 %v4199, %v4375
        %4377 = vmatprep.mubr.f32.mxu0 %v3999
        %4378 = vmatmul.mubr.f32.gmra.mxu0 %v3998
        %v4379 = vpop.f32.mrf.mxu0
        %v4380 = vadd.f32 %v4195, %v4379
        %v4381 = vpop.f32.mrf.mxu0
        %v4382 = vadd.f32 %v4199, %v4381
        %4383 = vmatprep.mubr.f32.mxu0 %v4001
        %4384 = vmatmul.mubr.f32.gmra.mxu0 %v4000
        %v4385 = vpop.f32.mrf.mxu0
        %v4386 = vadd.f32 %v4195, %v4385
        %v4387 = vpop.f32.mrf.mxu0
        %v4388 = vadd.f32 %v4199, %v4387
        %4389 = vmatprep.mubr.f32.mxu0 %v4003
        %4390 = vmatmul.mubr.f32.gmra.mxu0 %v4002
        %v4391 = vpop.f32.mrf.mxu0
        %v4392 = vadd.f32 %v4195, %v4391
        %v4393 = vpop.f32.mrf.mxu0
        %v4394 = vadd.f32 %v4199, %v4393
        %4395 = vmatprep.mubr.f32.mxu0 %v4005
        %4396 = vmatmul.mubr.f32.gmra.mxu0 %v4004
        %v4397 = vpop.f32.mrf.mxu0
        %v4398 = vadd.f32 %v4195, %v4397
        %v4399 = vpop.f32.mrf.mxu0
        %v4400 = vadd.f32 %v4199, %v4399
        %4401 = vmatprep.mubr.f32.mxu0 %v4007
        %4402 = vmatmul.mubr.f32.gmra.mxu0 %v4006
        %v4403 = vpop.f32.mrf.mxu0
        %v4404 = vadd.f32 %v4195, %v4403
        %v4405 = vpop.f32.mrf.mxu0
        %v4406 = vadd.f32 %v4199, %v4405
        %4407 = vmatprep.mubr.f32.mxu0 %v4009
        %4408 = vmatmul.mubr.f32.gmra.mxu0 %v4008
        %v4409 = vpop.f32.mrf.mxu0
        %v4410 = vadd.f32 %v4195, %v4409
        %v4411 = vpop.f32.mrf.mxu0
        %v4412 = vadd.f32 %v4199, %v4411
        %4413 = vmatprep.mubr.f32.mxu0 %v4011
        %4414 = vmatmul.mubr.f32.gmra.mxu0 %v4010
        %v4415 = vpop.f32.mrf.mxu0
        %v4416 = vadd.f32 %v4195, %v4415
        %v4417 = vpop.f32.mrf.mxu0
        %v4418 = vadd.f32 %v4199, %v4417
        %4419 = vmatprep.mubr.f32.mxu0 %v4013
        %4420 = vmatmul.mubr.f32.gmra.mxu0 %v4012
        %v4421 = vpop.f32.mrf.mxu0
        %v4422 = vadd.f32 %v4195, %v4421
        %v4423 = vpop.f32.mrf.mxu0
        %v4424 = vadd.f32 %v4199, %v4423
        %4425 = vmatprep.mubr.f32.mxu0 %v4015
        %4426 = vmatmul.mubr.f32.gmra.mxu0 %v4014
        %v4427 = vpop.f32.mrf.mxu0
        %v4428 = vadd.f32 %v4195, %v4427
        %v4429 = vpop.f32.mrf.mxu0
        %v4430 = vadd.f32 %v4199, %v4429
        %4431 = vmatprep.mubr.f32.mxu0 %v4017
        %4432 = vmatmul.mubr.f32.gmra.mxu0 %v4016
        %v4433 = vpop.f32.mrf.mxu0
        %v4434 = vadd.f32 %v4195, %v4433
        %v4435 = vpop.f32.mrf.mxu0
        %v4436 = vadd.f32 %v4199, %v4435
        %4437 = vmatprep.mubr.f32.mxu0 %v4019
        %4438 = vmatmul.mubr.f32.gmra.mxu0 %v4018
        %v4439 = vpop.f32.mrf.mxu0
        %v4440 = vadd.f32 %v4195, %v4439
        %v4441 = vpop.f32.mrf.mxu0
        %v4442 = vadd.f32 %v4199, %v4441
        %4443 = vmatprep.mubr.f32.mxu0 %v4021
        %4444 = vmatmul.mubr.f32.gmra.mxu0 %v4020
        %v4445 = vpop.f32.mrf.mxu0
        %v4446 = vadd.f32 %v4195, %v4445
        %v4447 = vpop.f32.mrf.mxu0
        %v4448 = vadd.f32 %v4199, %v4447
        %4449 = vmatprep.mubr.f32.mxu0 %v4023
        %4450 = vmatmul.mubr.f32.gmra.mxu0 %v4022
        %v4451 = vpop.f32.mrf.mxu0
        %v4452 = vadd.f32 %v4195, %v4451
        %v4453 = vpop.f32.mrf.mxu0
        %v4454 = vadd.f32 %v4199, %v4453
        %4455 = vmatprep.mubr.f32.mxu0 %v4025
        %4456 = vmatmul.mubr.f32.gmra.mxu0 %v4024
        %v4457 = vpop.f32.mrf.mxu0
        %v4458 = vadd.f32 %v4195, %v4457
        %v4459 = vpop.f32.mrf.mxu0
        %v4460 = vadd.f32 %v4199, %v4459
        %4461 = vmatprep.mubr.f32.mxu0 %v4027
        %4462 = vmatmul.mubr.f32.gmra.mxu0 %v4026
        %v4463 = vpop.f32.mrf.mxu0
        %v4464 = vadd.f32 %v4195, %v4463
        %v4465 = vpop.f32.mrf.mxu0
        %v4466 = vadd.f32 %v4199, %v4465
        %4467 = vmatprep.mubr.f32.mxu0 %v4029
        %4468 = vmatmul.mubr.f32.gmra.mxu0 %v4028
        %v4469 = vpop.f32.mrf.mxu0
        %v4470 = vadd.f32 %v4195, %v4469
        %v4471 = vpop.f32.mrf.mxu0
        %v4472 = vadd.f32 %v4199, %v4471
        %4473 = vdwg.mxu0
        %4474 = vmatprep.subr.mxu0 %v4108
        %4475 = vmatpush1.msra.mxu0 %v4107
        %4476 = vmatprep.subr.mxu0 %v4103
        %4477 = vmatpush1.msra.mxu0 %v4102
        %4478 = vmatprep.subr.mxu0 %v4098
        %4479 = vmatpush1.msra.mxu0 %v4097
        %4480 = vmatprep.subr.mxu0 %v4093
        %4481 = vmatpush1.msra.mxu0 %v4092
        %4482 = vmatprep.subr.mxu0 %v4088
        %4483 = vmatpush1.msra.mxu0 %v4087
        %4484 = vmatprep.subr.mxu0 %v4083
        %4485 = vmatpush1.msra.mxu0 %v4082
        %4486 = vmatprep.subr.mxu0 %v4078
        %4487 = vmatpush1.msra.mxu0 %v4077
        %4488 = vmatprep.subr.mxu0 %v4073
        %4489 = vmatpush1.msra.mxu0 %v4072
        %4490 = vmatprep.subr.mxu0 %v4068
        %4491 = vmatpush1.msra.mxu0 %v4067
        %4492 = vmatprep.subr.mxu0 %v4063
        %4493 = vmatpush1.msra.mxu0 %v4062
        %4494 = vmatprep.subr.mxu0 %v4058
        %4495 = vmatpush1.msra.mxu0 %v4057
        %4496 = vmatprep.subr.mxu0 %v4053
        %4497 = vmatpush1.msra.mxu0 %v4052
        %4498 = vmatprep.subr.mxu0 %v4048
        %4499 = vmatpush1.msra.mxu0 %v4047
        %4500 = vmatprep.subr.mxu0 %v4043
        %4501 = vmatpush1.msra.mxu0 %v4042
        %4502 = vmatprep.subr.mxu0 %v4038
        %4503 = vmatpush1.msra.mxu0 %v4037
        %4504 = vmatprep.subr.mxu0 %v4033
        %4505 = vmatpush1.msra.mxu0 %v4032
        %4506 = vmatprep.subr.mxu0 %v4188
        %4507 = vmatpush2.msra.mxu0 %v4187
        %4508 = vmatprep.subr.mxu0 %v4183
        %4509 = vmatpush2.msra.mxu0 %v4182
        %4510 = vmatprep.subr.mxu0 %v4178
        %4511 = vmatpush2.msra.mxu0 %v4177
        %4512 = vmatprep.subr.mxu0 %v4173
        %4513 = vmatpush2.msra.mxu0 %v4172
        %4514 = vmatprep.subr.mxu0 %v4168
        %4515 = vmatpush2.msra.mxu0 %v4167
        %4516 = vmatprep.subr.mxu0 %v4163
        %4517 = vmatpush2.msra.mxu0 %v4162
        %4518 = vmatprep.subr.mxu0 %v4158
        %4519 = vmatpush2.msra.mxu0 %v4157
        %4520 = vmatprep.subr.mxu0 %v4153
        %4521 = vmatpush2.msra.mxu0 %v4152
        %4522 = vmatprep.subr.mxu0 %v4148
        %4523 = vmatpush2.msra.mxu0 %v4147
        %4524 = vmatprep.subr.mxu0 %v4143
        %4525 = vmatpush2.msra.mxu0 %v4142
        %4526 = vmatprep.subr.mxu0 %v4138
        %4527 = vmatpush2.msra.mxu0 %v4137
        %4528 = vmatprep.subr.mxu0 %v4133
        %4529 = vmatpush2.msra.mxu0 %v4132
        %4530 = vmatprep.subr.mxu0 %v4128
        %4531 = vmatpush2.msra.mxu0 %v4127
        %4532 = vmatprep.subr.mxu0 %v4123
        %4533 = vmatpush2.msra.mxu0 %v4122
        %4534 = vmatprep.subr.mxu0 %v4118
        %4535 = vmatpush2.msra.mxu0 %v4117
        %4536 = vmatprep.subr.mxu0 %v4113
        %4537 = vmatpush2.msra.mxu0 %v4112
        %4538 = vmatprep.mubr.f32.mxu0 %v3967
        %4539 = vmatmul.mubr.f32.gmra.mxu0 %v3966
        %v4540 = vpop.f32.mrf.mxu0
        %v4541 = vadd.f32 %v4203, %v4540
        %v4542 = vpop.f32.mrf.mxu0
        %v4543 = vadd.f32 %v4207, %v4542
        %4544 = vmatprep.mubr.f32.mxu0 %v3969
        %4545 = vmatmul.mubr.f32.gmra.mxu0 %v3968
        %v4546 = vpop.f32.mrf.mxu0
        %v4547 = vadd.f32 %v4203, %v4546
        %v4548 = vpop.f32.mrf.mxu0
        %v4549 = vadd.f32 %v4207, %v4548
        %4550 = vmatprep.mubr.f32.mxu0 %v3971
        %4551 = vmatmul.mubr.f32.gmra.mxu0 %v3970
        %v4552 = vpop.f32.mrf.mxu0
        %v4553 = vadd.f32 %v4203, %v4552
        %v4554 = vpop.f32.mrf.mxu0
        %v4555 = vadd.f32 %v4207, %v4554
        %4556 = vmatprep.mubr.f32.mxu0 %v3973
        %4557 = vmatmul.mubr.f32.gmra.mxu0 %v3972
        %v4558 = vpop.f32.mrf.mxu0
        %v4559 = vadd.f32 %v4203, %v4558
        %v4560 = vpop.f32.mrf.mxu0
        %v4561 = vadd.f32 %v4207, %v4560
        %4562 = vmatprep.mubr.f32.mxu0 %v3975
        %4563 = vmatmul.mubr.f32.gmra.mxu0 %v3974
        %v4564 = vpop.f32.mrf.mxu0
        %v4565 = vadd.f32 %v4203, %v4564
        %v4566 = vpop.f32.mrf.mxu0
        %v4567 = vadd.f32 %v4207, %v4566
        %4568 = vmatprep.mubr.f32.mxu0 %v3977
        %4569 = vmatmul.mubr.f32.gmra.mxu0 %v3976
        %v4570 = vpop.f32.mrf.mxu0
        %v4571 = vadd.f32 %v4203, %v4570
        %v4572 = vpop.f32.mrf.mxu0
        %v4573 = vadd.f32 %v4207, %v4572
        %4574 = vmatprep.mubr.f32.mxu0 %v3979
        %4575 = vmatmul.mubr.f32.gmra.mxu0 %v3978
        %v4576 = vpop.f32.mrf.mxu0
        %v4577 = vadd.f32 %v4203, %v4576
        %v4578 = vpop.f32.mrf.mxu0
        %v4579 = vadd.f32 %v4207, %v4578
        %4580 = vmatprep.mubr.f32.mxu0 %v3981
        %4581 = vmatmul.mubr.f32.gmra.mxu0 %v3980
        %v4582 = vpop.f32.mrf.mxu0
        %v4583 = vadd.f32 %v4203, %v4582
        %v4584 = vpop.f32.mrf.mxu0
        %v4585 = vadd.f32 %v4207, %v4584
        %4586 = vmatprep.mubr.f32.mxu0 %v3983
        %4587 = vmatmul.mubr.f32.gmra.mxu0 %v3982
        %v4588 = vpop.f32.mrf.mxu0
        %v4589 = vadd.f32 %v4203, %v4588
        %v4590 = vpop.f32.mrf.mxu0
        %v4591 = vadd.f32 %v4207, %v4590
        %4592 = vmatprep.mubr.f32.mxu0 %v3985
        %4593 = vmatmul.mubr.f32.gmra.mxu0 %v3984
        %v4594 = vpop.f32.mrf.mxu0
        %v4595 = vadd.f32 %v4203, %v4594
        %v4596 = vpop.f32.mrf.mxu0
        %v4597 = vadd.f32 %v4207, %v4596
        %4598 = vmatprep.mubr.f32.mxu0 %v3987
        %4599 = vmatmul.mubr.f32.gmra.mxu0 %v3986
        %v4600 = vpop.f32.mrf.mxu0
        %v4601 = vadd.f32 %v4203, %v4600
        %v4602 = vpop.f32.mrf.mxu0
        %v4603 = vadd.f32 %v4207, %v4602
        %4604 = vmatprep.mubr.f32.mxu0 %v3989
        %4605 = vmatmul.mubr.f32.gmra.mxu0 %v3988
        %v4606 = vpop.f32.mrf.mxu0
        %v4607 = vadd.f32 %v4203, %v4606
        %v4608 = vpop.f32.mrf.mxu0
        %v4609 = vadd.f32 %v4207, %v4608
        %4610 = vmatprep.mubr.f32.mxu0 %v3991
        %4611 = vmatmul.mubr.f32.gmra.mxu0 %v3990
        %v4612 = vpop.f32.mrf.mxu0
        %v4613 = vadd.f32 %v4203, %v4612
        %v4614 = vpop.f32.mrf.mxu0
        %v4615 = vadd.f32 %v4207, %v4614
        %4616 = vmatprep.mubr.f32.mxu0 %v3993
        %4617 = vmatmul.mubr.f32.gmra.mxu0 %v3992
        %v4618 = vpop.f32.mrf.mxu0
        %v4619 = vadd.f32 %v4203, %v4618
        %v4620 = vpop.f32.mrf.mxu0
        %v4621 = vadd.f32 %v4207, %v4620
        %4622 = vmatprep.mubr.f32.mxu0 %v3995
        %4623 = vmatmul.mubr.f32.gmra.mxu0 %v3994
        %v4624 = vpop.f32.mrf.mxu0
        %v4625 = vadd.f32 %v4203, %v4624
        %v4626 = vpop.f32.mrf.mxu0
        %v4627 = vadd.f32 %v4207, %v4626
        %4628 = vmatprep.mubr.f32.mxu0 %v3997
        %4629 = vmatmul.mubr.f32.gmra.mxu0 %v3996
        %v4630 = vpop.f32.mrf.mxu0
        %v4631 = vadd.f32 %v4203, %v4630
        %v4632 = vpop.f32.mrf.mxu0
        %v4633 = vadd.f32 %v4207, %v4632
        %4634 = vmatprep.mubr.f32.mxu0 %v3999
        %4635 = vmatmul.mubr.f32.gmra.mxu0 %v3998
        %v4636 = vpop.f32.mrf.mxu0
        %v4637 = vadd.f32 %v4203, %v4636
        %v4638 = vpop.f32.mrf.mxu0
        %v4639 = vadd.f32 %v4207, %v4638
        %4640 = vmatprep.mubr.f32.mxu0 %v4001
        %4641 = vmatmul.mubr.f32.gmra.mxu0 %v4000
        %v4642 = vpop.f32.mrf.mxu0
        %v4643 = vadd.f32 %v4203, %v4642
        %v4644 = vpop.f32.mrf.mxu0
        %v4645 = vadd.f32 %v4207, %v4644
        %4646 = vmatprep.mubr.f32.mxu0 %v4003
        %4647 = vmatmul.mubr.f32.gmra.mxu0 %v4002
        %v4648 = vpop.f32.mrf.mxu0
        %v4649 = vadd.f32 %v4203, %v4648
        %v4650 = vpop.f32.mrf.mxu0
        %v4651 = vadd.f32 %v4207, %v4650
        %4652 = vmatprep.mubr.f32.mxu0 %v4005
        %4653 = vmatmul.mubr.f32.gmra.mxu0 %v4004
        %v4654 = vpop.f32.mrf.mxu0
        %v4655 = vadd.f32 %v4203, %v4654
        %v4656 = vpop.f32.mrf.mxu0
        %v4657 = vadd.f32 %v4207, %v4656
        %4658 = vmatprep.mubr.f32.mxu0 %v4007
        %4659 = vmatmul.mubr.f32.gmra.mxu0 %v4006
        %v4660 = vpop.f32.mrf.mxu0
        %v4661 = vadd.f32 %v4203, %v4660
        %v4662 = vpop.f32.mrf.mxu0
        %v4663 = vadd.f32 %v4207, %v4662
        %4664 = vmatprep.mubr.f32.mxu0 %v4009
        %4665 = vmatmul.mubr.f32.gmra.mxu0 %v4008
        %v4666 = vpop.f32.mrf.mxu0
        %v4667 = vadd.f32 %v4203, %v4666
        %v4668 = vpop.f32.mrf.mxu0
        %v4669 = vadd.f32 %v4207, %v4668
        %4670 = vmatprep.mubr.f32.mxu0 %v4011
        %4671 = vmatmul.mubr.f32.gmra.mxu0 %v4010
        %v4672 = vpop.f32.mrf.mxu0
        %v4673 = vadd.f32 %v4203, %v4672
        %v4674 = vpop.f32.mrf.mxu0
        %v4675 = vadd.f32 %v4207, %v4674
        %4676 = vmatprep.mubr.f32.mxu0 %v4013
        %4677 = vmatmul.mubr.f32.gmra.mxu0 %v4012
        %v4678 = vpop.f32.mrf.mxu0
        %v4679 = vadd.f32 %v4203, %v4678
        %v4680 = vpop.f32.mrf.mxu0
        %v4681 = vadd.f32 %v4207, %v4680
        %4682 = vmatprep.mubr.f32.mxu0 %v4015
        %4683 = vmatmul.mubr.f32.gmra.mxu0 %v4014
        %v4684 = vpop.f32.mrf.mxu0
        %v4685 = vadd.f32 %v4203, %v4684
        %v4686 = vpop.f32.mrf.mxu0
        %v4687 = vadd.f32 %v4207, %v4686
        %4688 = vmatprep.mubr.f32.mxu0 %v4017
        %4689 = vmatmul.mubr.f32.gmra.mxu0 %v4016
        %v4690 = vpop.f32.mrf.mxu0
        %v4691 = vadd.f32 %v4203, %v4690
        %v4692 = vpop.f32.mrf.mxu0
        %v4693 = vadd.f32 %v4207, %v4692
        %4694 = vmatprep.mubr.f32.mxu0 %v4019
        %4695 = vmatmul.mubr.f32.gmra.mxu0 %v4018
        %v4696 = vpop.f32.mrf.mxu0
        %v4697 = vadd.f32 %v4203, %v4696
        %v4698 = vpop.f32.mrf.mxu0
        %v4699 = vadd.f32 %v4207, %v4698
        %4700 = vmatprep.mubr.f32.mxu0 %v4021
        %4701 = vmatmul.mubr.f32.gmra.mxu0 %v4020
        %v4702 = vpop.f32.mrf.mxu0
        %v4703 = vadd.f32 %v4203, %v4702
        %v4704 = vpop.f32.mrf.mxu0
        %v4705 = vadd.f32 %v4207, %v4704
        %4706 = vmatprep.mubr.f32.mxu0 %v4023
        %4707 = vmatmul.mubr.f32.gmra.mxu0 %v4022
        %v4708 = vpop.f32.mrf.mxu0
        %v4709 = vadd.f32 %v4203, %v4708
        %v4710 = vpop.f32.mrf.mxu0
        %v4711 = vadd.f32 %v4207, %v4710
        %4712 = vmatprep.mubr.f32.mxu0 %v4025
        %4713 = vmatmul.mubr.f32.gmra.mxu0 %v4024
        %v4714 = vpop.f32.mrf.mxu0
        %v4715 = vadd.f32 %v4203, %v4714
        %v4716 = vpop.f32.mrf.mxu0
        %v4717 = vadd.f32 %v4207, %v4716
        %4718 = vmatprep.mubr.f32.mxu0 %v4027
        %4719 = vmatmul.mubr.f32.gmra.mxu0 %v4026
        %v4720 = vpop.f32.mrf.mxu0
        %v4721 = vadd.f32 %v4203, %v4720
        %v4722 = vpop.f32.mrf.mxu0
        %v4723 = vadd.f32 %v4207, %v4722
        %4724 = vmatprep.mubr.f32.mxu0 %v4029
        %4725 = vmatmul.mubr.f32.gmra.mxu0 %v4028
        %v4726 = vpop.f32.mrf.mxu0
        %v4727 = vadd.f32 %v4203, %v4726
        %v4728 = vpop.f32.mrf.mxu0
        %v4729 = vadd.f32 %v4207, %v4728
        %4730 = vdwg.mxu0
        %4731 = vmatprep.subr.mxu0 0.0
        %4732 = vmatpush1.msra.mxu0 %v4109
        %4733 = vmatprep.subr.mxu0 0.0
        %4734 = vmatpush1.msra.mxu0 %v4104
        %4735 = vmatprep.subr.mxu0 0.0
        %4736 = vmatpush1.msra.mxu0 %v4099
        %4737 = vmatprep.subr.mxu0 0.0
        %4738 = vmatpush1.msra.mxu0 %v4094
        %4739 = vmatprep.subr.mxu0 0.0
        %4740 = vmatpush1.msra.mxu0 %v4089
        %4741 = vmatprep.subr.mxu0 0.0
        %4742 = vmatpush1.msra.mxu0 %v4084
        %4743 = vmatprep.subr.mxu0 0.0
        %4744 = vmatpush1.msra.mxu0 %v4079
        %4745 = vmatprep.subr.mxu0 0.0
        %4746 = vmatpush1.msra.mxu0 %v4074
        %4747 = vmatprep.subr.mxu0 0.0
        %4748 = vmatpush1.msra.mxu0 %v4069
        %4749 = vmatprep.subr.mxu0 0.0
        %4750 = vmatpush1.msra.mxu0 %v4064
        %4751 = vmatprep.subr.mxu0 0.0
        %4752 = vmatpush1.msra.mxu0 %v4059
        %4753 = vmatprep.subr.mxu0 0.0
        %4754 = vmatpush1.msra.mxu0 %v4054
        %4755 = vmatprep.subr.mxu0 0.0
        %4756 = vmatpush1.msra.mxu0 %v4049
        %4757 = vmatprep.subr.mxu0 0.0
        %4758 = vmatpush1.msra.mxu0 %v4044
        %4759 = vmatprep.subr.mxu0 0.0
        %4760 = vmatpush1.msra.mxu0 %v4039
        %4761 = vmatprep.subr.mxu0 0.0
        %4762 = vmatpush1.msra.mxu0 %v4034
        %4763 = vmatprep.subr.mxu0 0.0
        %4764 = vmatpush2.msra.mxu0 %v4189
        %4765 = vmatprep.subr.mxu0 0.0
        %4766 = vmatpush2.msra.mxu0 %v4184
        %4767 = vmatprep.subr.mxu0 0.0
        %4768 = vmatpush2.msra.mxu0 %v4179
        %4769 = vmatprep.subr.mxu0 0.0
        %4770 = vmatpush2.msra.mxu0 %v4174
        %4771 = vmatprep.subr.mxu0 0.0
        %4772 = vmatpush2.msra.mxu0 %v4169
        %4773 = vmatprep.subr.mxu0 0.0
        %4774 = vmatpush2.msra.mxu0 %v4164
        %4775 = vmatprep.subr.mxu0 0.0
        %4776 = vmatpush2.msra.mxu0 %v4159
        %4777 = vmatprep.subr.mxu0 0.0
        %4778 = vmatpush2.msra.mxu0 %v4154
        %4779 = vmatprep.subr.mxu0 0.0
        %4780 = vmatpush2.msra.mxu0 %v4149
        %4781 = vmatprep.subr.mxu0 0.0
        %4782 = vmatpush2.msra.mxu0 %v4144
        %4783 = vmatprep.subr.mxu0 0.0
        %4784 = vmatpush2.msra.mxu0 %v4139
        %4785 = vmatprep.subr.mxu0 0.0
        %4786 = vmatpush2.msra.mxu0 %v4134
        %4787 = vmatprep.subr.mxu0 0.0
        %4788 = vmatpush2.msra.mxu0 %v4129
        %4789 = vmatprep.subr.mxu0 0.0
        %4790 = vmatpush2.msra.mxu0 %v4124
        %4791 = vmatprep.subr.mxu0 0.0
        %4792 = vmatpush2.msra.mxu0 %v4119
        %4793 = vmatprep.subr.mxu0 0.0
        %4794 = vmatpush2.msra.mxu0 %v4114
        %4795 = vmatprep.mubr.f32.mxu0 %v3967
        %4796 = vmatmul.mubr.f32.gmra.mxu0 %v3966
        %v4797 = vpop.f32.mrf.mxu0
        %v4798 = vadd.f32 %v4211, %v4797
        %v4799 = vpop.f32.mrf.mxu0
        %4800 = vmatprep.mubr.f32.mxu0 %v3969
        %4801 = vmatmul.mubr.f32.gmra.mxu0 %v3968
        %v4802 = vpop.f32.mrf.mxu0
        %v4803 = vadd.f32 %v4211, %v4802
        %v4804 = vpop.f32.mrf.mxu0
        %4805 = vmatprep.mubr.f32.mxu0 %v3971
        %4806 = vmatmul.mubr.f32.gmra.mxu0 %v3970
        %v4807 = vpop.f32.mrf.mxu0
        %v4808 = vadd.f32 %v4211, %v4807
        %v4809 = vpop.f32.mrf.mxu0
        %4810 = vmatprep.mubr.f32.mxu0 %v3973
        %4811 = vmatmul.mubr.f32.gmra.mxu0 %v3972
        %v4812 = vpop.f32.mrf.mxu0
        %v4813 = vadd.f32 %v4211, %v4812
        %v4814 = vpop.f32.mrf.mxu0
        %4815 = vmatprep.mubr.f32.mxu0 %v3975
        %4816 = vmatmul.mubr.f32.gmra.mxu0 %v3974
        %v4817 = vpop.f32.mrf.mxu0
        %v4818 = vadd.f32 %v4211, %v4817
        %v4819 = vpop.f32.mrf.mxu0
        %4820 = vmatprep.mubr.f32.mxu0 %v3977
        %4821 = vmatmul.mubr.f32.gmra.mxu0 %v3976
        %v4822 = vpop.f32.mrf.mxu0
        %v4823 = vadd.f32 %v4211, %v4822
        %v4824 = vpop.f32.mrf.mxu0
        %4825 = vmatprep.mubr.f32.mxu0 %v3979
        %4826 = vmatmul.mubr.f32.gmra.mxu0 %v3978
        %v4827 = vpop.f32.mrf.mxu0
        %v4828 = vadd.f32 %v4211, %v4827
        %v4829 = vpop.f32.mrf.mxu0
        %4830 = vmatprep.mubr.f32.mxu0 %v3981
        %4831 = vmatmul.mubr.f32.gmra.mxu0 %v3980
        %v4832 = vpop.f32.mrf.mxu0
        %v4833 = vadd.f32 %v4211, %v4832
        %v4834 = vpop.f32.mrf.mxu0
        %4835 = vmatprep.mubr.f32.mxu0 %v3983
        %4836 = vmatmul.mubr.f32.gmra.mxu0 %v3982
        %v4837 = vpop.f32.mrf.mxu0
        %v4838 = vadd.f32 %v4211, %v4837
        %v4839 = vpop.f32.mrf.mxu0
        %4840 = vmatprep.mubr.f32.mxu0 %v3985
        %4841 = vmatmul.mubr.f32.gmra.mxu0 %v3984
        %v4842 = vpop.f32.mrf.mxu0
        %v4843 = vadd.f32 %v4211, %v4842
        %v4844 = vpop.f32.mrf.mxu0
        %4845 = vmatprep.mubr.f32.mxu0 %v3987
        %4846 = vmatmul.mubr.f32.gmra.mxu0 %v3986
        %v4847 = vpop.f32.mrf.mxu0
        %v4848 = vadd.f32 %v4211, %v4847
        %v4849 = vpop.f32.mrf.mxu0
        %4850 = vmatprep.mubr.f32.mxu0 %v3989
        %4851 = vmatmul.mubr.f32.gmra.mxu0 %v3988
        %v4852 = vpop.f32.mrf.mxu0
        %v4853 = vadd.f32 %v4211, %v4852
        %v4854 = vpop.f32.mrf.mxu0
        %4855 = vmatprep.mubr.f32.mxu0 %v3991
        %4856 = vmatmul.mubr.f32.gmra.mxu0 %v3990
        %v4857 = vpop.f32.mrf.mxu0
        %v4858 = vadd.f32 %v4211, %v4857
        %v4859 = vpop.f32.mrf.mxu0
        %4860 = vmatprep.mubr.f32.mxu0 %v3993
        %4861 = vmatmul.mubr.f32.gmra.mxu0 %v3992
        %v4862 = vpop.f32.mrf.mxu0
        %v4863 = vadd.f32 %v4211, %v4862
        %v4864 = vpop.f32.mrf.mxu0
        %4865 = vmatprep.mubr.f32.mxu0 %v3995
        %4866 = vmatmul.mubr.f32.gmra.mxu0 %v3994
        %v4867 = vpop.f32.mrf.mxu0
        %v4868 = vadd.f32 %v4211, %v4867
        %v4869 = vpop.f32.mrf.mxu0
        %4870 = vmatprep.mubr.f32.mxu0 %v3997
        %4871 = vmatmul.mubr.f32.gmra.mxu0 %v3996
        %v4872 = vpop.f32.mrf.mxu0
        %v4873 = vadd.f32 %v4211, %v4872
        %v4874 = vpop.f32.mrf.mxu0
        %4875 = vmatprep.mubr.f32.mxu0 %v3999
        %4876 = vmatmul.mubr.f32.gmra.mxu0 %v3998
        %v4877 = vpop.f32.mrf.mxu0
        %v4878 = vadd.f32 %v4211, %v4877
        %v4879 = vpop.f32.mrf.mxu0
        %4880 = vmatprep.mubr.f32.mxu0 %v4001
        %4881 = vmatmul.mubr.f32.gmra.mxu0 %v4000
        %v4882 = vpop.f32.mrf.mxu0
        %v4883 = vadd.f32 %v4211, %v4882
        %v4884 = vpop.f32.mrf.mxu0
        %4885 = vmatprep.mubr.f32.mxu0 %v4003
        %4886 = vmatmul.mubr.f32.gmra.mxu0 %v4002
        %v4887 = vpop.f32.mrf.mxu0
        %v4888 = vadd.f32 %v4211, %v4887
        %v4889 = vpop.f32.mrf.mxu0
        %4890 = vmatprep.mubr.f32.mxu0 %v4005
        %4891 = vmatmul.mubr.f32.gmra.mxu0 %v4004
        %v4892 = vpop.f32.mrf.mxu0
        %v4893 = vadd.f32 %v4211, %v4892
        %v4894 = vpop.f32.mrf.mxu0
        %4895 = vmatprep.mubr.f32.mxu0 %v4007
        %4896 = vmatmul.mubr.f32.gmra.mxu0 %v4006
        %v4897 = vpop.f32.mrf.mxu0
        %v4898 = vadd.f32 %v4211, %v4897
        %v4899 = vpop.f32.mrf.mxu0
        %4900 = vmatprep.mubr.f32.mxu0 %v4009
        %4901 = vmatmul.mubr.f32.gmra.mxu0 %v4008
        %v4902 = vpop.f32.mrf.mxu0
        %v4903 = vadd.f32 %v4211, %v4902
        %v4904 = vpop.f32.mrf.mxu0
        %4905 = vmatprep.mubr.f32.mxu0 %v4011
        %4906 = vmatmul.mubr.f32.gmra.mxu0 %v4010
        %v4907 = vpop.f32.mrf.mxu0
        %v4908 = vadd.f32 %v4211, %v4907
        %v4909 = vpop.f32.mrf.mxu0
        %4910 = vmatprep.mubr.f32.mxu0 %v4013
        %4911 = vmatmul.mubr.f32.gmra.mxu0 %v4012
        %v4912 = vpop.f32.mrf.mxu0
        %v4913 = vadd.f32 %v4211, %v4912
        %v4914 = vpop.f32.mrf.mxu0
        %4915 = vmatprep.mubr.f32.mxu0 %v4015
        %4916 = vmatmul.mubr.f32.gmra.mxu0 %v4014
        %v4917 = vpop.f32.mrf.mxu0
        %v4918 = vadd.f32 %v4211, %v4917
        %v4919 = vpop.f32.mrf.mxu0
        %4920 = vmatprep.mubr.f32.mxu0 %v4017
        %4921 = vmatmul.mubr.f32.gmra.mxu0 %v4016
        %v4922 = vpop.f32.mrf.mxu0
        %v4923 = vadd.f32 %v4211, %v4922
        %v4924 = vpop.f32.mrf.mxu0
        %4925 = vmatprep.mubr.f32.mxu0 %v4019
        %4926 = vmatmul.mubr.f32.gmra.mxu0 %v4018
        %v4927 = vpop.f32.mrf.mxu0
        %v4928 = vadd.f32 %v4211, %v4927
        %v4929 = vpop.f32.mrf.mxu0
        %4930 = vmatprep.mubr.f32.mxu0 %v4021
        %4931 = vmatmul.mubr.f32.gmra.mxu0 %v4020
        %v4932 = vpop.f32.mrf.mxu0
        %v4933 = vadd.f32 %v4211, %v4932
        %v4934 = vpop.f32.mrf.mxu0
        %4935 = vmatprep.mubr.f32.mxu0 %v4023
        %4936 = vmatmul.mubr.f32.gmra.mxu0 %v4022
        %v4937 = vpop.f32.mrf.mxu0
        %v4938 = vadd.f32 %v4211, %v4937
        %v4939 = vpop.f32.mrf.mxu0
        %4940 = vmatprep.mubr.f32.mxu0 %v4025
        %4941 = vmatmul.mubr.f32.gmra.mxu0 %v4024
        %v4942 = vpop.f32.mrf.mxu0
        %v4943 = vadd.f32 %v4211, %v4942
        %v4944 = vpop.f32.mrf.mxu0
        %4945 = vmatprep.mubr.f32.mxu0 %v4027
        %4946 = vmatmul.mubr.f32.gmra.mxu0 %v4026
        %v4947 = vpop.f32.mrf.mxu0
        %v4948 = vadd.f32 %v4211, %v4947
        %v4949 = vpop.f32.mrf.mxu0
        %4950 = vmatprep.mubr.f32.mxu0 %v4029
        %4951 = vmatmul.mubr.f32.gmra.mxu0 %v4028
        %v4952 = vpop.f32.mrf.mxu0
        %v4953 = vadd.f32 %v4211, %v4952
        %v4954 = vpop.f32.mrf.mxu0
        %4955 = vdwg.mxu0
        %v4956 = vtanh.pop %v4284
        %v4957 = vtanh.pop %v4286
        %v4958 = vtanh.pop %v4541
        %v4959 = vtanh.pop %v4543
        %v4960 = vtanh.pop %v4798
        %v4961 = vtanh.pop %v4290
        %v4962 = vtanh.pop %v4292
        %v4963 = vtanh.pop %v4547
        %v4964 = vtanh.pop %v4549
        %v4965 = vtanh.pop %v4803
        %v4966 = vtanh.pop %v4296
        %v4967 = vtanh.pop %v4298
        %v4968 = vtanh.pop %v4553
        %v4969 = vtanh.pop %v4555
        %v4970 = vtanh.pop %v4808
        %v4971 = vtanh.pop %v4302
        %v4972 = vtanh.pop %v4304
        %v4973 = vtanh.pop %v4559
        %v4974 = vtanh.pop %v4561
        %v4975 = vtanh.pop %v4813
        %v4976 = vtanh.pop %v4308
        %v4977 = vtanh.pop %v4310
        %v4978 = vtanh.pop %v4565
        %v4979 = vtanh.pop %v4567
        %v4980 = vtanh.pop %v4818
        %v4981 = vtanh.pop %v4314
        %v4982 = vtanh.pop %v4316
        %v4983 = vtanh.pop %v4571
        %v4984 = vtanh.pop %v4573
        %v4985 = vtanh.pop %v4823
        %v4986 = vtanh.pop %v4320
        %v4987 = vtanh.pop %v4322
        %v4988 = vtanh.pop %v4577
        %v4989 = vtanh.pop %v4579
        %v4990 = vtanh.pop %v4828
        %v4991 = vtanh.pop %v4326
        %v4992 = vtanh.pop %v4328
        %v4993 = vtanh.pop %v4583
        %v4994 = vtanh.pop %v4585
        %v4995 = vtanh.pop %v4833
        %v4996 = vtanh.pop %v4332
        %v4997 = vtanh.pop %v4334
        %v4998 = vtanh.pop %v4589
        %v4999 = vtanh.pop %v4591
        %v5000 = vtanh.pop %v4838
        %v5001 = vtanh.pop %v4338
        %v5002 = vtanh.pop %v4340
        %v5003 = vtanh.pop %v4595
        %v5004 = vtanh.pop %v4597
        %v5005 = vtanh.pop %v4843
        %v5006 = vtanh.pop %v4344
        %v5007 = vtanh.pop %v4346
        %v5008 = vtanh.pop %v4601
        %v5009 = vtanh.pop %v4603
        %v5010 = vtanh.pop %v4848
        %v5011 = vtanh.pop %v4350
        %v5012 = vtanh.pop %v4352
        %v5013 = vtanh.pop %v4607
        %v5014 = vtanh.pop %v4609
        %v5015 = vtanh.pop %v4853
        %v5016 = vtanh.pop %v4356
        %v5017 = vtanh.pop %v4358
        %v5018 = vtanh.pop %v4613
        %v5019 = vtanh.pop %v4615
        %v5020 = vtanh.pop %v4858
        %v5021 = vtanh.pop %v4362
        %v5022 = vtanh.pop %v4364
        %v5023 = vtanh.pop %v4619
        %v5024 = vtanh.pop %v4621
        %v5025 = vtanh.pop %v4863
        %v5026 = vtanh.pop %v4368
        %v5027 = vtanh.pop %v4370
        %v5028 = vtanh.pop %v4625
        %v5029 = vtanh.pop %v4627
        %v5030 = vtanh.pop %v4868
        %v5031 = vtanh.pop %v4374
        %v5032 = vtanh.pop %v4376
        %v5033 = vtanh.pop %v4631
        %v5034 = vtanh.pop %v4633
        %v5035 = vtanh.pop %v4873
        %v5036 = vtanh.pop %v4380
        %v5037 = vtanh.pop %v4382
        %v5038 = vtanh.pop %v4637
        %v5039 = vtanh.pop %v4639
        %v5040 = vtanh.pop %v4878
        %v5041 = vtanh.pop %v4386
        %v5042 = vtanh.pop %v4388
        %v5043 = vtanh.pop %v4643
        %v5044 = vtanh.pop %v4645
        %v5045 = vtanh.pop %v4883
        %v5046 = vtanh.pop %v4392
        %v5047 = vtanh.pop %v4394
        %v5048 = vtanh.pop %v4649
        %v5049 = vtanh.pop %v4651
        %v5050 = vtanh.pop %v4888
        %v5051 = vtanh.pop %v4398
        %v5052 = vtanh.pop %v4400
        %v5053 = vtanh.pop %v4655
        %v5054 = vtanh.pop %v4657
        %v5055 = vtanh.pop %v4893
        %v5056 = vtanh.pop %v4404
        %v5057 = vtanh.pop %v4406
        %v5058 = vtanh.pop %v4661
        %v5059 = vtanh.pop %v4663
        %v5060 = vtanh.pop %v4898
        %v5061 = vtanh.pop %v4410
        %v5062 = vtanh.pop %v4412
        %v5063 = vtanh.pop %v4667
        %v5064 = vtanh.pop %v4669
        %v5065 = vtanh.pop %v4903
        %v5066 = vtanh.pop %v4416
        %v5067 = vtanh.pop %v4418
        %v5068 = vtanh.pop %v4673
        %v5069 = vtanh.pop %v4675
        %v5070 = vtanh.pop %v4908
        %v5071 = vtanh.pop %v4422
        %v5072 = vtanh.pop %v4424
        %v5073 = vtanh.pop %v4679
        %v5074 = vtanh.pop %v4681
        %v5075 = vtanh.pop %v4913
        %v5076 = vtanh.pop %v4428
        %v5077 = vtanh.pop %v4430
        %v5078 = vtanh.pop %v4685
        %v5079 = vtanh.pop %v4687
        %v5080 = vtanh.pop %v4918
        %v5081 = vtanh.pop %v4434
        %v5082 = vtanh.pop %v4436
        %v5083 = vtanh.pop %v4691
        %v5084 = vtanh.pop %v4693
        %v5085 = vtanh.pop %v4923
        %v5086 = vtanh.pop %v4440
        %v5087 = vtanh.pop %v4442
        %v5088 = vtanh.pop %v4697
        %v5089 = vtanh.pop %v4699
        %v5090 = vtanh.pop %v4928
        %v5091 = vtanh.pop %v4446
        %v5092 = vtanh.pop %v4448
        %v5093 = vtanh.pop %v4703
        %v5094 = vtanh.pop %v4705
        %v5095 = vtanh.pop %v4933
        %v5096 = vtanh.pop %v4452
        %v5097 = vtanh.pop %v4454
        %v5098 = vtanh.pop %v4709
        %v5099 = vtanh.pop %v4711
        %v5100 = vtanh.pop %v4938
        %v5101 = vtanh.pop %v4458
        %v5102 = vtanh.pop %v4460
        %v5103 = vtanh.pop %v4715
        %v5104 = vtanh.pop %v4717
        %v5105 = vtanh.pop %v4943
        %v5106 = vtanh.pop %v4464
        %v5107 = vtanh.pop %v4466
        %v5108 = vtanh.pop %v4721
        %v5109 = vtanh.pop %v4723
        %v5110 = vtanh.pop %v4948
        %v5111 = vtanh.pop %v4470
        %v5112 = vtanh.pop %v4472
        %v5113 = vtanh.pop %v4727
        %v5114 = vtanh.pop %v4729
        %v5115 = vtanh.pop %v4953
        %v5116 = vld [vmem:[%s15] sm:$0xff]
        %v5117 = vld [vmem:[%s15 + $0x8] sm:$0xff]
        %v5118 = vld [vmem:[%s15 + $0x10] sm:$0xff]
        %v5119 = vld [vmem:[%s15 + $0x18] sm:$0xff]
        %v5120 = vld [vmem:[%s15 + $0x20] sm:$0xff]
        %v5121 = vld [vmem:[%s15 + $0x28] sm:$0xff]
        %v5122 = vld [vmem:[%s15 + $0x30] sm:$0xff]
        %v5123 = vld [vmem:[%s15 + $0x38] sm:$0xff]
        %v5124 = vld [vmem:[%s15 + $0x40] sm:$0xff]
        %v5125 = vld [vmem:[%s15 + $0x48] sm:$0xff]
        %v5126 = vld [vmem:[%s15 + $0x50] sm:$0xff]
        %v5127 = vld [vmem:[%s15 + $0x58] sm:$0xff]
        %v5128 = vld [vmem:[%s15 + $0x60] sm:$0xff]
        %v5129 = vld [vmem:[%s15 + $0x68] sm:$0xff]
        %v5130 = vld [vmem:[%s15 + $0x70] sm:$0xff]
        %v5131 = vld [vmem:[%s15 + $0x78] sm:$0xff]
        %v5132 = vld [vmem:[%s15 + $0x80] sm:$0xff]
        %v5133 = vld [vmem:[%s15 + $0x88] sm:$0xff]
        %v5134 = vld [vmem:[%s15 + $0x90] sm:$0xff]
        %v5135 = vld [vmem:[%s15 + $0x98] sm:$0xff]
        %v5136 = vld [vmem:[%s15 + $0xa0] sm:$0xff]
        %v5137 = vld [vmem:[%s15 + $0xa8] sm:$0xff]
        %v5138 = vld [vmem:[%s15 + $0xb0] sm:$0xff]
        %v5139 = vld [vmem:[%s15 + $0xb8] sm:$0xff]
        %v5140 = vld [vmem:[%s15 + $0xc0] sm:$0xff]
        %v5141 = vld [vmem:[%s15 + $0xc8] sm:$0xff]
        %v5142 = vld [vmem:[%s15 + $0xd0] sm:$0xff]
        %v5143 = vld [vmem:[%s15 + $0xd8] sm:$0xff]
        %v5144 = vld [vmem:[%s15 + $0xe0] sm:$0xff]
        %v5145 = vld [vmem:[%s15 + $0xe8] sm:$0xff]
        %v5146 = vld [vmem:[%s15 + $0xf0] sm:$0xff]
        %v5147 = vld [vmem:[%s15 + $0xf8] sm:$0xff]
        %v5148 = vld [vmem:[%s15 + $0x100] sm:$0xff]
        %v5149 = vld [vmem:[%s15 + $0x108] sm:$0xff]
        %v5150 = vld [vmem:[%s15 + $0x110] sm:$0xff]
        %v5151 = vld [vmem:[%s15 + $0x118] sm:$0xff]
        %v5152 = vld [vmem:[%s15 + $0x120] sm:$0xff]
        %v5153 = vld [vmem:[%s15 + $0x128] sm:$0xff]
        %v5154 = vld [vmem:[%s15 + $0x130] sm:$0xff]
        %v5155 = vld [vmem:[%s15 + $0x138] sm:$0xff]
        %v5156 = vld [vmem:[%s15 + $0x140] sm:$0xff]
        %v5157 = vld [vmem:[%s15 + $0x148] sm:$0xff]
        %v5158 = vld [vmem:[%s15 + $0x150] sm:$0xff]
        %v5159 = vld [vmem:[%s15 + $0x158] sm:$0xff]
        %v5160 = vld [vmem:[%s15 + $0x160] sm:$0xff]
        %v5161 = vld [vmem:[%s15 + $0x168] sm:$0xff]
        %v5162 = vld [vmem:[%s15 + $0x170] sm:$0xff]
        %v5163 = vld [vmem:[%s15 + $0x178] sm:$0xff]
        %v5164 = vld [vmem:[%s15 + $0x180] sm:$0xff]
        %v5165 = vld [vmem:[%s15 + $0x188] sm:$0xff]
        %v5166 = vld [vmem:[%s15 + $0x190] sm:$0xff]
        %v5167 = vld [vmem:[%s15 + $0x198] sm:$0xff]
        %v5168 = vld [vmem:[%s15 + $0x1a0] sm:$0xff]
        %v5169 = vld [vmem:[%s15 + $0x1a8] sm:$0xff]
        %v5170 = vld [vmem:[%s15 + $0x1b0] sm:$0xff]
        %v5171 = vld [vmem:[%s15 + $0x1b8] sm:$0xff]
        %v5172 = vld [vmem:[%s15 + $0x1c0] sm:$0xff]
        %v5173 = vld [vmem:[%s15 + $0x1c8] sm:$0xff]
        %v5174 = vld [vmem:[%s15 + $0x1d0] sm:$0xff]
        %v5175 = vld [vmem:[%s15 + $0x1d8] sm:$0xff]
        %v5176 = vld [vmem:[%s15 + $0x1e0] sm:$0xff]
        %v5177 = vld [vmem:[%s15 + $0x1e8] sm:$0xff]
        %v5178 = vld [vmem:[%s15 + $0x1f0] sm:$0xff]
        %v5179 = vld [vmem:[%s15 + $0x1f8] sm:$0xff]
        %v5180 = vld [vmem:[%s15 + $0x200] sm:$0xff]
        %v5181 = vld [vmem:[%s15 + $0x208] sm:$0xff]
        %v5182 = vld [vmem:[%s15 + $0x210] sm:$0xff]
        %v5183 = vld [vmem:[%s15 + $0x218] sm:$0xff]
        %v5184 = vld [vmem:[%s15 + $0x220] sm:$0xff]
        %v5185 = vld [vmem:[%s15 + $0x228] sm:$0xff]
        %v5186 = vld [vmem:[%s15 + $0x230] sm:$0xff]
        %v5187 = vld [vmem:[%s15 + $0x238] sm:$0xff]
        %v5188 = vld [vmem:[%s15 + $0x240] sm:$0xff]
        %v5189 = vld [vmem:[%s15 + $0x248] sm:$0xff]
        %v5190 = vld [vmem:[%s15 + $0x250] sm:$0xff]
        %v5191 = vld [vmem:[%s15 + $0x258] sm:$0xff]
        %v5192 = vld [vmem:[%s15 + $0x260] sm:$0xff]
        %v5193 = vld [vmem:[%s15 + $0x268] sm:$0xff]
        %v5194 = vld [vmem:[%s15 + $0x270] sm:$0xff]
        %v5195 = vld [vmem:[%s15 + $0x278] sm:$0xff]
        %v5196 = vld [vmem:[%s16] sm:$0x1]
        %v5198 = vlaneseq
        %v5199 = vshrl.u32 %v5198, 7
        %v5200 = vsub.s32 0, %v5199
        %v5201 = vrot.slane %v5196, %v5200
        %5203 = vmatprep.subr.mxu0 0.0
        %5204 = vmatpush1.msra.mxu0 %v5131
        %5205 = vmatprep.subr.mxu0 0.0
        %5206 = vmatpush1.msra.mxu0 %v5130
        %5207 = vmatprep.subr.mxu0 0.0
        %5208 = vmatpush1.msra.mxu0 %v5129
        %5209 = vmatprep.subr.mxu0 0.0
        %5210 = vmatpush1.msra.mxu0 %v5128
        %5211 = vmatprep.subr.mxu0 0.0
        %5212 = vmatpush1.msra.mxu0 %v5127
        %5213 = vmatprep.subr.mxu0 0.0
        %5214 = vmatpush1.msra.mxu0 %v5126
        %5215 = vmatprep.subr.mxu0 0.0
        %5216 = vmatpush1.msra.mxu0 %v5125
        %5217 = vmatprep.subr.mxu0 0.0
        %5218 = vmatpush1.msra.mxu0 %v5124
        %5219 = vmatprep.subr.mxu0 0.0
        %5220 = vmatpush1.msra.mxu0 %v5123
        %5221 = vmatprep.subr.mxu0 0.0
        %5222 = vmatpush1.msra.mxu0 %v5122
        %5223 = vmatprep.subr.mxu0 0.0
        %5224 = vmatpush1.msra.mxu0 %v5121
        %5225 = vmatprep.subr.mxu0 0.0
        %5226 = vmatpush1.msra.mxu0 %v5120
        %5227 = vmatprep.subr.mxu0 0.0
        %5228 = vmatpush1.msra.mxu0 %v5119
        %5229 = vmatprep.subr.mxu0 0.0
        %5230 = vmatpush1.msra.mxu0 %v5118
        %5231 = vmatprep.subr.mxu0 0.0
        %5232 = vmatpush1.msra.mxu0 %v5117
        %5233 = vmatprep.subr.mxu0 0.0
        %5234 = vmatpush1.msra.mxu0 %v5116
        %5235 = vmatprep.subr.mxu0 0.0
        %5236 = vmatpush2.msra.mxu0 %v5147
        %5237 = vmatprep.subr.mxu0 0.0
        %5238 = vmatpush2.msra.mxu0 %v5146
        %5239 = vmatprep.subr.mxu0 0.0
        %5240 = vmatpush2.msra.mxu0 %v5145
        %5241 = vmatprep.subr.mxu0 0.0
        %5242 = vmatpush2.msra.mxu0 %v5144
        %5243 = vmatprep.subr.mxu0 0.0
        %5244 = vmatpush2.msra.mxu0 %v5143
        %5245 = vmatprep.subr.mxu0 0.0
        %5246 = vmatpush2.msra.mxu0 %v5142
        %5247 = vmatprep.subr.mxu0 0.0
        %5248 = vmatpush2.msra.mxu0 %v5141
        %5249 = vmatprep.subr.mxu0 0.0
        %5250 = vmatpush2.msra.mxu0 %v5140
        %5251 = vmatprep.subr.mxu0 0.0
        %5252 = vmatpush2.msra.mxu0 %v5139
        %5253 = vmatprep.subr.mxu0 0.0
        %5254 = vmatpush2.msra.mxu0 %v5138
        %5255 = vmatprep.subr.mxu0 0.0
        %5256 = vmatpush2.msra.mxu0 %v5137
        %5257 = vmatprep.subr.mxu0 0.0
        %5258 = vmatpush2.msra.mxu0 %v5136
        %5259 = vmatprep.subr.mxu0 0.0
        %5260 = vmatpush2.msra.mxu0 %v5135
        %5261 = vmatprep.subr.mxu0 0.0
        %5262 = vmatpush2.msra.mxu0 %v5134
        %5263 = vmatprep.subr.mxu0 0.0
        %5264 = vmatpush2.msra.mxu0 %v5133
        %5265 = vmatprep.subr.mxu0 0.0
        %5266 = vmatpush2.msra.mxu0 %v5132
        %5267 = vmatprep.mubr.f32.mxu0 %v4957
        %5268 = vmatmul.mubr.f32.gmra.mxu0 %v4956
        %v5269 = vpop.f32.mrf.mxu0
        %v5270 = vadd.f32 %v5201, %v5269
        %v5271 = vpop.f32.mrf.mxu0
        %5272 = vmatprep.mubr.f32.mxu0 %v4962
        %5273 = vmatmul.mubr.f32.gmra.mxu0 %v4961
        %v5274 = vpop.f32.mrf.mxu0
        %v5275 = vadd.f32 %v5201, %v5274
        %v5276 = vpop.f32.mrf.mxu0
        %5277 = vmatprep.mubr.f32.mxu0 %v4967
        %5278 = vmatmul.mubr.f32.gmra.mxu0 %v4966
        %v5279 = vpop.f32.mrf.mxu0
        %v5280 = vadd.f32 %v5201, %v5279
        %v5281 = vpop.f32.mrf.mxu0
        %5282 = vmatprep.mubr.f32.mxu0 %v4972
        %5283 = vmatmul.mubr.f32.gmra.mxu0 %v4971
        %v5284 = vpop.f32.mrf.mxu0
        %v5285 = vadd.f32 %v5201, %v5284
        %v5286 = vpop.f32.mrf.mxu0
        %5287 = vmatprep.mubr.f32.mxu0 %v4977
        %5288 = vmatmul.mubr.f32.gmra.mxu0 %v4976
        %v5289 = vpop.f32.mrf.mxu0
        %v5290 = vadd.f32 %v5201, %v5289
        %v5291 = vpop.f32.mrf.mxu0
        %5292 = vmatprep.mubr.f32.mxu0 %v4982
        %5293 = vmatmul.mubr.f32.gmra.mxu0 %v4981
        %v5294 = vpop.f32.mrf.mxu0
        %v5295 = vadd.f32 %v5201, %v5294
        %v5296 = vpop.f32.mrf.mxu0
        %5297 = vmatprep.mubr.f32.mxu0 %v4987
        %5298 = vmatmul.mubr.f32.gmra.mxu0 %v4986
        %v5299 = vpop.f32.mrf.mxu0
        %v5300 = vadd.f32 %v5201, %v5299
        %v5301 = vpop.f32.mrf.mxu0
        %5302 = vmatprep.mubr.f32.mxu0 %v4992
        %5303 = vmatmul.mubr.f32.gmra.mxu0 %v4991
        %v5304 = vpop.f32.mrf.mxu0
        %v5305 = vadd.f32 %v5201, %v5304
        %v5306 = vpop.f32.mrf.mxu0
        %5307 = vmatprep.mubr.f32.mxu0 %v4997
        %5308 = vmatmul.mubr.f32.gmra.mxu0 %v4996
        %v5309 = vpop.f32.mrf.mxu0
        %v5310 = vadd.f32 %v5201, %v5309
        %v5311 = vpop.f32.mrf.mxu0
        %5312 = vmatprep.mubr.f32.mxu0 %v5002
        %5313 = vmatmul.mubr.f32.gmra.mxu0 %v5001
        %v5314 = vpop.f32.mrf.mxu0
        %v5315 = vadd.f32 %v5201, %v5314
        %v5316 = vpop.f32.mrf.mxu0
        %5317 = vmatprep.mubr.f32.mxu0 %v5007
        %5318 = vmatmul.mubr.f32.gmra.mxu0 %v5006
        %v5319 = vpop.f32.mrf.mxu0
        %v5320 = vadd.f32 %v5201, %v5319
        %v5321 = vpop.f32.mrf.mxu0
        %5322 = vmatprep.mubr.f32.mxu0 %v5012
        %5323 = vmatmul.mubr.f32.gmra.mxu0 %v5011
        %v5324 = vpop.f32.mrf.mxu0
        %v5325 = vadd.f32 %v5201, %v5324
        %v5326 = vpop.f32.mrf.mxu0
        %5327 = vmatprep.mubr.f32.mxu0 %v5017
        %5328 = vmatmul.mubr.f32.gmra.mxu0 %v5016
        %v5329 = vpop.f32.mrf.mxu0
        %v5330 = vadd.f32 %v5201, %v5329
        %v5331 = vpop.f32.mrf.mxu0
        %5332 = vmatprep.mubr.f32.mxu0 %v5022
        %5333 = vmatmul.mubr.f32.gmra.mxu0 %v5021
        %v5334 = vpop.f32.mrf.mxu0
        %v5335 = vadd.f32 %v5201, %v5334
        %v5336 = vpop.f32.mrf.mxu0
        %5337 = vmatprep.mubr.f32.mxu0 %v5027
        %5338 = vmatmul.mubr.f32.gmra.mxu0 %v5026
        %v5339 = vpop.f32.mrf.mxu0
        %v5340 = vadd.f32 %v5201, %v5339
        %v5341 = vpop.f32.mrf.mxu0
        %5342 = vmatprep.mubr.f32.mxu0 %v5032
        %5343 = vmatmul.mubr.f32.gmra.mxu0 %v5031
        %v5344 = vpop.f32.mrf.mxu0
        %v5345 = vadd.f32 %v5201, %v5344
        %v5346 = vpop.f32.mrf.mxu0
        %5347 = vmatprep.mubr.f32.mxu0 %v5037
        %5348 = vmatmul.mubr.f32.gmra.mxu0 %v5036
        %v5349 = vpop.f32.mrf.mxu0
        %v5350 = vadd.f32 %v5201, %v5349
        %v5351 = vpop.f32.mrf.mxu0
        %5352 = vmatprep.mubr.f32.mxu0 %v5042
        %5353 = vmatmul.mubr.f32.gmra.mxu0 %v5041
        %v5354 = vpop.f32.mrf.mxu0
        %v5355 = vadd.f32 %v5201, %v5354
        %v5356 = vpop.f32.mrf.mxu0
        %5357 = vmatprep.mubr.f32.mxu0 %v5047
        %5358 = vmatmul.mubr.f32.gmra.mxu0 %v5046
        %v5359 = vpop.f32.mrf.mxu0
        %v5360 = vadd.f32 %v5201, %v5359
        %v5361 = vpop.f32.mrf.mxu0
        %5362 = vmatprep.mubr.f32.mxu0 %v5052
        %5363 = vmatmul.mubr.f32.gmra.mxu0 %v5051
        %v5364 = vpop.f32.mrf.mxu0
        %v5365 = vadd.f32 %v5201, %v5364
        %v5366 = vpop.f32.mrf.mxu0
        %5367 = vmatprep.mubr.f32.mxu0 %v5057
        %5368 = vmatmul.mubr.f32.gmra.mxu0 %v5056
        %v5369 = vpop.f32.mrf.mxu0
        %v5370 = vadd.f32 %v5201, %v5369
        %v5371 = vpop.f32.mrf.mxu0
        %5372 = vmatprep.mubr.f32.mxu0 %v5062
        %5373 = vmatmul.mubr.f32.gmra.mxu0 %v5061
        %v5374 = vpop.f32.mrf.mxu0
        %v5375 = vadd.f32 %v5201, %v5374
        %v5376 = vpop.f32.mrf.mxu0
        %5377 = vmatprep.mubr.f32.mxu0 %v5067
        %5378 = vmatmul.mubr.f32.gmra.mxu0 %v5066
        %v5379 = vpop.f32.mrf.mxu0
        %v5380 = vadd.f32 %v5201, %v5379
        %v5381 = vpop.f32.mrf.mxu0
        %5382 = vmatprep.mubr.f32.mxu0 %v5072
        %5383 = vmatmul.mubr.f32.gmra.mxu0 %v5071
        %v5384 = vpop.f32.mrf.mxu0
        %v5385 = vadd.f32 %v5201, %v5384
        %v5386 = vpop.f32.mrf.mxu0
        %5387 = vmatprep.mubr.f32.mxu0 %v5077
        %5388 = vmatmul.mubr.f32.gmra.mxu0 %v5076
        %v5389 = vpop.f32.mrf.mxu0
        %v5390 = vadd.f32 %v5201, %v5389
        %v5391 = vpop.f32.mrf.mxu0
        %5392 = vmatprep.mubr.f32.mxu0 %v5082
        %5393 = vmatmul.mubr.f32.gmra.mxu0 %v5081
        %v5394 = vpop.f32.mrf.mxu0
        %v5395 = vadd.f32 %v5201, %v5394
        %v5396 = vpop.f32.mrf.mxu0
        %5397 = vmatprep.mubr.f32.mxu0 %v5087
        %5398 = vmatmul.mubr.f32.gmra.mxu0 %v5086
        %v5399 = vpop.f32.mrf.mxu0
        %v5400 = vadd.f32 %v5201, %v5399
        %v5401 = vpop.f32.mrf.mxu0
        %5402 = vmatprep.mubr.f32.mxu0 %v5092
        %5403 = vmatmul.mubr.f32.gmra.mxu0 %v5091
        %v5404 = vpop.f32.mrf.mxu0
        %v5405 = vadd.f32 %v5201, %v5404
        %v5406 = vpop.f32.mrf.mxu0
        %5407 = vmatprep.mubr.f32.mxu0 %v5097
        %5408 = vmatmul.mubr.f32.gmra.mxu0 %v5096
        %v5409 = vpop.f32.mrf.mxu0
        %v5410 = vadd.f32 %v5201, %v5409
        %v5411 = vpop.f32.mrf.mxu0
        %5412 = vmatprep.mubr.f32.mxu0 %v5102
        %5413 = vmatmul.mubr.f32.gmra.mxu0 %v5101
        %v5414 = vpop.f32.mrf.mxu0
        %v5415 = vadd.f32 %v5201, %v5414
        %v5416 = vpop.f32.mrf.mxu0
        %5417 = vmatprep.mubr.f32.mxu0 %v5107
        %5418 = vmatmul.mubr.f32.gmra.mxu0 %v5106
        %v5419 = vpop.f32.mrf.mxu0
        %v5420 = vadd.f32 %v5201, %v5419
        %v5421 = vpop.f32.mrf.mxu0
        %5422 = vmatprep.mubr.f32.mxu0 %v5112
        %5423 = vmatmul.mubr.f32.gmra.mxu0 %v5111
        %v5424 = vpop.f32.mrf.mxu0
        %v5425 = vadd.f32 %v5201, %v5424
        %v5426 = vpop.f32.mrf.mxu0
        %5427 = vdwg.mxu0
        %5428 = vmatprep.subr.mxu0 0.0
        %5429 = vmatpush1.msra.mxu0 %v5163
        %5430 = vmatprep.subr.mxu0 0.0
        %5431 = vmatpush1.msra.mxu0 %v5162
        %5432 = vmatprep.subr.mxu0 0.0
        %5433 = vmatpush1.msra.mxu0 %v5161
        %5434 = vmatprep.subr.mxu0 0.0
        %5435 = vmatpush1.msra.mxu0 %v5160
        %5436 = vmatprep.subr.mxu0 0.0
        %5437 = vmatpush1.msra.mxu0 %v5159
        %5438 = vmatprep.subr.mxu0 0.0
        %5439 = vmatpush1.msra.mxu0 %v5158
        %5440 = vmatprep.subr.mxu0 0.0
        %5441 = vmatpush1.msra.mxu0 %v5157
        %5442 = vmatprep.subr.mxu0 0.0
        %5443 = vmatpush1.msra.mxu0 %v5156
        %5444 = vmatprep.subr.mxu0 0.0
        %5445 = vmatpush1.msra.mxu0 %v5155
        %5446 = vmatprep.subr.mxu0 0.0
        %5447 = vmatpush1.msra.mxu0 %v5154
        %5448 = vmatprep.subr.mxu0 0.0
        %5449 = vmatpush1.msra.mxu0 %v5153
        %5450 = vmatprep.subr.mxu0 0.0
        %5451 = vmatpush1.msra.mxu0 %v5152
        %5452 = vmatprep.subr.mxu0 0.0
        %5453 = vmatpush1.msra.mxu0 %v5151
        %5454 = vmatprep.subr.mxu0 0.0
        %5455 = vmatpush1.msra.mxu0 %v5150
        %5456 = vmatprep.subr.mxu0 0.0
        %5457 = vmatpush1.msra.mxu0 %v5149
        %5458 = vmatprep.subr.mxu0 0.0
        %5459 = vmatpush1.msra.mxu0 %v5148
        %5460 = vmatprep.subr.mxu0 0.0
        %5461 = vmatpush2.msra.mxu0 %v5179
        %5462 = vmatprep.subr.mxu0 0.0
        %5463 = vmatpush2.msra.mxu0 %v5178
        %5464 = vmatprep.subr.mxu0 0.0
        %5465 = vmatpush2.msra.mxu0 %v5177
        %5466 = vmatprep.subr.mxu0 0.0
        %5467 = vmatpush2.msra.mxu0 %v5176
        %5468 = vmatprep.subr.mxu0 0.0
        %5469 = vmatpush2.msra.mxu0 %v5175
        %5470 = vmatprep.subr.mxu0 0.0
        %5471 = vmatpush2.msra.mxu0 %v5174
        %5472 = vmatprep.subr.mxu0 0.0
        %5473 = vmatpush2.msra.mxu0 %v5173
        %5474 = vmatprep.subr.mxu0 0.0
        %5475 = vmatpush2.msra.mxu0 %v5172
        %5476 = vmatprep.subr.mxu0 0.0
        %5477 = vmatpush2.msra.mxu0 %v5171
        %5478 = vmatprep.subr.mxu0 0.0
        %5479 = vmatpush2.msra.mxu0 %v5170
        %5480 = vmatprep.subr.mxu0 0.0
        %5481 = vmatpush2.msra.mxu0 %v5169
        %5482 = vmatprep.subr.mxu0 0.0
        %5483 = vmatpush2.msra.mxu0 %v5168
        %5484 = vmatprep.subr.mxu0 0.0
        %5485 = vmatpush2.msra.mxu0 %v5167
        %5486 = vmatprep.subr.mxu0 0.0
        %5487 = vmatpush2.msra.mxu0 %v5166
        %5488 = vmatprep.subr.mxu0 0.0
        %5489 = vmatpush2.msra.mxu0 %v5165
        %5490 = vmatprep.subr.mxu0 0.0
        %5491 = vmatpush2.msra.mxu0 %v5164
        %5492 = vmatprep.mubr.f32.mxu0 %v4959
        %5493 = vmatmul.mubr.f32.gmra.mxu0 %v4958
        %v5494 = vpop.f32.mrf.mxu0
        %v5495 = vadd.f32 %v5270, %v5494
        %v5496 = vpop.f32.mrf.mxu0
        %5497 = vmatprep.mubr.f32.mxu0 %v4964
        %5498 = vmatmul.mubr.f32.gmra.mxu0 %v4963
        %v5499 = vpop.f32.mrf.mxu0
        %v5500 = vadd.f32 %v5275, %v5499
        %v5501 = vpop.f32.mrf.mxu0
        %5502 = vmatprep.mubr.f32.mxu0 %v4969
        %5503 = vmatmul.mubr.f32.gmra.mxu0 %v4968
        %v5504 = vpop.f32.mrf.mxu0
        %v5505 = vadd.f32 %v5280, %v5504
        %v5506 = vpop.f32.mrf.mxu0
        %5507 = vmatprep.mubr.f32.mxu0 %v4974
        %5508 = vmatmul.mubr.f32.gmra.mxu0 %v4973
        %v5509 = vpop.f32.mrf.mxu0
        %v5510 = vadd.f32 %v5285, %v5509
        %v5511 = vpop.f32.mrf.mxu0
        %5512 = vmatprep.mubr.f32.mxu0 %v4979
        %5513 = vmatmul.mubr.f32.gmra.mxu0 %v4978
        %v5514 = vpop.f32.mrf.mxu0
        %v5515 = vadd.f32 %v5290, %v5514
        %v5516 = vpop.f32.mrf.mxu0
        %5517 = vmatprep.mubr.f32.mxu0 %v4984
        %5518 = vmatmul.mubr.f32.gmra.mxu0 %v4983
        %v5519 = vpop.f32.mrf.mxu0
        %v5520 = vadd.f32 %v5295, %v5519
        %v5521 = vpop.f32.mrf.mxu0
        %5522 = vmatprep.mubr.f32.mxu0 %v4989
        %5523 = vmatmul.mubr.f32.gmra.mxu0 %v4988
        %v5524 = vpop.f32.mrf.mxu0
        %v5525 = vadd.f32 %v5300, %v5524
        %v5526 = vpop.f32.mrf.mxu0
        %5527 = vmatprep.mubr.f32.mxu0 %v4994
        %5528 = vmatmul.mubr.f32.gmra.mxu0 %v4993
        %v5529 = vpop.f32.mrf.mxu0
        %v5530 = vadd.f32 %v5305, %v5529
        %v5531 = vpop.f32.mrf.mxu0
        %5532 = vmatprep.mubr.f32.mxu0 %v4999
        %5533 = vmatmul.mubr.f32.gmra.mxu0 %v4998
        %v5534 = vpop.f32.mrf.mxu0
        %v5535 = vadd.f32 %v5310, %v5534
        %v5536 = vpop.f32.mrf.mxu0
        %5537 = vmatprep.mubr.f32.mxu0 %v5004
        %5538 = vmatmul.mubr.f32.gmra.mxu0 %v5003
        %v5539 = vpop.f32.mrf.mxu0
        %v5540 = vadd.f32 %v5315, %v5539
        %v5541 = vpop.f32.mrf.mxu0
        %5542 = vmatprep.mubr.f32.mxu0 %v5009
        %5543 = vmatmul.mubr.f32.gmra.mxu0 %v5008
        %v5544 = vpop.f32.mrf.mxu0
        %v5545 = vadd.f32 %v5320, %v5544
        %v5546 = vpop.f32.mrf.mxu0
        %5547 = vmatprep.mubr.f32.mxu0 %v5014
        %5548 = vmatmul.mubr.f32.gmra.mxu0 %v5013
        %v5549 = vpop.f32.mrf.mxu0
        %v5550 = vadd.f32 %v5325, %v5549
        %v5551 = vpop.f32.mrf.mxu0
        %5552 = vmatprep.mubr.f32.mxu0 %v5019
        %5553 = vmatmul.mubr.f32.gmra.mxu0 %v5018
        %v5554 = vpop.f32.mrf.mxu0
        %v5555 = vadd.f32 %v5330, %v5554
        %v5556 = vpop.f32.mrf.mxu0
        %5557 = vmatprep.mubr.f32.mxu0 %v5024
        %5558 = vmatmul.mubr.f32.gmra.mxu0 %v5023
        %v5559 = vpop.f32.mrf.mxu0
        %v5560 = vadd.f32 %v5335, %v5559
        %v5561 = vpop.f32.mrf.mxu0
        %5562 = vmatprep.mubr.f32.mxu0 %v5029
        %5563 = vmatmul.mubr.f32.gmra.mxu0 %v5028
        %v5564 = vpop.f32.mrf.mxu0
        %v5565 = vadd.f32 %v5340, %v5564
        %v5566 = vpop.f32.mrf.mxu0
        %5567 = vmatprep.mubr.f32.mxu0 %v5034
        %5568 = vmatmul.mubr.f32.gmra.mxu0 %v5033
        %v5569 = vpop.f32.mrf.mxu0
        %v5570 = vadd.f32 %v5345, %v5569
        %v5571 = vpop.f32.mrf.mxu0
        %5572 = vmatprep.mubr.f32.mxu0 %v5039
        %5573 = vmatmul.mubr.f32.gmra.mxu0 %v5038
        %v5574 = vpop.f32.mrf.mxu0
        %v5575 = vadd.f32 %v5350, %v5574
        %v5576 = vpop.f32.mrf.mxu0
        %5577 = vmatprep.mubr.f32.mxu0 %v5044
        %5578 = vmatmul.mubr.f32.gmra.mxu0 %v5043
        %v5579 = vpop.f32.mrf.mxu0
        %v5580 = vadd.f32 %v5355, %v5579
        %v5581 = vpop.f32.mrf.mxu0
        %5582 = vmatprep.mubr.f32.mxu0 %v5049
        %5583 = vmatmul.mubr.f32.gmra.mxu0 %v5048
        %v5584 = vpop.f32.mrf.mxu0
        %v5585 = vadd.f32 %v5360, %v5584
        %v5586 = vpop.f32.mrf.mxu0
        %5587 = vmatprep.mubr.f32.mxu0 %v5054
        %5588 = vmatmul.mubr.f32.gmra.mxu0 %v5053
        %v5589 = vpop.f32.mrf.mxu0
        %v5590 = vadd.f32 %v5365, %v5589
        %v5591 = vpop.f32.mrf.mxu0
        %5592 = vmatprep.mubr.f32.mxu0 %v5059
        %5593 = vmatmul.mubr.f32.gmra.mxu0 %v5058
        %v5594 = vpop.f32.mrf.mxu0
        %v5595 = vadd.f32 %v5370, %v5594
        %v5596 = vpop.f32.mrf.mxu0
        %5597 = vmatprep.mubr.f32.mxu0 %v5064
        %5598 = vmatmul.mubr.f32.gmra.mxu0 %v5063
        %v5599 = vpop.f32.mrf.mxu0
        %v5600 = vadd.f32 %v5375, %v5599
        %v5601 = vpop.f32.mrf.mxu0
        %5602 = vmatprep.mubr.f32.mxu0 %v5069
        %5603 = vmatmul.mubr.f32.gmra.mxu0 %v5068
        %v5604 = vpop.f32.mrf.mxu0
        %v5605 = vadd.f32 %v5380, %v5604
        %v5606 = vpop.f32.mrf.mxu0
        %5607 = vmatprep.mubr.f32.mxu0 %v5074
        %5608 = vmatmul.mubr.f32.gmra.mxu0 %v5073
        %v5609 = vpop.f32.mrf.mxu0
        %v5610 = vadd.f32 %v5385, %v5609
        %v5611 = vpop.f32.mrf.mxu0
        %5612 = vmatprep.mubr.f32.mxu0 %v5079
        %5613 = vmatmul.mubr.f32.gmra.mxu0 %v5078
        %v5614 = vpop.f32.mrf.mxu0
        %v5615 = vadd.f32 %v5390, %v5614
        %v5616 = vpop.f32.mrf.mxu0
        %5617 = vmatprep.mubr.f32.mxu0 %v5084
        %5618 = vmatmul.mubr.f32.gmra.mxu0 %v5083
        %v5619 = vpop.f32.mrf.mxu0
        %v5620 = vadd.f32 %v5395, %v5619
        %v5621 = vpop.f32.mrf.mxu0
        %5622 = vmatprep.mubr.f32.mxu0 %v5089
        %5623 = vmatmul.mubr.f32.gmra.mxu0 %v5088
        %v5624 = vpop.f32.mrf.mxu0
        %v5625 = vadd.f32 %v5400, %v5624
        %v5626 = vpop.f32.mrf.mxu0
        %5627 = vmatprep.mubr.f32.mxu0 %v5094
        %5628 = vmatmul.mubr.f32.gmra.mxu0 %v5093
        %v5629 = vpop.f32.mrf.mxu0
        %v5630 = vadd.f32 %v5405, %v5629
        %v5631 = vpop.f32.mrf.mxu0
        %5632 = vmatprep.mubr.f32.mxu0 %v5099
        %5633 = vmatmul.mubr.f32.gmra.mxu0 %v5098
        %v5634 = vpop.f32.mrf.mxu0
        %v5635 = vadd.f32 %v5410, %v5634
        %v5636 = vpop.f32.mrf.mxu0
        %5637 = vmatprep.mubr.f32.mxu0 %v5104
        %5638 = vmatmul.mubr.f32.gmra.mxu0 %v5103
        %v5639 = vpop.f32.mrf.mxu0
        %v5640 = vadd.f32 %v5415, %v5639
        %v5641 = vpop.f32.mrf.mxu0
        %5642 = vmatprep.mubr.f32.mxu0 %v5109
        %5643 = vmatmul.mubr.f32.gmra.mxu0 %v5108
        %v5644 = vpop.f32.mrf.mxu0
        %v5645 = vadd.f32 %v5420, %v5644
        %v5646 = vpop.f32.mrf.mxu0
        %5647 = vmatprep.mubr.f32.mxu0 %v5114
        %5648 = vmatmul.mubr.f32.gmra.mxu0 %v5113
        %v5649 = vpop.f32.mrf.mxu0
        %v5650 = vadd.f32 %v5425, %v5649
        %v5651 = vpop.f32.mrf.mxu0
        %5652 = vdwg.mxu0
        %5653 = vmatprep.subr.mxu0 0.0
        %5654 = vmatpush1.msra.mxu0 %v5195
        %5655 = vmatprep.subr.mxu0 0.0
        %5656 = vmatpush1.msra.mxu0 %v5194
        %5657 = vmatprep.subr.mxu0 0.0
        %5658 = vmatpush1.msra.mxu0 %v5193
        %5659 = vmatprep.subr.mxu0 0.0
        %5660 = vmatpush1.msra.mxu0 %v5192
        %5661 = vmatprep.subr.mxu0 0.0
        %5662 = vmatpush1.msra.mxu0 %v5191
        %5663 = vmatprep.subr.mxu0 0.0
        %5664 = vmatpush1.msra.mxu0 %v5190
        %5665 = vmatprep.subr.mxu0 0.0
        %5666 = vmatpush1.msra.mxu0 %v5189
        %5667 = vmatprep.subr.mxu0 0.0
        %5668 = vmatpush1.msra.mxu0 %v5188
        %5669 = vmatprep.subr.mxu0 0.0
        %5670 = vmatpush1.msra.mxu0 %v5187
        %5671 = vmatprep.subr.mxu0 0.0
        %5672 = vmatpush1.msra.mxu0 %v5186
        %5673 = vmatprep.subr.mxu0 0.0
        %5674 = vmatpush1.msra.mxu0 %v5185
        %5675 = vmatprep.subr.mxu0 0.0
        %5676 = vmatpush1.msra.mxu0 %v5184
        %5677 = vmatprep.subr.mxu0 0.0
        %5678 = vmatpush1.msra.mxu0 %v5183
        %5679 = vmatprep.subr.mxu0 0.0
        %5680 = vmatpush1.msra.mxu0 %v5182
        %5681 = vmatprep.subr.mxu0 0.0
        %5682 = vmatpush1.msra.mxu0 %v5181
        %5683 = vmatprep.subr.mxu0 0.0
        %5684 = vmatpush1.msra.mxu0 %v5180
        %5685 = vmatprep.subr.mxu0 0.0
        %5686 = vmatpush2.msra.mxu0 0.0
        %5687 = vmatprep.subr.mxu0 0.0
        %5688 = vmatpush2.msra.mxu0 0.0
        %5689 = vmatprep.subr.mxu0 0.0
        %5690 = vmatpush2.msra.mxu0 0.0
        %5691 = vmatprep.subr.mxu0 0.0
        %5692 = vmatpush2.msra.mxu0 0.0
        %5693 = vmatprep.subr.mxu0 0.0
        %5694 = vmatpush2.msra.mxu0 0.0
        %5695 = vmatprep.subr.mxu0 0.0
        %5696 = vmatpush2.msra.mxu0 0.0
        %5697 = vmatprep.subr.mxu0 0.0
        %5698 = vmatpush2.msra.mxu0 0.0
        %5699 = vmatprep.subr.mxu0 0.0
        %5700 = vmatpush2.msra.mxu0 0.0
        %5701 = vmatprep.subr.mxu0 0.0
        %5702 = vmatpush2.msra.mxu0 0.0
        %5703 = vmatprep.subr.mxu0 0.0
        %5704 = vmatpush2.msra.mxu0 0.0
        %5705 = vmatprep.subr.mxu0 0.0
        %5706 = vmatpush2.msra.mxu0 0.0
        %5707 = vmatprep.subr.mxu0 0.0
        %5708 = vmatpush2.msra.mxu0 0.0
        %5709 = vmatprep.subr.mxu0 0.0
        %5710 = vmatpush2.msra.mxu0 0.0
        %5711 = vmatprep.subr.mxu0 0.0
        %5712 = vmatpush2.msra.mxu0 0.0
        %5713 = vmatprep.subr.mxu0 0.0
        %5714 = vmatpush2.msra.mxu0 0.0
        %5715 = vmatprep.subr.mxu0 0.0
        %5716 = vmatpush2.msra.mxu0 0.0
        %5717 = vmatprep.mubr.f32.mxu0 0.0
        %5718 = vmatmul.mubr.f32.gmra.mxu0 %v4960
        %v5719 = vpop.f32.mrf.mxu0
        %v5720 = vadd.f32 %v5495, %v5719
        %v5721 = vpop.f32.mrf.mxu0
        %5722 = vmatprep.mubr.f32.mxu0 0.0
        %5723 = vmatmul.mubr.f32.gmra.mxu0 %v4965
        %v5724 = vpop.f32.mrf.mxu0
        %v5725 = vadd.f32 %v5500, %v5724
        %v5726 = vpop.f32.mrf.mxu0
        %5727 = vmatprep.mubr.f32.mxu0 0.0
        %5728 = vmatmul.mubr.f32.gmra.mxu0 %v4970
        %v5729 = vpop.f32.mrf.mxu0
        %v5730 = vadd.f32 %v5505, %v5729
        %v5731 = vpop.f32.mrf.mxu0
        %5732 = vmatprep.mubr.f32.mxu0 0.0
        %5733 = vmatmul.mubr.f32.gmra.mxu0 %v4975
        %v5734 = vpop.f32.mrf.mxu0
        %v5735 = vadd.f32 %v5510, %v5734
        %v5736 = vpop.f32.mrf.mxu0
        %5737 = vmatprep.mubr.f32.mxu0 0.0
        %5738 = vmatmul.mubr.f32.gmra.mxu0 %v4980
        %v5739 = vpop.f32.mrf.mxu0
        %v5740 = vadd.f32 %v5515, %v5739
        %v5741 = vpop.f32.mrf.mxu0
        %5742 = vmatprep.mubr.f32.mxu0 0.0
        %5743 = vmatmul.mubr.f32.gmra.mxu0 %v4985
        %v5744 = vpop.f32.mrf.mxu0
        %v5745 = vadd.f32 %v5520, %v5744
        %v5746 = vpop.f32.mrf.mxu0
        %5747 = vmatprep.mubr.f32.mxu0 0.0
        %5748 = vmatmul.mubr.f32.gmra.mxu0 %v4990
        %v5749 = vpop.f32.mrf.mxu0
        %v5750 = vadd.f32 %v5525, %v5749
        %v5751 = vpop.f32.mrf.mxu0
        %5752 = vmatprep.mubr.f32.mxu0 0.0
        %5753 = vmatmul.mubr.f32.gmra.mxu0 %v4995
        %v5754 = vpop.f32.mrf.mxu0
        %v5755 = vadd.f32 %v5530, %v5754
        %v5756 = vpop.f32.mrf.mxu0
        %5757 = vmatprep.mubr.f32.mxu0 0.0
        %5758 = vmatmul.mubr.f32.gmra.mxu0 %v5000
        %v5759 = vpop.f32.mrf.mxu0
        %v5760 = vadd.f32 %v5535, %v5759
        %v5761 = vpop.f32.mrf.mxu0
        %5762 = vmatprep.mubr.f32.mxu0 0.0
        %5763 = vmatmul.mubr.f32.gmra.mxu0 %v5005
        %v5764 = vpop.f32.mrf.mxu0
        %v5765 = vadd.f32 %v5540, %v5764
        %v5766 = vpop.f32.mrf.mxu0
        %5767 = vmatprep.mubr.f32.mxu0 0.0
        %5768 = vmatmul.mubr.f32.gmra.mxu0 %v5010
        %v5769 = vpop.f32.mrf.mxu0
        %v5770 = vadd.f32 %v5545, %v5769
        %v5771 = vpop.f32.mrf.mxu0
        %5772 = vmatprep.mubr.f32.mxu0 0.0
        %5773 = vmatmul.mubr.f32.gmra.mxu0 %v5015
        %v5774 = vpop.f32.mrf.mxu0
        %v5775 = vadd.f32 %v5550, %v5774
        %v5776 = vpop.f32.mrf.mxu0
        %5777 = vmatprep.mubr.f32.mxu0 0.0
        %5778 = vmatmul.mubr.f32.gmra.mxu0 %v5020
        %v5779 = vpop.f32.mrf.mxu0
        %v5780 = vadd.f32 %v5555, %v5779
        %v5781 = vpop.f32.mrf.mxu0
        %5782 = vmatprep.mubr.f32.mxu0 0.0
        %5783 = vmatmul.mubr.f32.gmra.mxu0 %v5025
        %v5784 = vpop.f32.mrf.mxu0
        %v5785 = vadd.f32 %v5560, %v5784
        %v5786 = vpop.f32.mrf.mxu0
        %5787 = vmatprep.mubr.f32.mxu0 0.0
        %5788 = vmatmul.mubr.f32.gmra.mxu0 %v5030
        %v5789 = vpop.f32.mrf.mxu0
        %v5790 = vadd.f32 %v5565, %v5789
        %v5791 = vpop.f32.mrf.mxu0
        %5792 = vmatprep.mubr.f32.mxu0 0.0
        %5793 = vmatmul.mubr.f32.gmra.mxu0 %v5035
        %v5794 = vpop.f32.mrf.mxu0
        %v5795 = vadd.f32 %v5570, %v5794
        %v5796 = vpop.f32.mrf.mxu0
        %5797 = vmatprep.mubr.f32.mxu0 0.0
        %5798 = vmatmul.mubr.f32.gmra.mxu0 %v5040
        %v5799 = vpop.f32.mrf.mxu0
        %v5800 = vadd.f32 %v5575, %v5799
        %v5801 = vpop.f32.mrf.mxu0
        %5802 = vmatprep.mubr.f32.mxu0 0.0
        %5803 = vmatmul.mubr.f32.gmra.mxu0 %v5045
        %v5804 = vpop.f32.mrf.mxu0
        %v5805 = vadd.f32 %v5580, %v5804
        %v5806 = vpop.f32.mrf.mxu0
        %5807 = vmatprep.mubr.f32.mxu0 0.0
        %5808 = vmatmul.mubr.f32.gmra.mxu0 %v5050
        %v5809 = vpop.f32.mrf.mxu0
        %v5810 = vadd.f32 %v5585, %v5809
        %v5811 = vpop.f32.mrf.mxu0
        %5812 = vmatprep.mubr.f32.mxu0 0.0
        %5813 = vmatmul.mubr.f32.gmra.mxu0 %v5055
        %v5814 = vpop.f32.mrf.mxu0
        %v5815 = vadd.f32 %v5590, %v5814
        %v5816 = vpop.f32.mrf.mxu0
        %5817 = vmatprep.mubr.f32.mxu0 0.0
        %5818 = vmatmul.mubr.f32.gmra.mxu0 %v5060
        %v5819 = vpop.f32.mrf.mxu0
        %v5820 = vadd.f32 %v5595, %v5819
        %v5821 = vpop.f32.mrf.mxu0
        %5822 = vmatprep.mubr.f32.mxu0 0.0
        %5823 = vmatmul.mubr.f32.gmra.mxu0 %v5065
        %v5824 = vpop.f32.mrf.mxu0
        %v5825 = vadd.f32 %v5600, %v5824
        %v5826 = vpop.f32.mrf.mxu0
        %5827 = vmatprep.mubr.f32.mxu0 0.0
        %5828 = vmatmul.mubr.f32.gmra.mxu0 %v5070
        %v5829 = vpop.f32.mrf.mxu0
        %v5830 = vadd.f32 %v5605, %v5829
        %v5831 = vpop.f32.mrf.mxu0
        %5832 = vmatprep.mubr.f32.mxu0 0.0
        %5833 = vmatmul.mubr.f32.gmra.mxu0 %v5075
        %v5834 = vpop.f32.mrf.mxu0
        %v5835 = vadd.f32 %v5610, %v5834
        %v5836 = vpop.f32.mrf.mxu0
        %5837 = vmatprep.mubr.f32.mxu0 0.0
        %5838 = vmatmul.mubr.f32.gmra.mxu0 %v5080
        %v5839 = vpop.f32.mrf.mxu0
        %v5840 = vadd.f32 %v5615, %v5839
        %v5841 = vpop.f32.mrf.mxu0
        %5842 = vmatprep.mubr.f32.mxu0 0.0
        %5843 = vmatmul.mubr.f32.gmra.mxu0 %v5085
        %v5844 = vpop.f32.mrf.mxu0
        %v5845 = vadd.f32 %v5620, %v5844
        %v5846 = vpop.f32.mrf.mxu0
        %5847 = vmatprep.mubr.f32.mxu0 0.0
        %5848 = vmatmul.mubr.f32.gmra.mxu0 %v5090
        %v5849 = vpop.f32.mrf.mxu0
        %v5850 = vadd.f32 %v5625, %v5849
        %v5851 = vpop.f32.mrf.mxu0
        %5852 = vmatprep.mubr.f32.mxu0 0.0
        %5853 = vmatmul.mubr.f32.gmra.mxu0 %v5095
        %v5854 = vpop.f32.mrf.mxu0
        %v5855 = vadd.f32 %v5630, %v5854
        %v5856 = vpop.f32.mrf.mxu0
        %5857 = vmatprep.mubr.f32.mxu0 0.0
        %5858 = vmatmul.mubr.f32.gmra.mxu0 %v5100
        %v5859 = vpop.f32.mrf.mxu0
        %v5860 = vadd.f32 %v5635, %v5859
        %v5861 = vpop.f32.mrf.mxu0
        %5862 = vmatprep.mubr.f32.mxu0 0.0
        %5863 = vmatmul.mubr.f32.gmra.mxu0 %v5105
        %v5864 = vpop.f32.mrf.mxu0
        %v5865 = vadd.f32 %v5640, %v5864
        %v5866 = vpop.f32.mrf.mxu0
        %5867 = vmatprep.mubr.f32.mxu0 0.0
        %5868 = vmatmul.mubr.f32.gmra.mxu0 %v5110
        %v5869 = vpop.f32.mrf.mxu0
        %v5870 = vadd.f32 %v5645, %v5869
        %v5871 = vpop.f32.mrf.mxu0
        %5872 = vmatprep.mubr.f32.mxu0 0.0
        %5873 = vmatmul.mubr.f32.gmra.mxu0 %v5115
        %v5874 = vpop.f32.mrf.mxu0
        %v5875 = vadd.f32 %v5650, %v5874
        %v5876 = vpop.f32.mrf.mxu0
        %5877 = vdwg.mxu0
        %5878 = vst [vmem:[%s652] sm:$0xff] %v5720
        %5879 = vst [vmem:[%s652 + $0x8] sm:$0xff] %v5725
        %5880 = vst [vmem:[%s652 + $0x10] sm:$0xff] %v5730
        %5881 = vst [vmem:[%s652 + $0x18] sm:$0xff] %v5735
        %5882 = vst [vmem:[%s652 + $0x20] sm:$0xff] %v5740
        %5883 = vst [vmem:[%s652 + $0x28] sm:$0xff] %v5745
        %5884 = vst [vmem:[%s652 + $0x30] sm:$0xff] %v5750
        %5885 = vst [vmem:[%s652 + $0x38] sm:$0xff] %v5755
        %5886 = vst [vmem:[%s652 + $0x40] sm:$0xff] %v5760
        %5887 = vst [vmem:[%s652 + $0x48] sm:$0xff] %v5765
        %5888 = vst [vmem:[%s652 + $0x50] sm:$0xff] %v5770
        %5889 = vst [vmem:[%s652 + $0x58] sm:$0xff] %v5775
        %5890 = vst [vmem:[%s652 + $0x60] sm:$0xff] %v5780
        %5891 = vst [vmem:[%s652 + $0x68] sm:$0xff] %v5785
        %5892 = vst [vmem:[%s652 + $0x70] sm:$0xff] %v5790
        %5893 = vst [vmem:[%s652 + $0x78] sm:$0xff] %v5795
        %5894 = vst [vmem:[%s652 + $0x80] sm:$0xff] %v5800
        %5895 = vst [vmem:[%s652 + $0x88] sm:$0xff] %v5805
        %5896 = vst [vmem:[%s652 + $0x90] sm:$0xff] %v5810
        %5897 = vst [vmem:[%s652 + $0x98] sm:$0xff] %v5815
        %5898 = vst [vmem:[%s652 + $0xa0] sm:$0xff] %v5820
        %5899 = vst [vmem:[%s652 + $0xa8] sm:$0xff] %v5825
        %5900 = vst [vmem:[%s652 + $0xb0] sm:$0xff] %v5830
        %5901 = vst [vmem:[%s652 + $0xb8] sm:$0xff] %v5835
        %5902 = vst [vmem:[%s652 + $0xc0] sm:$0xff] %v5840
        %5903 = vst [vmem:[%s652 + $0xc8] sm:$0xff] %v5845
        %5904 = vst [vmem:[%s652 + $0xd0] sm:$0xff] %v5850
        %5905 = vst [vmem:[%s652 + $0xd8] sm:$0xff] %v5855
        %5906 = vst [vmem:[%s652 + $0xe0] sm:$0xff] %v5860
        %5907 = vst [vmem:[%s652 + $0xe8] sm:$0xff] %v5865
        %5908 = vst [vmem:[%s652 + $0xf0] sm:$0xff] %v5870
        %5909 = vst [vmem:[%s652 + $0xf8] sm:$0xff] %v5875
        %s5910 = smul.u32 32, %s32
        %p5911 = scmp.lt.s32.totalorder %s5910, 63
        %s5912 = scalar_select %p5911, %s5910, 63
        %s5913 = smul.addr %s5912, 8
        %s5914 = scalar_lea.vmem %s17, %s5913
        // Predicated region
        $region117: #{vae_forward.1} parent=87 // pred_check
          %p5915 = pneg %p412
        $region118: #{vae_forward.1} parent=87 // pred_check_branch
          %5917 = sbr.rel (%p5915) target = $region120
        $region119: #{vae_forward.1} parent=87 // pred_region
          %s5918 = smul.u32 32, %s32
        $region120: #{vae_forward.1} parent=87 // pred_fallthru
          _
      $region88: #{vae_forward.1} parent=5 // pred_fallthru
        _
      %p5919 = scmp.le.s32.totalorder 2, %s27
      // Predicated region
      $region121: #{vae_forward.1} parent=5 // pred_check
        %p5920 = pneg %p5919
      $region122: #{vae_forward.1} parent=5 // pred_check_branch
        %5922 = sbr.rel (%p5920) target = $region124
      $region123: #{vae_forward.1} parent=5 // pred_region
        %s5923 = ssub.s32 %s27, 2
        // Predicated region
        $region125: #{vae_forward.1} parent=123 // pred_check
          %p5924 = pneg %p418
        $region126: #{vae_forward.1} parent=123 // pred_check_branch
          %5926 = sbr.rel (%p5924) target = $region128
        $region127: #{vae_forward.1} parent=123 // pred_region
          %s5927 = smul.u32 32, %s33
          %p5928 = scmp.lt.s32.totalorder %s5927, 63
          %s5929 = scalar_select %p5928, %s5927, 63
          %s5930 = smul.addr %s5929, 8
          %s5931 = scalar_lea.vmem %s17, %s5930
        $region128: #{vae_forward.1} parent=123 // pred_fallthru
          _
      $region124: #{vae_forward.1} parent=5 // pred_fallthru
        _
    $region6: #{vae_forward.1} parent=1 // loop_footer
      %s31 = sadd.s32 1, %s27
    $region7: #{vae_forward.1} parent=1 // loop_footer_branch
      %26 = sbr.rel target = $region3
    $region8: #{vae_forward.1} parent=1 // loop_exit
      _
    %5932 = vsyncpa [#allocation3], 1
    %s5933 = scalar_lea.sflag [#allocation3], 1
    %5934 = vsyncpa %s5933, 1
    %5935 = vsyncpa [#allocation5], 1
    %5936 = vsyncpa [#allocation8], 1
    %5937 = vsyncpa [#allocation11], 1

</llo_original>
